<compile_context>
chip_gen: v7x
topology: tpu7x:2x2x1
jax: 0.10.0
libtpu: 0.0.40
codegen_flags: <defaults>
</compile_context>

<pallas_src>
import numpy as np
import jax
import jax.numpy as jnp
from jax.experimental import pallas as pl
from jax.experimental.pallas import tpu as pltpu


def _vmem_budgets():
    """(per-tile block budget incl. double-buffering, scoped vmem limit) per generation."""
    try:
        cap = pltpu.get_tpu_info().vmem_capacity_bytes
    except Exception:
        cap = 128 * 1024 * 1024
    if cap >= 100 * 1024 * 1024:               # v5e / v6e: 128 MiB physical VMEM
        return 48 * 1024 * 1024, 64 * 1024 * 1024
    return 20 * 1024 * 1024, 32 * 1024 * 1024  # v7x: 64 MiB per TensorCore


def _compiler_params(vmem_limit):
    return pltpu.CompilerParams(
        dimension_semantics=("parallel", "parallel"),
        vmem_limit_bytes=vmem_limit,
    )


def _nearest_upsample_matrix(w):
    """(W/2, W) matrix R with R[k, j] = 1 iff j // 2 == k, so  row @ R  is the exact
    2x nearest-neighbour width upsample (== 4 * conv_transpose2d with the 0.25 kernel)."""
    cols = np.arange(w) // 2
    rows = np.arange(w // 2)
    return jnp.asarray((cols[None, :] == rows[:, None]).astype(np.float32))


def _pick_tile_rows(n, cin, h, w, budget):
    """Row-tile height: power-of-two divisor of H (mult. of 16, or H itself), fitting
    the VMEM budget, capped to bound unrolled code size, and giving >= 2 grid units."""
    def block_bytes(tr):
        x_b = 2 * cin * tr * w * 4
        o_b = 2 * 8 * tr * w * 4                       # C=3 padded to 8 sublanes
        s_b = 2 * 8 * (tr // 2) * max(w // 2, 1) * 4
        r_b = 2 * max(w // 2, 8) * w * 4
        return x_b + o_b + s_b + r_b

    def can_halve(t):
        return t % 2 == 0 and (t // 2) % 16 == 0

    tr = h
    while can_halve(tr) and (block_bytes(tr) > budget or tr > 128):
        tr //= 2
    while can_halve(tr) and n * (h // tr) < 2:         # feed both v7x TensorCores
        tr //= 2
    return tr


def _pick_tile_pixels(n, cin, hw, budget):
    """Flat-pixel tile for the skip=None path: power-of-two divisor of H*W (>=128)."""
    def block_bytes(tp):
        return 2 * (cin + 8 + 1) * tp * 4

    def can_halve(t):
        return t % 2 == 0 and t // 2 >= 128

    tp = hw
    while can_halve(tp) and block_bytes(tp) > budget:
        tp //= 2
    while can_halve(tp) and n * (hw // tp) < 2:        # feed both v7x TensorCores
        tp //= 2
    return tp


def _conv1x1_upsample_add_pallas(x, w2, skip, rmat, bias, tr, out_dtype, vmem_limit):
    """Fused: out = (w2 . x) + bias + nearest2x(skip).
    x: (N, Cin, H, W), w2: (C, Cin) pre-scaled, skip: (N, C, H/2, W/2),
    rmat: (W/2, W), bias: (C, 1)."""
    n, cin, h, w = x.shape
    c = w2.shape[0]
    tr2 = tr // 2

    def kernel(x_ref, w_ref, s_ref, r_ref, b_ref, o_ref):
        # x_ref: (Cin, tr, W)  w_ref: (C, Cin)  s_ref: (C, tr/2, W/2)
        # r_ref: (W/2, W)      b_ref: (C, 1)    o_ref: (C, tr, W)
        wv = w_ref[...]
        rv = r_ref[...]
        bv = b_ref[...]
        # Static (unrolled) loop over output row-pairs; every intermediate is stored
        # immediately so vreg live ranges stay short.  Only 2-D dots and static row
        # slices are used -- no in-kernel reshapes / interleaves.
        for rr in range(tr2):
            # width doubling of one skip row via the selection-matrix matmul (MXU idle);
            # height doubling = reuse of `u` for both rows of the output pair.
            u = jnp.dot(s_ref[:, rr, :].astype(jnp.float32), rv,
                        preferred_element_type=jnp.float32) + bv
            y0 = jnp.dot(wv, x_ref[:, 2 * rr, :], preferred_element_type=jnp.float32)
            y1 = jnp.dot(wv, x_ref[:, 2 * rr + 1, :], preferred_element_type=jnp.float32)
            o_ref[:, 2 * rr, :] = (y0 + u).astype(o_ref.dtype)
            o_ref[:, 2 * rr + 1, :] = (y1 + u).astype(o_ref.dtype)

    return pl.pallas_call(
        kernel,
        out_shape=jax.ShapeDtypeStruct((n, c, h, w), out_dtype),
        grid=(n, h // tr),
        in_specs=[
            pl.BlockSpec((None, cin, tr, w), lambda b, t: (b, 0, t, 0)),
            pl.BlockSpec((c, cin), lambda b, t: (0, 0)),
            pl.BlockSpec((None, c, tr2, w // 2), lambda b, t: (b, 0, t, 0)),
            pl.BlockSpec((w // 2, w), lambda b, t: (0, 0)),
            pl.BlockSpec((c, 1), lambda b, t: (0, 0)),
        ],
        out_specs=pl.BlockSpec((None, c, tr, w), lambda b, t: (b, 0, t, 0)),
        compiler_params=_compiler_params(vmem_limit),
    )(x, w2, skip, rmat, bias)


def _conv1x1_pallas(x_flat, w2, bias, tp, out_dtype, vmem_limit):
    """skip=None path: out = (w2 . x) + bias on a flat, lane-dense pixel axis."""
    n, cin, hw = x_flat.shape
    c = w2.shape[0]

    def kernel(x_ref, w_ref, b_ref, o_ref):
        y = jnp.dot(w_ref[...], x_ref[...], preferred_element_type=jnp.float32)
        o_ref[...] = (y + b_ref[...]).astype(o_ref.dtype)

    return pl.pallas_call(
        kernel,
        out_shape=jax.ShapeDtypeStruct((n, c, hw), out_dtype),
        grid=(n, pl.cdiv(hw, tp)),
        in_specs=[
            pl.BlockSpec((None, cin, tp), lambda b, t: (b, 0, t)),
            pl.BlockSpec((c, cin), lambda b, t: (0, 0)),
            pl.BlockSpec((c, 1), lambda b, t: (0, 0)),
        ],
        out_specs=pl.BlockSpec((None, c, tp), lambda b, t: (b, 0, t)),
        compiler_params=_compiler_params(vmem_limit),
    )(x_flat, w2, bias)


def to_rgb_forward(x, skip, weight, bias=None, *, tile_rows=None, tile_pixels=None,
                   compute_dtype=None, out_dtype=jnp.float32):
    """ToRGB.forward.
    x: (N, Cin, H, W); skip: (N, C, H/2, W/2) or None; weight: (C, Cin, 1, 1);
    bias: None or (C,)/(1,C,1,1) (module's optional bias=True).
    compute_dtype: e.g. jnp.bfloat16 to halve the dominant x-stream HBM read.
    Returns (N, C, H, W) in out_dtype (NCHW)."""
    n, cin, h, w = x.shape
    c = weight.shape[0]
    scale = float(1.0 / np.sqrt(cin * 1 * 1 + 1e-8))          # EqualConv2d fan-in scale
    w2 = (weight.reshape(c, cin) * scale).astype(jnp.float32)  # tiny, folded for free
    b2 = (jnp.zeros((c, 1), jnp.float32) if bias is None
          else jnp.asarray(bias, jnp.float32).reshape(c, 1))
    if compute_dtype is not None:
        x = x.astype(compute_dtype)
        w2 = w2.astype(compute_dtype)

    budget, vmem_limit = _vmem_budgets()

    if skip is None:
        hw = h * w
        x_flat = x.reshape(n, cin, hw)                         # free reshape (contiguous)
        tp = tile_pixels if tile_pixels is not None else _pick_tile_pixels(n, cin, hw, budget)
        out_flat = _conv1x1_pallas(x_flat, w2, b2, tp, out_dtype, vmem_limit)
        return out_flat.reshape(n, c, h, w)

    assert h % 2 == 0 and w % 2 == 0, "upsampled output must have even H, W"
    tr = tile_rows if tile_rows is not None else _pick_tile_rows(n, cin, h, w, budget)
    assert h % tr == 0 and tr % 2 == 0 and (tr == h or tr % 16 == 0), \
        f"tile_rows={tr} must divide H, be even, and be a multiple of 16 (or equal H)"
    rmat = _nearest_upsample_matrix(w)
    return _conv1x1_upsample_add_pallas(x, w2, skip, rmat, b2, tr, out_dtype, vmem_limit)


def _reference_forward(x, skip, weight, bias=None):
    """Pure-JAX reference of the PyTorch module (for correctness checks only)."""
    n, cin, h, w = x.shape
    scale = 1.0 / np.sqrt(cin * 1 * 1 + 1e-8)
    y = jnp.einsum("nchw,oc->nohw", x, weight[:, :, 0, 0] * scale)
    if bias is not None:
        y = y + jnp.asarray(bias, jnp.float32).reshape(1, -1, 1, 1)
    if skip is None:
        return y
    # Blur2d([0.5,0.5], stride=0.5): 4*conv_transpose2d(skip, 0.25*ones(2,2), s=2, groups=C)
    # == exact 2x nearest-neighbour upsample (padding arg is unused in the upsample branch).
    up = jnp.repeat(jnp.repeat(skip, 2, axis=2), 2, axis=3)
    return y + up


if __name__ == "__main__":
    key = jax.random.PRNGKey(0)
    k1, k2, k3, k4, k5, k6 = jax.random.split(key, 6)

    # Small shapes consistent with ToRGB: feature map + half-resolution RGB skip.
    N, Cin, H, W = 2, 8, 16, 16
    C = 3
    x = jax.random.normal(k1, (N, Cin, H, W), jnp.float32)
    skip = jax.random.normal(k2, (N, C, H // 2, W // 2), jnp.float32)
    weight = jax.random.normal(k3, (C, Cin, 1, 1), jnp.float32)

    # default path (fused upsample, single row-tile at this tiny size)
    out = jax.block_until_ready(to_rgb_forward(x, skip, weight))
    ref = jax.block_until_ready(_reference_forward(x, skip, weight))
    assert out.shape == (N, C, H, W), out.shape
    np.testing.assert_allclose(np.asarray(out), np.asarray(ref), rtol=1e-5, atol=1e-5)

    # larger spatial size with an explicit row tile -> multi-tile pipelined grid
    H2 = W2 = 32
    x2 = jax.random.normal(k4, (N, Cin, H2, W2), jnp.float32)
    skip2 = jax.random.normal(k5, (N, C, H2 // 2, W2 // 2), jnp.float32)
    out2 = jax.block_until_ready(to_rgb_forward(x2, skip2, weight, tile_rows=16))
    ref2 = jax.block_until_ready(_reference_forward(x2, skip2, weight))
    np.testing.assert_allclose(np.asarray(out2), np.asarray(ref2), rtol=1e-5, atol=1e-5)

    # optional bias (module constructed with bias=True)
    bias = jax.random.normal(k6, (C,), jnp.float32)
    out_b = jax.block_until_ready(to_rgb_forward(x, skip, weight, bias=bias))
    ref_b = jax.block_until_ready(_reference_forward(x, skip, weight, bias=bias))
    np.testing.assert_allclose(np.asarray(out_b), np.asarray(ref_b), rtol=1e-5, atol=1e-5)

    # skip=None path (no upsample branch), multi-pixel-tile grid
    out_ns = jax.block_until_ready(to_rgb_forward(x2, None, weight, tile_pixels=512))
    ref_ns = jax.block_until_ready(_reference_forward(x2, None, weight))
    np.testing.assert_allclose(np.asarray(out_ns), np.asarray(ref_ns), rtol=1e-5, atol=1e-5)

    # bf16 x-stream path (halves the dominant HBM read; looser tolerance vs f32 reference)
    out_bf = jax.block_until_ready(to_rgb_forward(x, skip, weight, compute_dtype=jnp.bfloat16))
    np.testing.assert_allclose(np.asarray(out_bf), np.asarray(ref), rtol=5e-2, atol=5e-2)

    print("KERNEL_OK")
</pallas_src>

<mosaic_0001>
module attributes {stable_mosaic.version = 11 : i64} {
  func.func @kernel(%arg0: i32, %arg1: i32, %arg2: memref<1x8x16x16xf32, #tpu.memory_space<vmem>>, %arg3: memref<3x8xf32, #tpu.memory_space<vmem>>, %arg4: memref<1x3x8x8xf32, #tpu.memory_space<vmem>>, %arg5: memref<8x16xf32, #tpu.memory_space<vmem>>, %arg6: memref<3x1xf32, #tpu.memory_space<vmem>>, %arg7: memref<1x3x16x16xf32, #tpu.memory_space<vmem>>) attributes {dimension_semantics = [#tpu.dimension_semantics<parallel>, #tpu.dimension_semantics<parallel>], iteration_bounds = array<i64: 2, 1>, scalar_prefetch = 0 : i64, scratch_operands = 0 : i64, tpu.core_type = #tpu.core_type<tc>, window_params = [{transform_indices = @transform_0, window_bounds = array<i64: 1, 8, 16, 16>}, {pipeline_mode = #tpu.pipeline_mode<synchronous>, transform_indices = @transform_1, window_bounds = array<i64: 3, 8>}, {transform_indices = @transform_2, window_bounds = array<i64: 1, 3, 8, 8>}, {pipeline_mode = #tpu.pipeline_mode<synchronous>, transform_indices = @transform_3, window_bounds = array<i64: 8, 16>}, {pipeline_mode = #tpu.pipeline_mode<synchronous>, transform_indices = @transform_4, window_bounds = array<i64: 3, 1>}, {transform_indices = @transform_5, window_bounds = array<i64: 1, 3, 16, 16>}]} {
    %c0 = arith.constant 0 : index
    %c0_0 = arith.constant 0 : index
    %0 = vector.load %arg3[%c0, %c0_0] : memref<3x8xf32, #tpu.memory_space<vmem>>, vector<3x8xf32>
    %c0_1 = arith.constant 0 : index
    %c0_2 = arith.constant 0 : index
    %1 = vector.load %arg5[%c0_1, %c0_2] : memref<8x16xf32, #tpu.memory_space<vmem>>, vector<8x16xf32>
    %c0_3 = arith.constant 0 : index
    %c0_4 = arith.constant 0 : index
    %2 = vector.load %arg6[%c0_3, %c0_4] : memref<3x1xf32, #tpu.memory_space<vmem>>, vector<3x1xf32>
    %c0_5 = arith.constant 0 : index
    %c0_6 = arith.constant 0 : index
    %c0_7 = arith.constant 0 : index
    %c0_8 = arith.constant 0 : index
    %3 = vector.load %arg4[%c0_5, %c0_6, %c0_7, %c0_8] : memref<1x3x8x8xf32, #tpu.memory_space<vmem>>, vector<1x3x1x8xf32>
    %4 = vector.shape_cast %3 : vector<1x3x1x8xf32> to vector<3x8xf32>
    %cst = arith.constant dense<0.000000e+00> : vector<3x16xf32>
    %5 = tpu.matmul %4, %1, %cst {dimension_numbers = #tpu.dot_dimension_numbers<[1], [0], [0], [1], [0, 0, 1, 1], [], []>} : vector<3x8xf32>, vector<8x16xf32>, vector<3x16xf32> -> vector<3x16xf32>
    %6 = vector.broadcast %2 : vector<3x1xf32> to vector<3x16xf32>
    %7 = arith.addf %5, %6 : vector<3x16xf32>
    %c0_9 = arith.constant 0 : index
    %c0_10 = arith.constant 0 : index
    %c0_11 = arith.constant 0 : index
    %c0_12 = arith.constant 0 : index
    %8 = vector.load %arg2[%c0_9, %c0_10, %c0_11, %c0_12] : memref<1x8x16x16xf32, #tpu.memory_space<vmem>>, vector<1x8x1x16xf32>
    %9 = vector.shape_cast %8 : vector<1x8x1x16xf32> to vector<8x16xf32>
    %cst_13 = arith.constant dense<0.000000e+00> : vector<3x16xf32>
    %10 = tpu.matmul %0, %9, %cst_13 {dimension_numbers = #tpu.dot_dimension_numbers<[1], [0], [0], [1], [0, 0, 1, 1], [], []>} : vector<3x8xf32>, vector<8x16xf32>, vector<3x16xf32> -> vector<3x16xf32>
    %c0_14 = arith.constant 0 : index
    %c0_15 = arith.constant 0 : index
    %c1 = arith.constant 1 : index
    %c0_16 = arith.constant 0 : index
    %11 = vector.load %arg2[%c0_14, %c0_15, %c1, %c0_16] : memref<1x8x16x16xf32, #tpu.memory_space<vmem>>, vector<1x8x1x16xf32>
    %12 = vector.shape_cast %11 : vector<1x8x1x16xf32> to vector<8x16xf32>
    %cst_17 = arith.constant dense<0.000000e+00> : vector<3x16xf32>
    %13 = tpu.matmul %0, %12, %cst_17 {dimension_numbers = #tpu.dot_dimension_numbers<[1], [0], [0], [1], [0, 0, 1, 1], [], []>} : vector<3x8xf32>, vector<8x16xf32>, vector<3x16xf32> -> vector<3x16xf32>
    %14 = arith.addf %10, %7 : vector<3x16xf32>
    %c0_18 = arith.constant 0 : index
    %c0_19 = arith.constant 0 : index
    %c0_20 = arith.constant 0 : index
    %c0_21 = arith.constant 0 : index
    %15 = vector.load %arg7[%c0_18, %c0_19, %c0_20, %c0_21] : memref<1x3x16x16xf32, #tpu.memory_space<vmem>>, vector<1x3x1x16xf32>
    %16 = vector.shape_cast %15 : vector<1x3x1x16xf32> to vector<3x16xf32>
    %17 = vector.shape_cast %14 : vector<3x16xf32> to vector<1x3x1x16xf32>
    tpu.vector_store %arg7[%c0_18, %c0_19, %c0_20, %c0_21], %17 {strides = array<i32>} : memref<1x3x16x16xf32, #tpu.memory_space<vmem>>, vector<1x3x1x16xf32>,
    %18 = arith.addf %13, %7 : vector<3x16xf32>
    %c0_22 = arith.constant 0 : index
    %c0_23 = arith.constant 0 : index
    %c1_24 = arith.constant 1 : index
    %c0_25 = arith.constant 0 : index
    %19 = vector.load %arg7[%c0_22, %c0_23, %c1_24, %c0_25] : memref<1x3x16x16xf32, #tpu.memory_space<vmem>>, vector<1x3x1x16xf32>
    %20 = vector.shape_cast %19 : vector<1x3x1x16xf32> to vector<3x16xf32>
    %21 = vector.shape_cast %18 : vector<3x16xf32> to vector<1x3x1x16xf32>
    tpu.vector_store %arg7[%c0_22, %c0_23, %c1_24, %c0_25], %21 {strides = array<i32>} : memref<1x3x16x16xf32, #tpu.memory_space<vmem>>, vector<1x3x1x16xf32>,
    %c0_26 = arith.constant 0 : index
    %c0_27 = arith.constant 0 : index
    %c1_28 = arith.constant 1 : index
    %c0_29 = arith.constant 0 : index
    %22 = vector.load %arg4[%c0_26, %c0_27, %c1_28, %c0_29] : memref<1x3x8x8xf32, #tpu.memory_space<vmem>>, vector<1x3x1x8xf32>
    %23 = vector.shape_cast %22 : vector<1x3x1x8xf32> to vector<3x8xf32>
    %cst_30 = arith.constant dense<0.000000e+00> : vector<3x16xf32>
    %24 = tpu.matmul %23, %1, %cst_30 {dimension_numbers = #tpu.dot_dimension_numbers<[1], [0], [0], [1], [0, 0, 1, 1], [], []>} : vector<3x8xf32>, vector<8x16xf32>, vector<3x16xf32> -> vector<3x16xf32>
    %25 = vector.broadcast %2 : vector<3x1xf32> to vector<3x16xf32>
    %26 = arith.addf %24, %25 : vector<3x16xf32>
    %c0_31 = arith.constant 0 : index
    %c0_32 = arith.constant 0 : index
    %c2 = arith.constant 2 : index
    %c0_33 = arith.constant 0 : index
    %27 = vector.load %arg2[%c0_31, %c0_32, %c2, %c0_33] : memref<1x8x16x16xf32, #tpu.memory_space<vmem>>, vector<1x8x1x16xf32>
    %28 = vector.shape_cast %27 : vector<1x8x1x16xf32> to vector<8x16xf32>
    %cst_34 = arith.constant dense<0.000000e+00> : vector<3x16xf32>
    %29 = tpu.matmul %0, %28, %cst_34 {dimension_numbers = #tpu.dot_dimension_numbers<[1], [0], [0], [1], [0, 0, 1, 1], [], []>} : vector<3x8xf32>, vector<8x16xf32>, vector<3x16xf32> -> vector<3x16xf32>
    %c0_35 = arith.constant 0 : index
    %c0_36 = arith.constant 0 : index
    %c3 = arith.constant 3 : index
    %c0_37 = arith.constant 0 : index
    %30 = vector.load %arg2[%c0_35, %c0_36, %c3, %c0_37] : memref<1x8x16x16xf32, #tpu.memory_space<vmem>>, vector<1x8x1x16xf32>
    %31 = vector.shape_cast %30 : vector<1x8x1x16xf32> to vector<8x16xf32>
    %cst_38 = arith.constant dense<0.000000e+00> : vector<3x16xf32>
    %32 = tpu.matmul %0, %31, %cst_38 {dimension_numbers = #tpu.dot_dimension_numbers<[1], [0], [0], [1], [0, 0, 1, 1], [], []>} : vector<3x8xf32>, vector<8x16xf32>, vector<3x16xf32> -> vector<3x16xf32>
    %33 = arith.addf %29, %26 : vector<3x16xf32>
    %c0_39 = arith.constant 0 : index
    %c0_40 = arith.constant 0 : index
    %c2_41 = arith.constant 2 : index
    %c0_42 = arith.constant 0 : index
    %34 = vector.load %arg7[%c0_39, %c0_40, %c2_41, %c0_42] : memref<1x3x16x16xf32, #tpu.memory_space<vmem>>, vector<1x3x1x16xf32>
    %35 = vector.shape_cast %34 : vector<1x3x1x16xf32> to vector<3x16xf32>
    %36 = vector.shape_cast %33 : vector<3x16xf32> to vector<1x3x1x16xf32>
    tpu.vector_store %arg7[%c0_39, %c0_40, %c2_41, %c0_42], %36 {strides = array<i32>} : memref<1x3x16x16xf32, #tpu.memory_space<vmem>>, vector<1x3x1x16xf32>,
    %37 = arith.addf %32, %26 : vector<3x16xf32>
    %c0_43 = arith.constant 0 : index
    %c0_44 = arith.constant 0 : index
    %c3_45 = arith.constant 3 : index
    %c0_46 = arith.constant 0 : index
    %38 = vector.load %arg7[%c0_43, %c0_44, %c3_45, %c0_46] : memref<1x3x16x16xf32, #tpu.memory_space<vmem>>, vector<1x3x1x16xf32>
    %39 = vector.shape_cast %38 : vector<1x3x1x16xf32> to vector<3x16xf32>
    %40 = vector.shape_cast %37 : vector<3x16xf32> to vector<1x3x1x16xf32>
    tpu.vector_store %arg7[%c0_43, %c0_44, %c3_45, %c0_46], %40 {strides = array<i32>} : memref<1x3x16x16xf32, #tpu.memory_space<vmem>>, vector<1x3x1x16xf32>,
    %c0_47 = arith.constant 0 : index
    %c0_48 = arith.constant 0 : index
    %c2_49 = arith.constant 2 : index
    %c0_50 = arith.constant 0 : index
    %41 = vector.load %arg4[%c0_47, %c0_48, %c2_49, %c0_50] : memref<1x3x8x8xf32, #tpu.memory_space<vmem>>, vector<1x3x1x8xf32>
    %42 = vector.shape_cast %41 : vector<1x3x1x8xf32> to vector<3x8xf32>
    %cst_51 = arith.constant dense<0.000000e+00> : vector<3x16xf32>
    %43 = tpu.matmul %42, %1, %cst_51 {dimension_numbers = #tpu.dot_dimension_numbers<[1], [0], [0], [1], [0, 0, 1, 1], [], []>} : vector<3x8xf32>, vector<8x16xf32>, vector<3x16xf32> -> vector<3x16xf32>
    %44 = vector.broadcast %2 : vector<3x1xf32> to vector<3x16xf32>
    %45 = arith.addf %43, %44 : vector<3x16xf32>
    %c0_52 = arith.constant 0 : index
    %c0_53 = arith.constant 0 : index
    %c4 = arith.constant 4 : index
    %c0_54 = arith.constant 0 : index
    %46 = vector.load %arg2[%c0_52, %c0_53, %c4, %c0_54] : memref<1x8x16x16xf32, #tpu.memory_space<vmem>>, vector<1x8x1x16xf32>
    %47 = vector.shape_cast %46 : vector<1x8x1x16xf32> to vector<8x16xf32>
    %cst_55 = arith.constant dense<0.000000e+00> : vector<3x16xf32>
    %48 = tpu.matmul %0, %47, %cst_55 {dimension_numbers = #tpu.dot_dimension_numbers<[1], [0], [0], [1], [0, 0, 1, 1], [], []>} : vector<3x8xf32>, vector<8x16xf32>, vector<3x16xf32> -> vector<3x16xf32>
    %c0_56 = arith.constant 0 : index
    %c0_57 = arith.constant 0 : index
    %c5 = arith.constant 5 : index
    %c0_58 = arith.constant 0 : index
    %49 = vector.load %arg2[%c0_56, %c0_57, %c5, %c0_58] : memref<1x8x16x16xf32, #tpu.memory_space<vmem>>, vector<1x8x1x16xf32>
    %50 = vector.shape_cast %49 : vector<1x8x1x16xf32> to vector<8x16xf32>
    %cst_59 = arith.constant dense<0.000000e+00> : vector<3x16xf32>
    %51 = tpu.matmul %0, %50, %cst_59 {dimension_numbers = #tpu.dot_dimension_numbers<[1], [0], [0], [1], [0, 0, 1, 1], [], []>} : vector<3x8xf32>, vector<8x16xf32>, vector<3x16xf32> -> vector<3x16xf32>
    %52 = arith.addf %48, %45 : vector<3x16xf32>
    %c0_60 = arith.constant 0 : index
    %c0_61 = arith.constant 0 : index
    %c4_62 = arith.constant 4 : index
    %c0_63 = arith.constant 0 : index
    %53 = vector.load %arg7[%c0_60, %c0_61, %c4_62, %c0_63] : memref<1x3x16x16xf32, #tpu.memory_space<vmem>>, vector<1x3x1x16xf32>
    %54 = vector.shape_cast %53 : vector<1x3x1x16xf32> to vector<3x16xf32>
    %55 = vector.shape_cast %52 : vector<3x16xf32> to vector<1x3x1x16xf32>
    tpu.vector_store %arg7[%c0_60, %c0_61, %c4_62, %c0_63], %55 {strides = array<i32>} : memref<1x3x16x16xf32, #tpu.memory_space<vmem>>, vector<1x3x1x16xf32>,
    %56 = arith.addf %51, %45 : vector<3x16xf32>
    %c0_64 = arith.constant 0 : index
    %c0_65 = arith.constant 0 : index
    %c5_66 = arith.constant 5 : index
    %c0_67 = arith.constant 0 : index
    %57 = vector.load %arg7[%c0_64, %c0_65, %c5_66, %c0_67] : memref<1x3x16x16xf32, #tpu.memory_space<vmem>>, vector<1x3x1x16xf32>
    %58 = vector.shape_cast %57 : vector<1x3x1x16xf32> to vector<3x16xf32>
    %59 = vector.shape_cast %56 : vector<3x16xf32> to vector<1x3x1x16xf32>
    tpu.vector_store %arg7[%c0_64, %c0_65, %c5_66, %c0_67], %59 {strides = array<i32>} : memref<1x3x16x16xf32, #tpu.memory_space<vmem>>, vector<1x3x1x16xf32>,
    %c0_68 = arith.constant 0 : index
    %c0_69 = arith.constant 0 : index
    %c3_70 = arith.constant 3 : index
    %c0_71 = arith.constant 0 : index
    %60 = vector.load %arg4[%c0_68, %c0_69, %c3_70, %c0_71] : memref<1x3x8x8xf32, #tpu.memory_space<vmem>>, vector<1x3x1x8xf32>
    %61 = vector.shape_cast %60 : vector<1x3x1x8xf32> to vector<3x8xf32>
    %cst_72 = arith.constant dense<0.000000e+00> : vector<3x16xf32>
    %62 = tpu.matmul %61, %1, %cst_72 {dimension_numbers = #tpu.dot_dimension_numbers<[1], [0], [0], [1], [0, 0, 1, 1], [], []>} : vector<3x8xf32>, vector<8x16xf32>, vector<3x16xf32> -> vector<3x16xf32>
    %63 = vector.broadcast %2 : vector<3x1xf32> to vector<3x16xf32>
    %64 = arith.addf %62, %63 : vector<3x16xf32>
    %c0_73 = arith.constant 0 : index
    %c0_74 = arith.constant 0 : index
    %c6 = arith.constant 6 : index
    %c0_75 = arith.constant 0 : index
    %65 = vector.load %arg2[%c0_73, %c0_74, %c6, %c0_75] : memref<1x8x16x16xf32, #tpu.memory_space<vmem>>, vector<1x8x1x16xf32>
    %66 = vector.shape_cast %65 : vector<1x8x1x16xf32> to vector<8x16xf32>
    %cst_76 = arith.constant dense<0.000000e+00> : vector<3x16xf32>
    %67 = tpu.matmul %0, %66, %cst_76 {dimension_numbers = #tpu.dot_dimension_numbers<[1], [0], [0], [1], [0, 0, 1, 1], [], []>} : vector<3x8xf32>, vector<8x16xf32>, vector<3x16xf32> -> vector<3x16xf32>
    %c0_77 = arith.constant 0 : index
    %c0_78 = arith.constant 0 : index
    %c7 = arith.constant 7 : index
    %c0_79 = arith.constant 0 : index
    %68 = vector.load %arg2[%c0_77, %c0_78, %c7, %c0_79] : memref<1x8x16x16xf32, #tpu.memory_space<vmem>>, vector<1x8x1x16xf32>
    %69 = vector.shape_cast %68 : vector<1x8x1x16xf32> to vector<8x16xf32>
    %cst_80 = arith.constant dense<0.000000e+00> : vector<3x16xf32>
    %70 = tpu.matmul %0, %69, %cst_80 {dimension_numbers = #tpu.dot_dimension_numbers<[1], [0], [0], [1], [0, 0, 1, 1], [], []>} : vector<3x8xf32>, vector<8x16xf32>, vector<3x16xf32> -> vector<3x16xf32>
    %71 = arith.addf %67, %64 : vector<3x16xf32>
    %c0_81 = arith.constant 0 : index
    %c0_82 = arith.constant 0 : index
    %c6_83 = arith.constant 6 : index
    %c0_84 = arith.constant 0 : index
    %72 = vector.load %arg7[%c0_81, %c0_82, %c6_83, %c0_84] : memref<1x3x16x16xf32, #tpu.memory_space<vmem>>, vector<1x3x1x16xf32>
    %73 = vector.shape_cast %72 : vector<1x3x1x16xf32> to vector<3x16xf32>
    %74 = vector.shape_cast %71 : vector<3x16xf32> to vector<1x3x1x16xf32>
    tpu.vector_store %arg7[%c0_81, %c0_82, %c6_83, %c0_84], %74 {strides = array<i32>} : memref<1x3x16x16xf32, #tpu.memory_space<vmem>>, vector<1x3x1x16xf32>,
    %75 = arith.addf %70, %64 : vector<3x16xf32>
    %c0_85 = arith.constant 0 : index
    %c0_86 = arith.constant 0 : index
    %c7_87 = arith.constant 7 : index
    %c0_88 = arith.constant 0 : index
    %76 = vector.load %arg7[%c0_85, %c0_86, %c7_87, %c0_88] : memref<1x3x16x16xf32, #tpu.memory_space<vmem>>, vector<1x3x1x16xf32>
    %77 = vector.shape_cast %76 : vector<1x3x1x16xf32> to vector<3x16xf32>
    %78 = vector.shape_cast %75 : vector<3x16xf32> to vector<1x3x1x16xf32>
    tpu.vector_store %arg7[%c0_85, %c0_86, %c7_87, %c0_88], %78 {strides = array<i32>} : memref<1x3x16x16xf32, #tpu.memory_space<vmem>>, vector<1x3x1x16xf32>,
    %c0_89 = arith.constant 0 : index
    %c0_90 = arith.constant 0 : index
    %c4_91 = arith.constant 4 : index
    %c0_92 = arith.constant 0 : index
    %79 = vector.load %arg4[%c0_89, %c0_90, %c4_91, %c0_92] : memref<1x3x8x8xf32, #tpu.memory_space<vmem>>, vector<1x3x1x8xf32>
    %80 = vector.shape_cast %79 : vector<1x3x1x8xf32> to vector<3x8xf32>
    %cst_93 = arith.constant dense<0.000000e+00> : vector<3x16xf32>
    %81 = tpu.matmul %80, %1, %cst_93 {dimension_numbers = #tpu.dot_dimension_numbers<[1], [0], [0], [1], [0, 0, 1, 1], [], []>} : vector<3x8xf32>, vector<8x16xf32>, vector<3x16xf32> -> vector<3x16xf32>
    %82 = vector.broadcast %2 : vector<3x1xf32> to vector<3x16xf32>
    %83 = arith.addf %81, %82 : vector<3x16xf32>
    %c0_94 = arith.constant 0 : index
    %c0_95 = arith.constant 0 : index
    %c8 = arith.constant 8 : index
    %c0_96 = arith.constant 0 : index
    %84 = vector.load %arg2[%c0_94, %c0_95, %c8, %c0_96] : memref<1x8x16x16xf32, #tpu.memory_space<vmem>>, vector<1x8x1x16xf32>
    %85 = vector.shape_cast %84 : vector<1x8x1x16xf32> to vector<8x16xf32>
    %cst_97 = arith.constant dense<0.000000e+00> : vector<3x16xf32>
    %86 = tpu.matmul %0, %85, %cst_97 {dimension_numbers = #tpu.dot_dimension_numbers<[1], [0], [0], [1], [0, 0, 1, 1], [], []>} : vector<3x8xf32>, vector<8x16xf32>, vector<3x16xf32> -> vector<3x16xf32>
    %c0_98 = arith.constant 0 : index
    %c0_99 = arith.constant 0 : index
    %c9 = arith.constant 9 : index
    %c0_100 = arith.constant 0 : index
    %87 = vector.load %arg2[%c0_98, %c0_99, %c9, %c0_100] : memref<1x8x16x16xf32, #tpu.memory_space<vmem>>, vector<1x8x1x16xf32>
    %88 = vector.shape_cast %87 : vector<1x8x1x16xf32> to vector<8x16xf32>
    %cst_101 = arith.constant dense<0.000000e+00> : vector<3x16xf32>
    %89 = tpu.matmul %0, %88, %cst_101 {dimension_numbers = #tpu.dot_dimension_numbers<[1], [0], [0], [1], [0, 0, 1, 1], [], []>} : vector<3x8xf32>, vector<8x16xf32>, vector<3x16xf32> -> vector<3x16xf32>
    %90 = arith.addf %86, %83 : vector<3x16xf32>
    %c0_102 = arith.constant 0 : index
    %c0_103 = arith.constant 0 : index
    %c8_104 = arith.constant 8 : index
    %c0_105 = arith.constant 0 : index
    %91 = vector.load %arg7[%c0_102, %c0_103, %c8_104, %c0_105] : memref<1x3x16x16xf32, #tpu.memory_space<vmem>>, vector<1x3x1x16xf32>
    %92 = vector.shape_cast %91 : vector<1x3x1x16xf32> to vector<3x16xf32>
    %93 = vector.shape_cast %90 : vector<3x16xf32> to vector<1x3x1x16xf32>
    tpu.vector_store %arg7[%c0_102, %c0_103, %c8_104, %c0_105], %93 {strides = array<i32>} : memref<1x3x16x16xf32, #tpu.memory_space<vmem>>, vector<1x3x1x16xf32>,
    %94 = arith.addf %89, %83 : vector<3x16xf32>
    %c0_106 = arith.constant 0 : index
    %c0_107 = arith.constant 0 : index
    %c9_108 = arith.constant 9 : index
    %c0_109 = arith.constant 0 : index
    %95 = vector.load %arg7[%c0_106, %c0_107, %c9_108, %c0_109] : memref<1x3x16x16xf32, #tpu.memory_space<vmem>>, vector<1x3x1x16xf32>
    %96 = vector.shape_cast %95 : vector<1x3x1x16xf32> to vector<3x16xf32>
    %97 = vector.shape_cast %94 : vector<3x16xf32> to vector<1x3x1x16xf32>
    tpu.vector_store %arg7[%c0_106, %c0_107, %c9_108, %c0_109], %97 {strides = array<i32>} : memref<1x3x16x16xf32, #tpu.memory_space<vmem>>, vector<1x3x1x16xf32>,
    %c0_110 = arith.constant 0 : index
    %c0_111 = arith.constant 0 : index
    %c5_112 = arith.constant 5 : index
    %c0_113 = arith.constant 0 : index
    %98 = vector.load %arg4[%c0_110, %c0_111, %c5_112, %c0_113] : memref<1x3x8x8xf32, #tpu.memory_space<vmem>>, vector<1x3x1x8xf32>
    %99 = vector.shape_cast %98 : vector<1x3x1x8xf32> to vector<3x8xf32>
    %cst_114 = arith.constant dense<0.000000e+00> : vector<3x16xf32>
    %100 = tpu.matmul %99, %1, %cst_114 {dimension_numbers = #tpu.dot_dimension_numbers<[1], [0], [0], [1], [0, 0, 1, 1], [], []>} : vector<3x8xf32>, vector<8x16xf32>, vector<3x16xf32> -> vector<3x16xf32>
    %101 = vector.broadcast %2 : vector<3x1xf32> to vector<3x16xf32>
    %102 = arith.addf %100, %101 : vector<3x16xf32>
    %c0_115 = arith.constant 0 : index
    %c0_116 = arith.constant 0 : index
    %c10 = arith.constant 10 : index
    %c0_117 = arith.constant 0 : index
    %103 = vector.load %arg2[%c0_115, %c0_116, %c10, %c0_117] : memref<1x8x16x16xf32, #tpu.memory_space<vmem>>, vector<1x8x1x16xf32>
    %104 = vector.shape_cast %103 : vector<1x8x1x16xf32> to vector<8x16xf32>
    %cst_118 = arith.constant dense<0.000000e+00> : vector<3x16xf32>
    %105 = tpu.matmul %0, %104, %cst_118 {dimension_numbers = #tpu.dot_dimension_numbers<[1], [0], [0], [1], [0, 0, 1, 1], [], []>} : vector<3x8xf32>, vector<8x16xf32>, vector<3x16xf32> -> vector<3x16xf32>
    %c0_119 = arith.constant 0 : index
    %c0_120 = arith.constant 0 : index
    %c11 = arith.constant 11 : index
    %c0_121 = arith.constant 0 : index
    %106 = vector.load %arg2[%c0_119, %c0_120, %c11, %c0_121] : memref<1x8x16x16xf32, #tpu.memory_space<vmem>>, vector<1x8x1x16xf32>
    %107 = vector.shape_cast %106 : vector<1x8x1x16xf32> to vector<8x16xf32>
    %cst_122 = arith.constant dense<0.000000e+00> : vector<3x16xf32>
    %108 = tpu.matmul %0, %107, %cst_122 {dimension_numbers = #tpu.dot_dimension_numbers<[1], [0], [0], [1], [0, 0, 1, 1], [], []>} : vector<3x8xf32>, vector<8x16xf32>, vector<3x16xf32> -> vector<3x16xf32>
    %109 = arith.addf %105, %102 : vector<3x16xf32>
    %c0_123 = arith.constant 0 : index
    %c0_124 = arith.constant 0 : index
    %c10_125 = arith.constant 10 : index
    %c0_126 = arith.constant 0 : index
    %110 = vector.load %arg7[%c0_123, %c0_124, %c10_125, %c0_126] : memref<1x3x16x16xf32, #tpu.memory_space<vmem>>, vector<1x3x1x16xf32>
    %111 = vector.shape_cast %110 : vector<1x3x1x16xf32> to vector<3x16xf32>
    %112 = vector.shape_cast %109 : vector<3x16xf32> to vector<1x3x1x16xf32>
    tpu.vector_store %arg7[%c0_123, %c0_124, %c10_125, %c0_126], %112 {strides = array<i32>} : memref<1x3x16x16xf32, #tpu.memory_space<vmem>>, vector<1x3x1x16xf32>,
    %113 = arith.addf %108, %102 : vector<3x16xf32>
    %c0_127 = arith.constant 0 : index
    %c0_128 = arith.constant 0 : index
    %c11_129 = arith.constant 11 : index
    %c0_130 = arith.constant 0 : index
    %114 = vector.load %arg7[%c0_127, %c0_128, %c11_129, %c0_130] : memref<1x3x16x16xf32, #tpu.memory_space<vmem>>, vector<1x3x1x16xf32>
    %115 = vector.shape_cast %114 : vector<1x3x1x16xf32> to vector<3x16xf32>
    %116 = vector.shape_cast %113 : vector<3x16xf32> to vector<1x3x1x16xf32>
    tpu.vector_store %arg7[%c0_127, %c0_128, %c11_129, %c0_130], %116 {strides = array<i32>} : memref<1x3x16x16xf32, #tpu.memory_space<vmem>>, vector<1x3x1x16xf32>,
    %c0_131 = arith.constant 0 : index
    %c0_132 = arith.constant 0 : index
    %c6_133 = arith.constant 6 : index
    %c0_134 = arith.constant 0 : index
    %117 = vector.load %arg4[%c0_131, %c0_132, %c6_133, %c0_134] : memref<1x3x8x8xf32, #tpu.memory_space<vmem>>, vector<1x3x1x8xf32>
    %118 = vector.shape_cast %117 : vector<1x3x1x8xf32> to vector<3x8xf32>
    %cst_135 = arith.constant dense<0.000000e+00> : vector<3x16xf32>
    %119 = tpu.matmul %118, %1, %cst_135 {dimension_numbers = #tpu.dot_dimension_numbers<[1], [0], [0], [1], [0, 0, 1, 1], [], []>} : vector<3x8xf32>, vector<8x16xf32>, vector<3x16xf32> -> vector<3x16xf32>
    %120 = vector.broadcast %2 : vector<3x1xf32> to vector<3x16xf32>
    %121 = arith.addf %119, %120 : vector<3x16xf32>
    %c0_136 = arith.constant 0 : index
    %c0_137 = arith.constant 0 : index
    %c12 = arith.constant 12 : index
    %c0_138 = arith.constant 0 : index
    %122 = vector.load %arg2[%c0_136, %c0_137, %c12, %c0_138] : memref<1x8x16x16xf32, #tpu.memory_space<vmem>>, vector<1x8x1x16xf32>
    %123 = vector.shape_cast %122 : vector<1x8x1x16xf32> to vector<8x16xf32>
    %cst_139 = arith.constant dense<0.000000e+00> : vector<3x16xf32>
    %124 = tpu.matmul %0, %123, %cst_139 {dimension_numbers = #tpu.dot_dimension_numbers<[1], [0], [0], [1], [0, 0, 1, 1], [], []>} : vector<3x8xf32>, vector<8x16xf32>, vector<3x16xf32> -> vector<3x16xf32>
    %c0_140 = arith.constant 0 : index
    %c0_141 = arith.constant 0 : index
    %c13 = arith.constant 13 : index
    %c0_142 = arith.constant 0 : index
    %125 = vector.load %arg2[%c0_140, %c0_141, %c13, %c0_142] : memref<1x8x16x16xf32, #tpu.memory_space<vmem>>, vector<1x8x1x16xf32>
    %126 = vector.shape_cast %125 : vector<1x8x1x16xf32> to vector<8x16xf32>
    %cst_143 = arith.constant dense<0.000000e+00> : vector<3x16xf32>
    %127 = tpu.matmul %0, %126, %cst_143 {dimension_numbers = #tpu.dot_dimension_numbers<[1], [0], [0], [1], [0, 0, 1, 1], [], []>} : vector<3x8xf32>, vector<8x16xf32>, vector<3x16xf32> -> vector<3x16xf32>
    %128 = arith.addf %124, %121 : vector<3x16xf32>
    %c0_144 = arith.constant 0 : index
    %c0_145 = arith.constant 0 : index
    %c12_146 = arith.constant 12 : index
    %c0_147 = arith.constant 0 : index
    %129 = vector.load %arg7[%c0_144, %c0_145, %c12_146, %c0_147] : memref<1x3x16x16xf32, #tpu.memory_space<vmem>>, vector<1x3x1x16xf32>
    %130 = vector.shape_cast %129 : vector<1x3x1x16xf32> to vector<3x16xf32>
    %131 = vector.shape_cast %128 : vector<3x16xf32> to vector<1x3x1x16xf32>
    tpu.vector_store %arg7[%c0_144, %c0_145, %c12_146, %c0_147], %131 {strides = array<i32>} : memref<1x3x16x16xf32, #tpu.memory_space<vmem>>, vector<1x3x1x16xf32>,
    %132 = arith.addf %127, %121 : vector<3x16xf32>
    %c0_148 = arith.constant 0 : index
    %c0_149 = arith.constant 0 : index
    %c13_150 = arith.constant 13 : index
    %c0_151 = arith.constant 0 : index
    %133 = vector.load %arg7[%c0_148, %c0_149, %c13_150, %c0_151] : memref<1x3x16x16xf32, #tpu.memory_space<vmem>>, vector<1x3x1x16xf32>
    %134 = vector.shape_cast %133 : vector<1x3x1x16xf32> to vector<3x16xf32>
    %135 = vector.shape_cast %132 : vector<3x16xf32> to vector<1x3x1x16xf32>
    tpu.vector_store %arg7[%c0_148, %c0_149, %c13_150, %c0_151], %135 {strides = array<i32>} : memref<1x3x16x16xf32, #tpu.memory_space<vmem>>, vector<1x3x1x16xf32>,
    %c0_152 = arith.constant 0 : index
    %c0_153 = arith.constant 0 : index
    %c7_154 = arith.constant 7 : index
    %c0_155 = arith.constant 0 : index
    %136 = vector.load %arg4[%c0_152, %c0_153, %c7_154, %c0_155] : memref<1x3x8x8xf32, #tpu.memory_space<vmem>>, vector<1x3x1x8xf32>
    %137 = vector.shape_cast %136 : vector<1x3x1x8xf32> to vector<3x8xf32>
    %cst_156 = arith.constant dense<0.000000e+00> : vector<3x16xf32>
    %138 = tpu.matmul %137, %1, %cst_156 {dimension_numbers = #tpu.dot_dimension_numbers<[1], [0], [0], [1], [0, 0, 1, 1], [], []>} : vector<3x8xf32>, vector<8x16xf32>, vector<3x16xf32> -> vector<3x16xf32>
    %139 = vector.broadcast %2 : vector<3x1xf32> to vector<3x16xf32>
    %140 = arith.addf %138, %139 : vector<3x16xf32>
    %c0_157 = arith.constant 0 : index
    %c0_158 = arith.constant 0 : index
    %c14 = arith.constant 14 : index
    %c0_159 = arith.constant 0 : index
    %141 = vector.load %arg2[%c0_157, %c0_158, %c14, %c0_159] : memref<1x8x16x16xf32, #tpu.memory_space<vmem>>, vector<1x8x1x16xf32>
    %142 = vector.shape_cast %141 : vector<1x8x1x16xf32> to vector<8x16xf32>
    %cst_160 = arith.constant dense<0.000000e+00> : vector<3x16xf32>
    %143 = tpu.matmul %0, %142, %cst_160 {dimension_numbers = #tpu.dot_dimension_numbers<[1], [0], [0], [1], [0, 0, 1, 1], [], []>} : vector<3x8xf32>, vector<8x16xf32>, vector<3x16xf32> -> vector<3x16xf32>
    %c0_161 = arith.constant 0 : index
    %c0_162 = arith.constant 0 : index
    %c15 = arith.constant 15 : index
    %c0_163 = arith.constant 0 : index
    %144 = vector.load %arg2[%c0_161, %c0_162, %c15, %c0_163] : memref<1x8x16x16xf32, #tpu.memory_space<vmem>>, vector<1x8x1x16xf32>
    %145 = vector.shape_cast %144 : vector<1x8x1x16xf32> to vector<8x16xf32>
    %cst_164 = arith.constant dense<0.000000e+00> : vector<3x16xf32>
    %146 = tpu.matmul %0, %145, %cst_164 {dimension_numbers = #tpu.dot_dimension_numbers<[1], [0], [0], [1], [0, 0, 1, 1], [], []>} : vector<3x8xf32>, vector<8x16xf32>, vector<3x16xf32> -> vector<3x16xf32>
    %147 = arith.addf %143, %140 : vector<3x16xf32>
    %c0_165 = arith.constant 0 : index
    %c0_166 = arith.constant 0 : index
    %c14_167 = arith.constant 14 : index
    %c0_168 = arith.constant 0 : index
    %148 = vector.load %arg7[%c0_165, %c0_166, %c14_167, %c0_168] : memref<1x3x16x16xf32, #tpu.memory_space<vmem>>, vector<1x3x1x16xf32>
    %149 = vector.shape_cast %148 : vector<1x3x1x16xf32> to vector<3x16xf32>
    %150 = vector.shape_cast %147 : vector<3x16xf32> to vector<1x3x1x16xf32>
    tpu.vector_store %arg7[%c0_165, %c0_166, %c14_167, %c0_168], %150 {strides = array<i32>} : memref<1x3x16x16xf32, #tpu.memory_space<vmem>>, vector<1x3x1x16xf32>,
    %151 = arith.addf %146, %140 : vector<3x16xf32>
    %c0_169 = arith.constant 0 : index
    %c0_170 = arith.constant 0 : index
    %c15_171 = arith.constant 15 : index
    %c0_172 = arith.constant 0 : index
    %152 = vector.load %arg7[%c0_169, %c0_170, %c15_171, %c0_172] : memref<1x3x16x16xf32, #tpu.memory_space<vmem>>, vector<1x3x1x16xf32>
    %153 = vector.shape_cast %152 : vector<1x3x1x16xf32> to vector<3x16xf32>
    %154 = vector.shape_cast %151 : vector<3x16xf32> to vector<1x3x1x16xf32>
    tpu.vector_store %arg7[%c0_169, %c0_170, %c15_171, %c0_172], %154 {strides = array<i32>} : memref<1x3x16x16xf32, #tpu.memory_space<vmem>>, vector<1x3x1x16xf32>,
    return
  }
  func.func @transform_0(%arg0: i32, %arg1: i32) -> (i32, i32, i32, i32) {
    %c0_i32 = arith.constant 0 : i32
    %c0_i32_0 = arith.constant 0 : i32
    %c0_i32_1 = arith.constant 0 : i32
    return %arg0, %c0_i32, %arg1, %c0_i32_0 : i32, i32, i32, i32
  }
  func.func @transform_1(%arg0: i32, %arg1: i32) -> (i32, i32) {
    %c0_i32 = arith.constant 0 : i32
    %c0_i32_0 = arith.constant 0 : i32
    %c0_i32_1 = arith.constant 0 : i32
    return %c0_i32, %c0_i32_0 : i32, i32
  }
  func.func @transform_2(%arg0: i32, %arg1: i32) -> (i32, i32, i32, i32) {
    %c0_i32 = arith.constant 0 : i32
    %c0_i32_0 = arith.constant 0 : i32
    %c0_i32_1 = arith.constant 0 : i32
    return %arg0, %c0_i32, %arg1, %c0_i32_0 : i32, i32, i32, i32
  }
  func.func @transform_3(%arg0: i32, %arg1: i32) -> (i32, i32) {
    %c0_i32 = arith.constant 0 : i32
    %c0_i32_0 = arith.constant 0 : i32
    %c0_i32_1 = arith.constant 0 : i32
    return %c0_i32, %c0_i32_0 : i32, i32
  }
  func.func @transform_4(%arg0: i32, %arg1: i32) -> (i32, i32) {
    %c0_i32 = arith.constant 0 : i32
    %c0_i32_0 = arith.constant 0 : i32
    %c0_i32_1 = arith.constant 0 : i32
    return %c0_i32, %c0_i32_0 : i32, i32
  }
  func.func @transform_5(%arg0: i32, %arg1: i32) -> (i32, i32, i32, i32) {
    %c0_i32 = arith.constant 0 : i32
    %c0_i32_0 = arith.constant 0 : i32
    %c0_i32_1 = arith.constant 0 : i32
    return %arg0, %c0_i32, %arg1, %c0_i32_0 : i32, i32, i32, i32
  }
}

</mosaic_0001>

<llo_original>
// kernel: tpu_custom_call.1
$region0: #{tpu_custom_call.1}
  #allocation0 [shape = 'u32[]', space=smem, size = 0x4, offset = 0x4, fixed_abs, tag = 'smem constant byte address 0x4 - core index']
  #allocation1 [shape = 'u32[144,128]{1,0:T(1,128)}', space=vmem, size = 0x12000, scoped, tag = 'internal scratch']
  %s0 = inlined_call_operand.hbm [shape: f32[2,8,16,16], index: 0, kind: input, shape index: {}]
  %s1 = inlined_call_operand.hbm [shape: f32[3,8], index: 1, kind: input, shape index: {}]
  %s2 = inlined_call_operand.hbm [shape: f32[2,3,8,8], index: 2, kind: input, shape index: {}]
  %s3 = inlined_call_operand.hbm [shape: f32[8,16], index: 3, kind: input, shape index: {}]
  %s4 = inlined_call_operand.hbm [shape: f32[3,1], index: 4, kind: input, shape index: {}]
  %s5 = inlined_call_operand.hbm [shape: f32[2,3,16,16], index: 5, kind: output, shape index: {}]
  %s6 = sld [smem:[#allocation0]]
  $region73: #{tpu_custom_call.1} parent=0
    _
  %s8 = ssub.s32 1, %s6
  %s9 = scalar_select 0, %s8, %s6
  $region1: #{tpu_custom_call.1} parent=0
    #allocation2 [shape = 'u8[131072]{0}', space=vmem, size = 0x20000, scoped, tag = 'input window, operand 0']
    #allocation3 [shape = 's32[2]{0}', space=sflag, size = 0x8, scoped, tag = 'scoped memory for tpu_custom_call.1']
    #allocation4 [shape = 's32[2]{0}', space=sflag, size = 0x8, scoped, tag = 'scoped memory for tpu_custom_call.1']
    #allocation5 [shape = 'u8[2048]{0}', space=vmem, size = 0x800, scoped, tag = 'input window, operand 1, single buffered']
    #allocation6 [shape = 's32[1]{0}', space=sflag, size = 0x4, scoped, tag = 'scoped memory for tpu_custom_call.1']
    #allocation7 [shape = 'u8[24576]{0}', space=vmem, size = 0x6000, scoped, tag = 'input window, operand 2']
    #allocation8 [shape = 'u8[4096]{0}', space=vmem, size = 0x1000, scoped, tag = 'input window, operand 3, single buffered']
    #allocation9 [shape = 'u8[2048]{0}', space=vmem, size = 0x800, scoped, tag = 'input window, operand 4, single buffered']
    #allocation10 [shape = 's32[1]{0}', space=sflag, size = 0x4, scoped, tag = 'scoped memory for tpu_custom_call.1']
    #allocation11 [shape = 'u8[49152]{0}', space=vmem, size = 0xc000, scoped, tag = 'output window, operand 0']
    %10 = vsyncpa [#allocation3], 0
    %s11 = scalar_lea.sflag [#allocation3], 1
    %12 = vsyncpa %s11, 0
    %13 = vsyncpa [#allocation6], 0
    %14 = vsyncpa [#allocation10], 0
    %15 = vsyncpa [#allocation4], 0
    %s16 = scalar_lea.sflag [#allocation4], 1
    %17 = vsyncpa %s16, 0
    loop: start=0, step=1, limit=4
    $region2: #{tpu_custom_call.1} parent=1 // loop_pre_header
      _
    $region3: #{tpu_custom_call.1} parent=1 // loop_header
      %s19 = sphi 0, %s23
      %p20 = scmp.ge.s32.totalorder %s19, 4
      %s26 = sphi 0, %s38
      %s27 = sphi 0, %s34
      %s28 = sphi 0, %s26
      %s29 = sphi 0, %s27
      %s30 = sphi 0, %s28
      %s31 = sphi 0, %s29
      %s43 = sphi 0, %s45
      %s46 = sphi 0, %s43
      %s47 = sphi 0, %s46
      %s63 = sphi 0, %s47
      %s67 = sphi 0, %s67
      %s69 = sphi 0, %s67
      %s70 = sphi 0, %s69
      %s84 = sphi 0, %s70
      %s92 = sphi 0, %s94
      %s95 = sphi 0, %s92
      %s96 = sphi 0, %s95
      %s112 = sphi 0, %s96
      %s116 = sphi 0, %s116
      %s118 = sphi 0, %s116
      %s119 = sphi 0, %s118
      %s133 = sphi 0, %s119
      %s137 = sphi 0, %s137
      %s139 = sphi 0, %s137
      %s140 = sphi 0, %s139
      %s154 = sphi 0, %s140
      %s162 = sphi 0, %s164
      %s165 = sphi 0, %s162
      %s166 = sphi 0, %s165
      %s182 = sphi 0, %s166
    $region4: #{tpu_custom_call.1} parent=1 // loop_header_branch
      %22 = sbr.rel (%p20) target = $region8
    $region5: #{tpu_custom_call.1} parent=1 // loop_body
      %s24 = ssub.s32 %s19, 1
      %s25 = ssub.s32 %s19, 2
      %s32 = sadd.s32 1, %s27
      %p33 = scmp.ge.s32.totalorder %s32, 1
      %s34 = scalar_select %p33, 0, %s32
      %s35 = sadd.s32 1, %s26
      %s36 = scalar_select %p33, %s35, %s26
      %p37 = scmp.ge.s32.totalorder %s36, 2
      %s38 = scalar_select %p37, 0, %s36
      %s39 = ssub.s32 %s26, %s38
      %s40 = ssub.s32 %s27, %s34
      %s41 = sor.u32 %s39, %s40
      %p42 = scmp.eq.s32.totalorder %s41, 0
      %s44 = sadd.s32 %s43, 1
      %s45 = scalar_select %p42, %s43, %s44
      %p48 = pneg %p42
      %p49 = scmp.eq.s32.totalorder %s19, 1
      %p50 = por %p48, %p49
      %p51 = scmp.ne.s32.totalorder %s43, %s46
      %p52 = scmp.eq.s32.totalorder %s19, 0
      %p53 = por %p51, %p52
      %p54 = scmp.ne.s32.totalorder %s43, %s46
      %p55 = scmp.eq.s32.totalorder %s24, 1
      %p56 = por %p54, %p55
      %p57 = scmp.ne.s32.totalorder %s46, %s47
      %p58 = scmp.eq.s32.totalorder %s24, 0
      %p59 = por %p57, %p58
      %p60 = scmp.ne.s32.totalorder %s46, %s47
      %p61 = scmp.eq.s32.totalorder %s25, 1
      %p62 = por %p60, %p61
      %p64 = scmp.ne.s32.totalorder %s47, %s63
      %p65 = scmp.eq.s32.totalorder %s25, 0
      %p66 = por %p64, %p65
      %s68 = sadd.s32 %s67, 1
      %p71 = scmp.eq.s32.totalorder %s19, 1
      %p72 = scmp.ne.s32.totalorder %s67, %s69
      %p73 = scmp.eq.s32.totalorder %s19, 0
      %p74 = por %p72, %p73
      %p75 = scmp.ne.s32.totalorder %s67, %s69
      %p76 = scmp.eq.s32.totalorder %s24, 1
      %p77 = por %p75, %p76
      %p78 = scmp.ne.s32.totalorder %s69, %s70
      %p79 = scmp.eq.s32.totalorder %s24, 0
      %p80 = por %p78, %p79
      %p81 = scmp.ne.s32.totalorder %s69, %s70
      %p82 = scmp.eq.s32.totalorder %s25, 1
      %p83 = por %p81, %p82
      %p85 = scmp.ne.s32.totalorder %s70, %s84
      %p86 = scmp.eq.s32.totalorder %s25, 0
      %p87 = por %p85, %p86
      %s88 = ssub.s32 %s26, %s38
      %s89 = ssub.s32 %s27, %s34
      %s90 = sor.u32 %s88, %s89
      %p91 = scmp.eq.s32.totalorder %s90, 0
      %s93 = sadd.s32 %s92, 1
      %s94 = scalar_select %p91, %s92, %s93
      %p97 = pneg %p91
      %p98 = scmp.eq.s32.totalorder %s19, 1
      %p99 = por %p97, %p98
      %p100 = scmp.ne.s32.totalorder %s92, %s95
      %p101 = scmp.eq.s32.totalorder %s19, 0
      %p102 = por %p100, %p101
      %p103 = scmp.ne.s32.totalorder %s92, %s95
      %p104 = scmp.eq.s32.totalorder %s24, 1
      %p105 = por %p103, %p104
      %p106 = scmp.ne.s32.totalorder %s95, %s96
      %p107 = scmp.eq.s32.totalorder %s24, 0
      %p108 = por %p106, %p107
      %p109 = scmp.ne.s32.totalorder %s95, %s96
      %p110 = scmp.eq.s32.totalorder %s25, 1
      %p111 = por %p109, %p110
      %p113 = scmp.ne.s32.totalorder %s96, %s112
      %p114 = scmp.eq.s32.totalorder %s25, 0
      %p115 = por %p113, %p114
      %s117 = sadd.s32 %s116, 1
      %p120 = scmp.eq.s32.totalorder %s19, 1
      %p121 = scmp.ne.s32.totalorder %s116, %s118
      %p122 = scmp.eq.s32.totalorder %s19, 0
      %p123 = por %p121, %p122
      %p124 = scmp.ne.s32.totalorder %s116, %s118
      %p125 = scmp.eq.s32.totalorder %s24, 1
      %p126 = por %p124, %p125
      %p127 = scmp.ne.s32.totalorder %s118, %s119
      %p128 = scmp.eq.s32.totalorder %s24, 0
      %p129 = por %p127, %p128
      %p130 = scmp.ne.s32.totalorder %s118, %s119
      %p131 = scmp.eq.s32.totalorder %s25, 1
      %p132 = por %p130, %p131
      %p134 = scmp.ne.s32.totalorder %s119, %s133
      %p135 = scmp.eq.s32.totalorder %s25, 0
      %p136 = por %p134, %p135
      %s138 = sadd.s32 %s137, 1
      %p141 = scmp.eq.s32.totalorder %s19, 1
      %p142 = scmp.ne.s32.totalorder %s137, %s139
      %p143 = scmp.eq.s32.totalorder %s19, 0
      %p144 = por %p142, %p143
      %p145 = scmp.ne.s32.totalorder %s137, %s139
      %p146 = scmp.eq.s32.totalorder %s24, 1
      %p147 = por %p145, %p146
      %p148 = scmp.ne.s32.totalorder %s139, %s140
      %p149 = scmp.eq.s32.totalorder %s24, 0
      %p150 = por %p148, %p149
      %p151 = scmp.ne.s32.totalorder %s139, %s140
      %p152 = scmp.eq.s32.totalorder %s25, 1
      %p153 = por %p151, %p152
      %p155 = scmp.ne.s32.totalorder %s140, %s154
      %p156 = scmp.eq.s32.totalorder %s25, 0
      %p157 = por %p155, %p156
      %s158 = ssub.s32 %s26, %s38
      %s159 = ssub.s32 %s27, %s34
      %s160 = sor.u32 %s158, %s159
      %p161 = scmp.eq.s32.totalorder %s160, 0
      %s163 = sadd.s32 %s162, 1
      %s164 = scalar_select %p161, %s162, %s163
      %p167 = pneg %p161
      %p168 = scmp.eq.s32.totalorder %s19, 1
      %p169 = por %p167, %p168
      %p170 = scmp.ne.s32.totalorder %s162, %s165
      %p171 = scmp.eq.s32.totalorder %s19, 0
      %p172 = por %p170, %p171
      %p173 = scmp.ne.s32.totalorder %s162, %s165
      %p174 = scmp.eq.s32.totalorder %s24, 1
      %p175 = por %p173, %p174
      %p176 = scmp.ne.s32.totalorder %s165, %s166
      %p177 = scmp.eq.s32.totalorder %s24, 0
      %p178 = por %p176, %p177
      %p179 = scmp.ne.s32.totalorder %s165, %s166
      %p180 = scmp.eq.s32.totalorder %s25, 1
      %p181 = por %p179, %p180
      %p183 = scmp.ne.s32.totalorder %s166, %s182
      %p184 = scmp.eq.s32.totalorder %s25, 0
      %p185 = por %p183, %p184
      %p186 = scmp.le.s32.totalorder 1, %s19
      %p187 = scmp.lt.s32.totalorder %s19, 3
      %p188 = pnand %p186, %p187
      %p189 = pneg %p188
      // Predicated region
      $region9: #{tpu_custom_call.1} parent=5 // pred_check
        _
      $region10: #{tpu_custom_call.1} parent=5 // pred_check_branch
        %191 = sbr.rel (%p188) target = $region12
      $region11: #{tpu_custom_call.1} parent=5 // pred_region
        %s192 = ssub.s32 %s19, 1
        // Predicated region
        $region13: #{tpu_custom_call.1} parent=11 // pred_check
          %p193 = pneg %p80
        $region14: #{tpu_custom_call.1} parent=11 // pred_check_branch
          %195 = sbr.rel (%p193) target = $region16
        $region15: #{tpu_custom_call.1} parent=11 // pred_region
          %s197 = ssub.s32 64, 64
          %198 = vsyncadd [#allocation6], %s197
          %s200 = sshll.u32 [#allocation5], 4
          %s201 = int_to_ptr.vmem [resolvable:$true] %s200
          %203 = dma.hbm_to_vmem [thread:$0]  %s1, 64, %s201, [#allocation6]
        $region16: #{tpu_custom_call.1} parent=11 // pred_fallthru
          _
        // Predicated region
        $region17: #{tpu_custom_call.1} parent=11 // pred_check
          %p204 = pneg %p129
        $region18: #{tpu_custom_call.1} parent=11 // pred_check_branch
          %206 = sbr.rel (%p204) target = $region20
        $region19: #{tpu_custom_call.1} parent=11 // pred_region
          %s208 = ssub.s32 128, 128
          %209 = vsyncadd [#allocation6], %s208
          %s211 = sshll.u32 [#allocation8], 4
          %s212 = int_to_ptr.vmem [resolvable:$true] %s211
          %214 = dma.hbm_to_vmem [thread:$0]  %s3, 128, %s212, [#allocation6]
        $region20: #{tpu_custom_call.1} parent=11 // pred_fallthru
          _
        // Predicated region
        $region21: #{tpu_custom_call.1} parent=11 // pred_check
          %p215 = pneg %p150
        $region22: #{tpu_custom_call.1} parent=11 // pred_check_branch
          %217 = sbr.rel (%p215) target = $region24
        $region23: #{tpu_custom_call.1} parent=11 // pred_region
          %s219 = ssub.s32 64, 64
          %220 = vsyncadd [#allocation10], %s219
          %s222 = sshll.u32 [#allocation9], 4
          %s223 = int_to_ptr.vmem [resolvable:$true] %s222
          %225 = dma.hbm_to_vmem [thread:$0]  %s4, 64, %s223, [#allocation10]
        $region24: #{tpu_custom_call.1} parent=11 // pred_fallthru
          _
      $region12: #{tpu_custom_call.1} parent=5 // pred_fallthru
        _
      %p226 = scmp.lt.s32.totalorder %s19, 2
      // Predicated region
      $region25: #{tpu_custom_call.1} parent=5 // pred_check
        %p227 = pneg %p226
      $region26: #{tpu_custom_call.1} parent=5 // pred_check_branch
        %229 = sbr.rel (%p227) target = $region28
      $region27: #{tpu_custom_call.1} parent=5 // pred_region
        // Predicated region
        $region29: #{tpu_custom_call.1} parent=27 // pred_check
          %p230 = pneg %p53
        $region30: #{tpu_custom_call.1} parent=27 // pred_check_branch
          %232 = sbr.rel (%p230) target = $region32
        $region31: #{tpu_custom_call.1} parent=27 // pred_region
          %s233 = sand.u32 %s19, 1
          %s234 = scalar_lea.sflag [#allocation3], %s233
          %s235 = sand.u32 %s43, 1
          %s236 = smul.addr %s235, 128
          %s237 = scalar_lea.vmem [#allocation2], %s236
          %s238 = smul.u32 2, %s27
          %s240 = ssub.s32 2048, 2048
          %241 = vsyncadd %s234, %s240
          %s242 = smul.addr %s26, 16
          %s243 = sadd.s32 %s238, %s242
          %s244 = smul.addr %s243, 128
          %s245 = scalar_lea.hbm %s0, %s244
          %s246 = sshll.u32 %s237, 4
          %s247 = int_to_ptr.vmem [resolvable:$true] %s246
          %252 = dma.hbm_to_vmem [thread:$0]  %s245, 2048, %s247, %s234, 128, 128, 8
        $region32: #{tpu_custom_call.1} parent=27 // pred_fallthru
          _
        // Predicated region
        $region33: #{tpu_custom_call.1} parent=27 // pred_check
          %p253 = pneg %p102
        $region34: #{tpu_custom_call.1} parent=27 // pred_check_branch
          %255 = sbr.rel (%p253) target = $region36
        $region35: #{tpu_custom_call.1} parent=27 // pred_region
          %s256 = sand.u32 %s19, 1
          %s257 = scalar_lea.sflag [#allocation3], %s256
          %s258 = sand.u32 %s92, 1
          %s259 = smul.addr %s258, 24
          %s260 = scalar_lea.vmem [#allocation7], %s259
          %s262 = ssub.s32 384, 384
          %263 = vsyncadd %s257, %s262
          %s264 = smul.addr %s26, 3
          %s265 = sadd.s32 %s27, %s264
          %s266 = smul.addr %s265, 128
          %s267 = scalar_lea.hbm %s2, %s266
          %s268 = sshll.u32 %s260, 4
          %s269 = int_to_ptr.vmem [resolvable:$true] %s268
          %274 = dma.hbm_to_vmem [thread:$0]  %s267, 384, %s269, %s257, 128, 128, 8
        $region36: #{tpu_custom_call.1} parent=27 // pred_fallthru
          _
      $region28: #{tpu_custom_call.1} parent=5 // pred_fallthru
        _
      %p275 = scmp.le.s32.totalorder 1, %s19
      %p276 = scmp.lt.s32.totalorder %s19, 3
      %p277 = pnand %p275, %p276
      %p278 = pneg %p277
      // Predicated region
      $region37: #{tpu_custom_call.1} parent=5 // pred_check
        _
      $region38: #{tpu_custom_call.1} parent=5 // pred_check_branch
        %280 = sbr.rel (%p277) target = $region40
      $region39: #{tpu_custom_call.1} parent=5 // pred_region
        %s281 = ssub.s32 %s19, 1
        %s282 = sand.u32 %s24, 1
        %s283 = scalar_lea.sflag [#allocation3], %s282
        %s284 = sand.u32 %s46, 1
        %s285 = smul.addr %s284, 128
        %s286 = scalar_lea.vmem [#allocation2], %s285
        // Predicated region
        $region41: #{tpu_custom_call.1} parent=39 // pred_check
          %p287 = pneg %p59
        $region42: #{tpu_custom_call.1} parent=39 // pred_check_branch
          %289 = sbr.rel (%p287) target = $region44
        $region43: #{tpu_custom_call.1} parent=39 // pred_region
          %290 = dma.done %s283, 2048
        $region44: #{tpu_custom_call.1} parent=39 // pred_fallthru
          _
        // Predicated region
        $region45: #{tpu_custom_call.1} parent=39 // pred_check
          %p291 = pneg %p80
        $region46: #{tpu_custom_call.1} parent=39 // pred_check_branch
          %293 = sbr.rel (%p291) target = $region48
        $region47: #{tpu_custom_call.1} parent=39 // pred_region
          %294 = dma.done [#allocation6], 64
        $region48: #{tpu_custom_call.1} parent=39 // pred_fallthru
          _
        %s295 = sand.u32 %s24, 1
        %s296 = scalar_lea.sflag [#allocation3], %s295
        %s297 = sand.u32 %s95, 1
        %s298 = smul.addr %s297, 24
        %s299 = scalar_lea.vmem [#allocation7], %s298
        // Predicated region
        $region49: #{tpu_custom_call.1} parent=39 // pred_check
          %p300 = pneg %p108
        $region50: #{tpu_custom_call.1} parent=39 // pred_check_branch
          %302 = sbr.rel (%p300) target = $region52
        $region51: #{tpu_custom_call.1} parent=39 // pred_region
          %303 = dma.done %s296, 384
        $region52: #{tpu_custom_call.1} parent=39 // pred_fallthru
          _
        // Predicated region
        $region53: #{tpu_custom_call.1} parent=39 // pred_check
          %p304 = pneg %p129
        $region54: #{tpu_custom_call.1} parent=39 // pred_check_branch
          %306 = sbr.rel (%p304) target = $region56
        $region55: #{tpu_custom_call.1} parent=39 // pred_region
          %307 = dma.done [#allocation6], 128
        $region56: #{tpu_custom_call.1} parent=39 // pred_fallthru
          _
        // Predicated region
        $region57: #{tpu_custom_call.1} parent=39 // pred_check
          %p308 = pneg %p150
        $region58: #{tpu_custom_call.1} parent=39 // pred_check_branch
          %310 = sbr.rel (%p308) target = $region60
        $region59: #{tpu_custom_call.1} parent=39 // pred_region
          %311 = dma.done [#allocation10], 64
        $region60: #{tpu_custom_call.1} parent=39 // pred_fallthru
          _
        %s312 = sand.u32 %s24, 1
        %s313 = scalar_lea.sflag [#allocation3], %s312
        %s314 = sand.u32 %s46, 1
        %s315 = smul.addr %s314, 128
        %s316 = scalar_lea.vmem [#allocation2], %s315
        %p317 = pneg %p59
        %p318 = pneg %p56
        %p319 = pneg %p80
        %p320 = pneg %p77
        %s321 = sand.u32 %s24, 1
        %s322 = scalar_lea.sflag [#allocation3], %s321
        %s323 = sand.u32 %s95, 1
        %s324 = smul.addr %s323, 24
        %s325 = scalar_lea.vmem [#allocation7], %s324
        %p326 = pneg %p108
        %p327 = pneg %p105
        %p328 = pneg %p129
        %p329 = pneg %p126
        %p330 = pneg %p150
        %p331 = pneg %p147
        %p332 = pneg %p178
        %p333 = pneg %p175
        %s334 = sand.u32 %s165, 1
        %s335 = scalar_lea.sflag [#allocation4], %s334
        %s336 = sand.u32 %s165, 1
        %s337 = smul.addr %s336, 48
        %s338 = scalar_lea.vmem [#allocation11], %s337
        %s339 = smul.u32 2, %s29
        %s340 = smul.u32 2, %s29
        %v341 = vld [vmem:[#allocation5] sm:$0x7]
        %v342 = vld [vmem:[#allocation8] sm:$0xff]
        %v343 = vld [vmem:[#allocation9] sm:$0x7]
        %v344 = vld [vmem:[%s299] sm:$0x1]
        %v345 = vld [vmem:[%s299 + $0x8] sm:$0x1]
        %v346 = vld [vmem:[%s299 + $0x10] sm:$0x1]
        %348 = vset.pattern.permute.xlu0 0
        %349 = vperm.xlu0 %348, %v343
        %v350 = vpop.permute.xlu0 %349
        %v355 = vrot.slane %v345, 7
        %vm356 = vcmask 1041409
        %v357 = vsel %vm356, %v355, %v344
        %v358 = vrot.slane %v346, 6
        %vm359 = vcmask 1042434
        %v360 = vsel %vm359, %v358, %v357
        %vm361 = vcmask 64512
        %v362 = vsel %vm361, %v360, 0
        %364 = vmatprep.subr.mxu0 0.0
        %365 = vmatpush1.msra.mxu0 %v342
        %366 = vmatprep.subr.mxu0 0.0
        %367 = vmatpush1.msra.mxu0 0.0
        %368 = vmatprep.subr.mxu0 0.0
        %369 = vmatpush1.msra.mxu0 0.0
        %370 = vmatprep.subr.mxu0 0.0
        %371 = vmatpush1.msra.mxu0 0.0
        %372 = vmatprep.subr.mxu0 0.0
        %373 = vmatpush1.msra.mxu0 0.0
        %374 = vmatprep.subr.mxu0 0.0
        %375 = vmatpush1.msra.mxu0 0.0
        %376 = vmatprep.subr.mxu0 0.0
        %377 = vmatpush1.msra.mxu0 0.0
        %378 = vmatprep.subr.mxu0 0.0
        %379 = vmatpush1.msra.mxu0 0.0
        %380 = vmatprep.subr.mxu0 0.0
        %381 = vmatpush1.msra.mxu0 0.0
        %382 = vmatprep.subr.mxu0 0.0
        %383 = vmatpush1.msra.mxu0 0.0
        %384 = vmatprep.subr.mxu0 0.0
        %385 = vmatpush1.msra.mxu0 0.0
        %386 = vmatprep.subr.mxu0 0.0
        %387 = vmatpush1.msra.mxu0 0.0
        %388 = vmatprep.subr.mxu0 0.0
        %389 = vmatpush1.msra.mxu0 0.0
        %390 = vmatprep.subr.mxu0 0.0
        %391 = vmatpush1.msra.mxu0 0.0
        %392 = vmatprep.subr.mxu0 0.0
        %393 = vmatpush1.msra.mxu0 0.0
        %394 = vmatprep.subr.mxu0 0.0
        %395 = vmatpush1.msra.mxu0 0.0
        %396 = vmatprep.subr.mxu0 0.0
        %397 = vmatpush1.msra.mxu0 0.0
        %398 = vmatprep.subr.mxu0 0.0
        %399 = vmatpush1.msra.mxu0 0.0
        %400 = vmatprep.subr.mxu0 0.0
        %401 = vmatpush1.msra.mxu0 0.0
        %402 = vmatprep.subr.mxu0 0.0
        %403 = vmatpush1.msra.mxu0 0.0
        %404 = vmatprep.subr.mxu0 0.0
        %405 = vmatpush1.msra.mxu0 0.0
        %406 = vmatprep.subr.mxu0 0.0
        %407 = vmatpush1.msra.mxu0 0.0
        %408 = vmatprep.subr.mxu0 0.0
        %409 = vmatpush1.msra.mxu0 0.0
        %410 = vmatprep.subr.mxu0 0.0
        %411 = vmatpush1.msra.mxu0 0.0
        %412 = vmatprep.subr.mxu0 0.0
        %413 = vmatpush1.msra.mxu0 0.0
        %414 = vmatprep.subr.mxu0 0.0
        %415 = vmatpush1.msra.mxu0 0.0
        %416 = vmatprep.subr.mxu0 0.0
        %417 = vmatpush1.msra.mxu0 0.0
        %418 = vmatprep.subr.mxu0 0.0
        %419 = vmatpush1.msra.mxu0 0.0
        %420 = vmatprep.subr.mxu0 0.0
        %421 = vmatpush1.msra.mxu0 0.0
        %422 = vmatprep.subr.mxu0 0.0
        %423 = vmatpush1.msra.mxu0 0.0
        %424 = vmatprep.subr.mxu0 0.0
        %425 = vmatpush1.msra.mxu0 0.0
        %426 = vmatprep.subr.mxu0 0.0
        %427 = vmatpush1.msra.mxu0 0.0
        %428 = vmatprep.mubr.f32.mxu0 0.0
        %429 = vmatmul.mubr.f32.gmra.mrb[0].mxu0 %v362
        %v430 = vpop.f32.mrb[0].mxu0
        %v431 = vadd.f32 %v350, %v430
        %v432 = vpop.f32.mrb[0].mxu0
        %433 = vdwg.mxu0
        %v434 = vld [vmem:[%s286] sm:$0x1]
        %v435 = vld [vmem:[%s286 + $0x10] sm:$0x1]
        %v436 = vld [vmem:[%s286 + $0x20] sm:$0x1]
        %v437 = vld [vmem:[%s286 + $0x30] sm:$0x1]
        %v438 = vld [vmem:[%s286 + $0x40] sm:$0x1]
        %v439 = vld [vmem:[%s286 + $0x50] sm:$0x1]
        %v440 = vld [vmem:[%s286 + $0x60] sm:$0x1]
        %v441 = vld [vmem:[%s286 + $0x70] sm:$0x1]
        %v442 = vld [vmem:[%s286 + $0x1] sm:$0x1]
        %v443 = vld [vmem:[%s286 + $0x11] sm:$0x1]
        %v444 = vld [vmem:[%s286 + $0x21] sm:$0x1]
        %v445 = vld [vmem:[%s286 + $0x31] sm:$0x1]
        %v446 = vld [vmem:[%s286 + $0x41] sm:$0x1]
        %v447 = vld [vmem:[%s286 + $0x51] sm:$0x1]
        %v448 = vld [vmem:[%s286 + $0x61] sm:$0x1]
        %v449 = vld [vmem:[%s286 + $0x71] sm:$0x1]
        %v458 = vrot.slane %v435, 7
        %v459 = vsel %vm356, %v458, %v434
        %v460 = vrot.slane %v436, 6
        %v461 = vsel %vm359, %v460, %v459
        %v462 = vrot.slane %v437, 5
        %vm463 = vcmask 1043459
        %v464 = vsel %vm463, %v462, %v461
        %v465 = vrot.slane %v438, 4
        %vm466 = vcmask 1044484
        %v467 = vsel %vm466, %v465, %v464
        %v468 = vrot.slane %v439, 3
        %vm469 = vcmask 1045509
        %v470 = vsel %vm469, %v468, %v467
        %v471 = vrot.slane %v440, 2
        %vm472 = vcmask 1046534
        %v473 = vsel %vm472, %v471, %v470
        %v474 = vrot.slane %v441, 1
        %vm475 = vcmask 1047559
        %v476 = vsel %vm475, %v474, %v473
        %v479 = vsel %vm361, %v341, 0
        %481 = vmatprep.subr.mxu0 0.0
        %482 = vmatpush1.msra.mxu0 %v476
        %483 = vmatprep.subr.mxu0 0.0
        %484 = vmatpush1.msra.mxu0 0.0
        %485 = vmatprep.subr.mxu0 0.0
        %486 = vmatpush1.msra.mxu0 0.0
        %487 = vmatprep.subr.mxu0 0.0
        %488 = vmatpush1.msra.mxu0 0.0
        %489 = vmatprep.subr.mxu0 0.0
        %490 = vmatpush1.msra.mxu0 0.0
        %491 = vmatprep.subr.mxu0 0.0
        %492 = vmatpush1.msra.mxu0 0.0
        %493 = vmatprep.subr.mxu0 0.0
        %494 = vmatpush1.msra.mxu0 0.0
        %495 = vmatprep.subr.mxu0 0.0
        %496 = vmatpush1.msra.mxu0 0.0
        %497 = vmatprep.subr.mxu0 0.0
        %498 = vmatpush1.msra.mxu0 0.0
        %499 = vmatprep.subr.mxu0 0.0
        %500 = vmatpush1.msra.mxu0 0.0
        %501 = vmatprep.subr.mxu0 0.0
        %502 = vmatpush1.msra.mxu0 0.0
        %503 = vmatprep.subr.mxu0 0.0
        %504 = vmatpush1.msra.mxu0 0.0
        %505 = vmatprep.subr.mxu0 0.0
        %506 = vmatpush1.msra.mxu0 0.0
        %507 = vmatprep.subr.mxu0 0.0
        %508 = vmatpush1.msra.mxu0 0.0
        %509 = vmatprep.subr.mxu0 0.0
        %510 = vmatpush1.msra.mxu0 0.0
        %511 = vmatprep.subr.mxu0 0.0
        %512 = vmatpush1.msra.mxu0 0.0
        %513 = vmatprep.subr.mxu0 0.0
        %514 = vmatpush1.msra.mxu0 0.0
        %515 = vmatprep.subr.mxu0 0.0
        %516 = vmatpush1.msra.mxu0 0.0
        %517 = vmatprep.subr.mxu0 0.0
        %518 = vmatpush1.msra.mxu0 0.0
        %519 = vmatprep.subr.mxu0 0.0
        %520 = vmatpush1.msra.mxu0 0.0
        %521 = vmatprep.subr.mxu0 0.0
        %522 = vmatpush1.msra.mxu0 0.0
        %523 = vmatprep.subr.mxu0 0.0
        %524 = vmatpush1.msra.mxu0 0.0
        %525 = vmatprep.subr.mxu0 0.0
        %526 = vmatpush1.msra.mxu0 0.0
        %527 = vmatprep.subr.mxu0 0.0
        %528 = vmatpush1.msra.mxu0 0.0
        %529 = vmatprep.subr.mxu0 0.0
        %530 = vmatpush1.msra.mxu0 0.0
        %531 = vmatprep.subr.mxu0 0.0
        %532 = vmatpush1.msra.mxu0 0.0
        %533 = vmatprep.subr.mxu0 0.0
        %534 = vmatpush1.msra.mxu0 0.0
        %535 = vmatprep.subr.mxu0 0.0
        %536 = vmatpush1.msra.mxu0 0.0
        %537 = vmatprep.subr.mxu0 0.0
        %538 = vmatpush1.msra.mxu0 0.0
        %539 = vmatprep.subr.mxu0 0.0
        %540 = vmatpush1.msra.mxu0 0.0
        %541 = vmatprep.subr.mxu0 0.0
        %542 = vmatpush1.msra.mxu0 0.0
        %543 = vmatprep.subr.mxu0 0.0
        %544 = vmatpush1.msra.mxu0 0.0
        %545 = vmatprep.mubr.f32.mxu0 0.0
        %546 = vmatmul.mubr.f32.gmra.mrb[0].mxu0 %v479
        %v547 = vpop.f32.mrb[0].mxu0
        %v548 = vadd.f32 %v431, %v547
        %v549 = vpop.f32.mrb[0].mxu0
        %550 = vdwg.mxu0
        %v553 = vunpack.c.l.s4 1966171168
        %v554 = vunpack.c.0.s8 %v553
        %v555 = vlaneseq
        %v556 = vshrl.u32 %v555, 7
        %v557 = vsub.s32 %v554, %v556
        %v558 = vrot.slane %v548, %v557
        %v559 = vcombine.high %v558, %v558
        %v561 = vunpack.c.l.s4 1966171168
        %v562 = vunpack.c.0.s8 %v561
        %v563 = vlaneseq
        %v564 = vshrl.u32 %v563, 7
        %v565 = vsub.s32 %v562, %v564
        %v566 = vrot.slane %v558, %v565
        %v568 = vunpack.c.l.s4 1966171168
        %v569 = vunpack.c.0.s8 %v568
        %v570 = vlaneseq
        %v571 = vshrl.u32 %v570, 7
        %v572 = vsub.s32 %v569, %v571
        %v573 = vrot.slane %v559, %v572
        %v574 = vcombine.high %v566, %v566
        %vm578 = vcmask 122880
        %579 = vst.msk [vmem:[%s338] sm:$0x1] %vm578, %v566
        %580 = vst.msk [vmem:[%s338 + $0x10] sm:$0x1] %vm578, %v573
        %581 = vst.msk [vmem:[%s338 + $0x20] sm:$0x1] %vm578, %v574
        %v590 = vrot.slane %v443, 7
        %v591 = vsel %vm356, %v590, %v442
        %v592 = vrot.slane %v444, 6
        %v593 = vsel %vm359, %v592, %v591
        %v594 = vrot.slane %v445, 5
        %v595 = vsel %vm463, %v594, %v593
        %v596 = vrot.slane %v446, 4
        %v597 = vsel %vm466, %v596, %v595
        %v598 = vrot.slane %v447, 3
        %v599 = vsel %vm469, %v598, %v597
        %v600 = vrot.slane %v448, 2
        %v601 = vsel %vm472, %v600, %v599
        %v602 = vrot.slane %v449, 1
        %v603 = vsel %vm475, %v602, %v601
        %605 = vmatprep.subr.mxu0 0.0
        %606 = vmatpush1.msra.mxu0 %v603
        %607 = vmatprep.subr.mxu0 0.0
        %608 = vmatpush1.msra.mxu0 0.0
        %609 = vmatprep.subr.mxu0 0.0
        %610 = vmatpush1.msra.mxu0 0.0
        %611 = vmatprep.subr.mxu0 0.0
        %612 = vmatpush1.msra.mxu0 0.0
        %613 = vmatprep.subr.mxu0 0.0
        %614 = vmatpush1.msra.mxu0 0.0
        %615 = vmatprep.subr.mxu0 0.0
        %616 = vmatpush1.msra.mxu0 0.0
        %617 = vmatprep.subr.mxu0 0.0
        %618 = vmatpush1.msra.mxu0 0.0
        %619 = vmatprep.subr.mxu0 0.0
        %620 = vmatpush1.msra.mxu0 0.0
        %621 = vmatprep.subr.mxu0 0.0
        %622 = vmatpush1.msra.mxu0 0.0
        %623 = vmatprep.subr.mxu0 0.0
        %624 = vmatpush1.msra.mxu0 0.0
        %625 = vmatprep.subr.mxu0 0.0
        %626 = vmatpush1.msra.mxu0 0.0
        %627 = vmatprep.subr.mxu0 0.0
        %628 = vmatpush1.msra.mxu0 0.0
        %629 = vmatprep.subr.mxu0 0.0
        %630 = vmatpush1.msra.mxu0 0.0
        %631 = vmatprep.subr.mxu0 0.0
        %632 = vmatpush1.msra.mxu0 0.0
        %633 = vmatprep.subr.mxu0 0.0
        %634 = vmatpush1.msra.mxu0 0.0
        %635 = vmatprep.subr.mxu0 0.0
        %636 = vmatpush1.msra.mxu0 0.0
        %637 = vmatprep.subr.mxu0 0.0
        %638 = vmatpush1.msra.mxu0 0.0
        %639 = vmatprep.subr.mxu0 0.0
        %640 = vmatpush1.msra.mxu0 0.0
        %641 = vmatprep.subr.mxu0 0.0
        %642 = vmatpush1.msra.mxu0 0.0
        %643 = vmatprep.subr.mxu0 0.0
        %644 = vmatpush1.msra.mxu0 0.0
        %645 = vmatprep.subr.mxu0 0.0
        %646 = vmatpush1.msra.mxu0 0.0
        %647 = vmatprep.subr.mxu0 0.0
        %648 = vmatpush1.msra.mxu0 0.0
        %649 = vmatprep.subr.mxu0 0.0
        %650 = vmatpush1.msra.mxu0 0.0
        %651 = vmatprep.subr.mxu0 0.0
        %652 = vmatpush1.msra.mxu0 0.0
        %653 = vmatprep.subr.mxu0 0.0
        %654 = vmatpush1.msra.mxu0 0.0
        %655 = vmatprep.subr.mxu0 0.0
        %656 = vmatpush1.msra.mxu0 0.0
        %657 = vmatprep.subr.mxu0 0.0
        %658 = vmatpush1.msra.mxu0 0.0
        %659 = vmatprep.subr.mxu0 0.0
        %660 = vmatpush1.msra.mxu0 0.0
        %661 = vmatprep.subr.mxu0 0.0
        %662 = vmatpush1.msra.mxu0 0.0
        %663 = vmatprep.subr.mxu0 0.0
        %664 = vmatpush1.msra.mxu0 0.0
        %665 = vmatprep.subr.mxu0 0.0
        %666 = vmatpush1.msra.mxu0 0.0
        %667 = vmatprep.subr.mxu0 0.0
        %668 = vmatpush1.msra.mxu0 0.0
        %669 = vmatprep.mubr.f32.mxu0 0.0
        %670 = vmatmul.mubr.f32.gmra.mrb[0].mxu0 %v479
        %v671 = vpop.f32.mrb[0].mxu0
        %v672 = vadd.f32 %v431, %v671
        %v673 = vpop.f32.mrb[0].mxu0
        %674 = vdwg.mxu0
        %v677 = vunpack.c.l.s4 1966171168
        %v678 = vunpack.c.0.s8 %v677
        %v679 = vlaneseq
        %v680 = vshrl.u32 %v679, 7
        %v681 = vsub.s32 %v678, %v680
        %v682 = vrot.slane %v672, %v681
        %v683 = vcombine.high %v682, %v682
        %v685 = vunpack.c.l.s4 1966171168
        %v686 = vunpack.c.0.s8 %v685
        %v687 = vlaneseq
        %v688 = vshrl.u32 %v687, 7
        %v689 = vsub.s32 %v686, %v688
        %v690 = vrot.slane %v682, %v689
        %v692 = vunpack.c.l.s4 1966171168
        %v693 = vunpack.c.0.s8 %v692
        %v694 = vlaneseq
        %v695 = vshrl.u32 %v694, 7
        %v696 = vsub.s32 %v693, %v695
        %v697 = vrot.slane %v683, %v696
        %v698 = vcombine.high %v690, %v690
        %702 = vst.msk [vmem:[%s338 + $0x1] sm:$0x1] %vm578, %v690
        %703 = vst.msk [vmem:[%s338 + $0x11] sm:$0x1] %vm578, %v697
        %704 = vst.msk [vmem:[%s338 + $0x21] sm:$0x1] %vm578, %v698
        %v705 = vld [vmem:[%s299 + $0x1] sm:$0x1]
        %v706 = vld [vmem:[%s299 + $0x9] sm:$0x1]
        %v707 = vld [vmem:[%s299 + $0x11] sm:$0x1]
        %v711 = vrot.slane %v706, 7
        %v712 = vsel %vm356, %v711, %v705
        %v713 = vrot.slane %v707, 6
        %v714 = vsel %vm359, %v713, %v712
        %v715 = vsel %vm361, %v714, 0
        %717 = vmatprep.subr.mxu0 0.0
        %718 = vmatpush1.msra.mxu0 %v342
        %719 = vmatprep.subr.mxu0 0.0
        %720 = vmatpush1.msra.mxu0 0.0
        %721 = vmatprep.subr.mxu0 0.0
        %722 = vmatpush1.msra.mxu0 0.0
        %723 = vmatprep.subr.mxu0 0.0
        %724 = vmatpush1.msra.mxu0 0.0
        %725 = vmatprep.subr.mxu0 0.0
        %726 = vmatpush1.msra.mxu0 0.0
        %727 = vmatprep.subr.mxu0 0.0
        %728 = vmatpush1.msra.mxu0 0.0
        %729 = vmatprep.subr.mxu0 0.0
        %730 = vmatpush1.msra.mxu0 0.0
        %731 = vmatprep.subr.mxu0 0.0
        %732 = vmatpush1.msra.mxu0 0.0
        %733 = vmatprep.subr.mxu0 0.0
        %734 = vmatpush1.msra.mxu0 0.0
        %735 = vmatprep.subr.mxu0 0.0
        %736 = vmatpush1.msra.mxu0 0.0
        %737 = vmatprep.subr.mxu0 0.0
        %738 = vmatpush1.msra.mxu0 0.0
        %739 = vmatprep.subr.mxu0 0.0
        %740 = vmatpush1.msra.mxu0 0.0
        %741 = vmatprep.subr.mxu0 0.0
        %742 = vmatpush1.msra.mxu0 0.0
        %743 = vmatprep.subr.mxu0 0.0
        %744 = vmatpush1.msra.mxu0 0.0
        %745 = vmatprep.subr.mxu0 0.0
        %746 = vmatpush1.msra.mxu0 0.0
        %747 = vmatprep.subr.mxu0 0.0
        %748 = vmatpush1.msra.mxu0 0.0
        %749 = vmatprep.subr.mxu0 0.0
        %750 = vmatpush1.msra.mxu0 0.0
        %751 = vmatprep.subr.mxu0 0.0
        %752 = vmatpush1.msra.mxu0 0.0
        %753 = vmatprep.subr.mxu0 0.0
        %754 = vmatpush1.msra.mxu0 0.0
        %755 = vmatprep.subr.mxu0 0.0
        %756 = vmatpush1.msra.mxu0 0.0
        %757 = vmatprep.subr.mxu0 0.0
        %758 = vmatpush1.msra.mxu0 0.0
        %759 = vmatprep.subr.mxu0 0.0
        %760 = vmatpush1.msra.mxu0 0.0
        %761 = vmatprep.subr.mxu0 0.0
        %762 = vmatpush1.msra.mxu0 0.0
        %763 = vmatprep.subr.mxu0 0.0
        %764 = vmatpush1.msra.mxu0 0.0
        %765 = vmatprep.subr.mxu0 0.0
        %766 = vmatpush1.msra.mxu0 0.0
        %767 = vmatprep.subr.mxu0 0.0
        %768 = vmatpush1.msra.mxu0 0.0
        %769 = vmatprep.subr.mxu0 0.0
        %770 = vmatpush1.msra.mxu0 0.0
        %771 = vmatprep.subr.mxu0 0.0
        %772 = vmatpush1.msra.mxu0 0.0
        %773 = vmatprep.subr.mxu0 0.0
        %774 = vmatpush1.msra.mxu0 0.0
        %775 = vmatprep.subr.mxu0 0.0
        %776 = vmatpush1.msra.mxu0 0.0
        %777 = vmatprep.subr.mxu0 0.0
        %778 = vmatpush1.msra.mxu0 0.0
        %779 = vmatprep.subr.mxu0 0.0
        %780 = vmatpush1.msra.mxu0 0.0
        %781 = vmatprep.mubr.f32.mxu0 0.0
        %782 = vmatmul.mubr.f32.gmra.mrb[0].mxu0 %v715
        %v783 = vpop.f32.mrb[0].mxu0
        %v784 = vadd.f32 %v350, %v783
        %v785 = vpop.f32.mrb[0].mxu0
        %786 = vdwg.mxu0
        %v787 = vld [vmem:[%s286 + $0x2] sm:$0x1]
        %v788 = vld [vmem:[%s286 + $0x12] sm:$0x1]
        %v789 = vld [vmem:[%s286 + $0x22] sm:$0x1]
        %v790 = vld [vmem:[%s286 + $0x32] sm:$0x1]
        %v791 = vld [vmem:[%s286 + $0x42] sm:$0x1]
        %v792 = vld [vmem:[%s286 + $0x52] sm:$0x1]
        %v793 = vld [vmem:[%s286 + $0x62] sm:$0x1]
        %v794 = vld [vmem:[%s286 + $0x72] sm:$0x1]
        %v795 = vld [vmem:[%s286 + $0x3] sm:$0x1]
        %v796 = vld [vmem:[%s286 + $0x13] sm:$0x1]
        %v797 = vld [vmem:[%s286 + $0x23] sm:$0x1]
        %v798 = vld [vmem:[%s286 + $0x33] sm:$0x1]
        %v799 = vld [vmem:[%s286 + $0x43] sm:$0x1]
        %v800 = vld [vmem:[%s286 + $0x53] sm:$0x1]
        %v801 = vld [vmem:[%s286 + $0x63] sm:$0x1]
        %v802 = vld [vmem:[%s286 + $0x73] sm:$0x1]
        %v811 = vrot.slane %v788, 7
        %v812 = vsel %vm356, %v811, %v787
        %v813 = vrot.slane %v789, 6
        %v814 = vsel %vm359, %v813, %v812
        %v815 = vrot.slane %v790, 5
        %v816 = vsel %vm463, %v815, %v814
        %v817 = vrot.slane %v791, 4
        %v818 = vsel %vm466, %v817, %v816
        %v819 = vrot.slane %v792, 3
        %v820 = vsel %vm469, %v819, %v818
        %v821 = vrot.slane %v793, 2
        %v822 = vsel %vm472, %v821, %v820
        %v823 = vrot.slane %v794, 1
        %v824 = vsel %vm475, %v823, %v822
        %826 = vmatprep.subr.mxu0 0.0
        %827 = vmatpush1.msra.mxu0 %v824
        %828 = vmatprep.subr.mxu0 0.0
        %829 = vmatpush1.msra.mxu0 0.0
        %830 = vmatprep.subr.mxu0 0.0
        %831 = vmatpush1.msra.mxu0 0.0
        %832 = vmatprep.subr.mxu0 0.0
        %833 = vmatpush1.msra.mxu0 0.0
        %834 = vmatprep.subr.mxu0 0.0
        %835 = vmatpush1.msra.mxu0 0.0
        %836 = vmatprep.subr.mxu0 0.0
        %837 = vmatpush1.msra.mxu0 0.0
        %838 = vmatprep.subr.mxu0 0.0
        %839 = vmatpush1.msra.mxu0 0.0
        %840 = vmatprep.subr.mxu0 0.0
        %841 = vmatpush1.msra.mxu0 0.0
        %842 = vmatprep.subr.mxu0 0.0
        %843 = vmatpush1.msra.mxu0 0.0
        %844 = vmatprep.subr.mxu0 0.0
        %845 = vmatpush1.msra.mxu0 0.0
        %846 = vmatprep.subr.mxu0 0.0
        %847 = vmatpush1.msra.mxu0 0.0
        %848 = vmatprep.subr.mxu0 0.0
        %849 = vmatpush1.msra.mxu0 0.0
        %850 = vmatprep.subr.mxu0 0.0
        %851 = vmatpush1.msra.mxu0 0.0
        %852 = vmatprep.subr.mxu0 0.0
        %853 = vmatpush1.msra.mxu0 0.0
        %854 = vmatprep.subr.mxu0 0.0
        %855 = vmatpush1.msra.mxu0 0.0
        %856 = vmatprep.subr.mxu0 0.0
        %857 = vmatpush1.msra.mxu0 0.0
        %858 = vmatprep.subr.mxu0 0.0
        %859 = vmatpush1.msra.mxu0 0.0
        %860 = vmatprep.subr.mxu0 0.0
        %861 = vmatpush1.msra.mxu0 0.0
        %862 = vmatprep.subr.mxu0 0.0
        %863 = vmatpush1.msra.mxu0 0.0
        %864 = vmatprep.subr.mxu0 0.0
        %865 = vmatpush1.msra.mxu0 0.0
        %866 = vmatprep.subr.mxu0 0.0
        %867 = vmatpush1.msra.mxu0 0.0
        %868 = vmatprep.subr.mxu0 0.0
        %869 = vmatpush1.msra.mxu0 0.0
        %870 = vmatprep.subr.mxu0 0.0
        %871 = vmatpush1.msra.mxu0 0.0
        %872 = vmatprep.subr.mxu0 0.0
        %873 = vmatpush1.msra.mxu0 0.0
        %874 = vmatprep.subr.mxu0 0.0
        %875 = vmatpush1.msra.mxu0 0.0
        %876 = vmatprep.subr.mxu0 0.0
        %877 = vmatpush1.msra.mxu0 0.0
        %878 = vmatprep.subr.mxu0 0.0
        %879 = vmatpush1.msra.mxu0 0.0
        %880 = vmatprep.subr.mxu0 0.0
        %881 = vmatpush1.msra.mxu0 0.0
        %882 = vmatprep.subr.mxu0 0.0
        %883 = vmatpush1.msra.mxu0 0.0
        %884 = vmatprep.subr.mxu0 0.0
        %885 = vmatpush1.msra.mxu0 0.0
        %886 = vmatprep.subr.mxu0 0.0
        %887 = vmatpush1.msra.mxu0 0.0
        %888 = vmatprep.subr.mxu0 0.0
        %889 = vmatpush1.msra.mxu0 0.0
        %890 = vmatprep.mubr.f32.mxu0 0.0
        %891 = vmatmul.mubr.f32.gmra.mrb[0].mxu0 %v479
        %v892 = vpop.f32.mrb[0].mxu0
        %v893 = vadd.f32 %v784, %v892
        %v894 = vpop.f32.mrb[0].mxu0
        %895 = vdwg.mxu0
        %v898 = vunpack.c.l.s4 1966171168
        %v899 = vunpack.c.0.s8 %v898
        %v900 = vlaneseq
        %v901 = vshrl.u32 %v900, 7
        %v902 = vsub.s32 %v899, %v901
        %v903 = vrot.slane %v893, %v902
        %v904 = vcombine.high %v903, %v903
        %v906 = vunpack.c.l.s4 1966171168
        %v907 = vunpack.c.0.s8 %v906
        %v908 = vlaneseq
        %v909 = vshrl.u32 %v908, 7
        %v910 = vsub.s32 %v907, %v909
        %v911 = vrot.slane %v903, %v910
        %v913 = vunpack.c.l.s4 1966171168
        %v914 = vunpack.c.0.s8 %v913
        %v915 = vlaneseq
        %v916 = vshrl.u32 %v915, 7
        %v917 = vsub.s32 %v914, %v916
        %v918 = vrot.slane %v904, %v917
        %v919 = vcombine.high %v911, %v911
        %923 = vst.msk [vmem:[%s338 + $0x2] sm:$0x1] %vm578, %v911
        %924 = vst.msk [vmem:[%s338 + $0x12] sm:$0x1] %vm578, %v918
        %925 = vst.msk [vmem:[%s338 + $0x22] sm:$0x1] %vm578, %v919
        %v934 = vrot.slane %v796, 7
        %v935 = vsel %vm356, %v934, %v795
        %v936 = vrot.slane %v797, 6
        %v937 = vsel %vm359, %v936, %v935
        %v938 = vrot.slane %v798, 5
        %v939 = vsel %vm463, %v938, %v937
        %v940 = vrot.slane %v799, 4
        %v941 = vsel %vm466, %v940, %v939
        %v942 = vrot.slane %v800, 3
        %v943 = vsel %vm469, %v942, %v941
        %v944 = vrot.slane %v801, 2
        %v945 = vsel %vm472, %v944, %v943
        %v946 = vrot.slane %v802, 1
        %v947 = vsel %vm475, %v946, %v945
        %949 = vmatprep.subr.mxu0 0.0
        %950 = vmatpush1.msra.mxu0 %v947
        %951 = vmatprep.subr.mxu0 0.0
        %952 = vmatpush1.msra.mxu0 0.0
        %953 = vmatprep.subr.mxu0 0.0
        %954 = vmatpush1.msra.mxu0 0.0
        %955 = vmatprep.subr.mxu0 0.0
        %956 = vmatpush1.msra.mxu0 0.0
        %957 = vmatprep.subr.mxu0 0.0
        %958 = vmatpush1.msra.mxu0 0.0
        %959 = vmatprep.subr.mxu0 0.0
        %960 = vmatpush1.msra.mxu0 0.0
        %961 = vmatprep.subr.mxu0 0.0
        %962 = vmatpush1.msra.mxu0 0.0
        %963 = vmatprep.subr.mxu0 0.0
        %964 = vmatpush1.msra.mxu0 0.0
        %965 = vmatprep.subr.mxu0 0.0
        %966 = vmatpush1.msra.mxu0 0.0
        %967 = vmatprep.subr.mxu0 0.0
        %968 = vmatpush1.msra.mxu0 0.0
        %969 = vmatprep.subr.mxu0 0.0
        %970 = vmatpush1.msra.mxu0 0.0
        %971 = vmatprep.subr.mxu0 0.0
        %972 = vmatpush1.msra.mxu0 0.0
        %973 = vmatprep.subr.mxu0 0.0
        %974 = vmatpush1.msra.mxu0 0.0
        %975 = vmatprep.subr.mxu0 0.0
        %976 = vmatpush1.msra.mxu0 0.0
        %977 = vmatprep.subr.mxu0 0.0
        %978 = vmatpush1.msra.mxu0 0.0
        %979 = vmatprep.subr.mxu0 0.0
        %980 = vmatpush1.msra.mxu0 0.0
        %981 = vmatprep.subr.mxu0 0.0
        %982 = vmatpush1.msra.mxu0 0.0
        %983 = vmatprep.subr.mxu0 0.0
        %984 = vmatpush1.msra.mxu0 0.0
        %985 = vmatprep.subr.mxu0 0.0
        %986 = vmatpush1.msra.mxu0 0.0
        %987 = vmatprep.subr.mxu0 0.0
        %988 = vmatpush1.msra.mxu0 0.0
        %989 = vmatprep.subr.mxu0 0.0
        %990 = vmatpush1.msra.mxu0 0.0
        %991 = vmatprep.subr.mxu0 0.0
        %992 = vmatpush1.msra.mxu0 0.0
        %993 = vmatprep.subr.mxu0 0.0
        %994 = vmatpush1.msra.mxu0 0.0
        %995 = vmatprep.subr.mxu0 0.0
        %996 = vmatpush1.msra.mxu0 0.0
        %997 = vmatprep.subr.mxu0 0.0
        %998 = vmatpush1.msra.mxu0 0.0
        %999 = vmatprep.subr.mxu0 0.0
        %1000 = vmatpush1.msra.mxu0 0.0
        %1001 = vmatprep.subr.mxu0 0.0
        %1002 = vmatpush1.msra.mxu0 0.0
        %1003 = vmatprep.subr.mxu0 0.0
        %1004 = vmatpush1.msra.mxu0 0.0
        %1005 = vmatprep.subr.mxu0 0.0
        %1006 = vmatpush1.msra.mxu0 0.0
        %1007 = vmatprep.subr.mxu0 0.0
        %1008 = vmatpush1.msra.mxu0 0.0
        %1009 = vmatprep.subr.mxu0 0.0
        %1010 = vmatpush1.msra.mxu0 0.0
        %1011 = vmatprep.subr.mxu0 0.0
        %1012 = vmatpush1.msra.mxu0 0.0
        %1013 = vmatprep.mubr.f32.mxu0 0.0
        %1014 = vmatmul.mubr.f32.gmra.mrb[0].mxu0 %v479
        %v1015 = vpop.f32.mrb[0].mxu0
        %v1016 = vadd.f32 %v784, %v1015
        %v1017 = vpop.f32.mrb[0].mxu0
        %1018 = vdwg.mxu0
        %v1021 = vunpack.c.l.s4 1966171168
        %v1022 = vunpack.c.0.s8 %v1021
        %v1023 = vlaneseq
        %v1024 = vshrl.u32 %v1023, 7
        %v1025 = vsub.s32 %v1022, %v1024
        %v1026 = vrot.slane %v1016, %v1025
        %v1027 = vcombine.high %v1026, %v1026
        %v1029 = vunpack.c.l.s4 1966171168
        %v1030 = vunpack.c.0.s8 %v1029
        %v1031 = vlaneseq
        %v1032 = vshrl.u32 %v1031, 7
        %v1033 = vsub.s32 %v1030, %v1032
        %v1034 = vrot.slane %v1026, %v1033
        %v1036 = vunpack.c.l.s4 1966171168
        %v1037 = vunpack.c.0.s8 %v1036
        %v1038 = vlaneseq
        %v1039 = vshrl.u32 %v1038, 7
        %v1040 = vsub.s32 %v1037, %v1039
        %v1041 = vrot.slane %v1027, %v1040
        %v1042 = vcombine.high %v1034, %v1034
        %1046 = vst.msk [vmem:[%s338 + $0x3] sm:$0x1] %vm578, %v1034
        %1047 = vst.msk [vmem:[%s338 + $0x13] sm:$0x1] %vm578, %v1041
        %1048 = vst.msk [vmem:[%s338 + $0x23] sm:$0x1] %vm578, %v1042
        %v1049 = vld [vmem:[%s299 + $0x2] sm:$0x1]
        %v1050 = vld [vmem:[%s299 + $0xa] sm:$0x1]
        %v1051 = vld [vmem:[%s299 + $0x12] sm:$0x1]
        %v1055 = vrot.slane %v1050, 7
        %v1056 = vsel %vm356, %v1055, %v1049
        %v1057 = vrot.slane %v1051, 6
        %v1058 = vsel %vm359, %v1057, %v1056
        %v1059 = vsel %vm361, %v1058, 0
        %1061 = vmatprep.subr.mxu0 0.0
        %1062 = vmatpush1.msra.mxu0 %v342
        %1063 = vmatprep.subr.mxu0 0.0
        %1064 = vmatpush1.msra.mxu0 0.0
        %1065 = vmatprep.subr.mxu0 0.0
        %1066 = vmatpush1.msra.mxu0 0.0
        %1067 = vmatprep.subr.mxu0 0.0
        %1068 = vmatpush1.msra.mxu0 0.0
        %1069 = vmatprep.subr.mxu0 0.0
        %1070 = vmatpush1.msra.mxu0 0.0
        %1071 = vmatprep.subr.mxu0 0.0
        %1072 = vmatpush1.msra.mxu0 0.0
        %1073 = vmatprep.subr.mxu0 0.0
        %1074 = vmatpush1.msra.mxu0 0.0
        %1075 = vmatprep.subr.mxu0 0.0
        %1076 = vmatpush1.msra.mxu0 0.0
        %1077 = vmatprep.subr.mxu0 0.0
        %1078 = vmatpush1.msra.mxu0 0.0
        %1079 = vmatprep.subr.mxu0 0.0
        %1080 = vmatpush1.msra.mxu0 0.0
        %1081 = vmatprep.subr.mxu0 0.0
        %1082 = vmatpush1.msra.mxu0 0.0
        %1083 = vmatprep.subr.mxu0 0.0
        %1084 = vmatpush1.msra.mxu0 0.0
        %1085 = vmatprep.subr.mxu0 0.0
        %1086 = vmatpush1.msra.mxu0 0.0
        %1087 = vmatprep.subr.mxu0 0.0
        %1088 = vmatpush1.msra.mxu0 0.0
        %1089 = vmatprep.subr.mxu0 0.0
        %1090 = vmatpush1.msra.mxu0 0.0
        %1091 = vmatprep.subr.mxu0 0.0
        %1092 = vmatpush1.msra.mxu0 0.0
        %1093 = vmatprep.subr.mxu0 0.0
        %1094 = vmatpush1.msra.mxu0 0.0
        %1095 = vmatprep.subr.mxu0 0.0
        %1096 = vmatpush1.msra.mxu0 0.0
        %1097 = vmatprep.subr.mxu0 0.0
        %1098 = vmatpush1.msra.mxu0 0.0
        %1099 = vmatprep.subr.mxu0 0.0
        %1100 = vmatpush1.msra.mxu0 0.0
        %1101 = vmatprep.subr.mxu0 0.0
        %1102 = vmatpush1.msra.mxu0 0.0
        %1103 = vmatprep.subr.mxu0 0.0
        %1104 = vmatpush1.msra.mxu0 0.0
        %1105 = vmatprep.subr.mxu0 0.0
        %1106 = vmatpush1.msra.mxu0 0.0
        %1107 = vmatprep.subr.mxu0 0.0
        %1108 = vmatpush1.msra.mxu0 0.0
        %1109 = vmatprep.subr.mxu0 0.0
        %1110 = vmatpush1.msra.mxu0 0.0
        %1111 = vmatprep.subr.mxu0 0.0
        %1112 = vmatpush1.msra.mxu0 0.0
        %1113 = vmatprep.subr.mxu0 0.0
        %1114 = vmatpush1.msra.mxu0 0.0
        %1115 = vmatprep.subr.mxu0 0.0
        %1116 = vmatpush1.msra.mxu0 0.0
        %1117 = vmatprep.subr.mxu0 0.0
        %1118 = vmatpush1.msra.mxu0 0.0
        %1119 = vmatprep.subr.mxu0 0.0
        %1120 = vmatpush1.msra.mxu0 0.0
        %1121 = vmatprep.subr.mxu0 0.0
        %1122 = vmatpush1.msra.mxu0 0.0
        %1123 = vmatprep.subr.mxu0 0.0
        %1124 = vmatpush1.msra.mxu0 0.0
        %1125 = vmatprep.mubr.f32.mxu0 0.0
        %1126 = vmatmul.mubr.f32.gmra.mrb[0].mxu0 %v1059
        %v1127 = vpop.f32.mrb[0].mxu0
        %v1128 = vadd.f32 %v350, %v1127
        %v1129 = vpop.f32.mrb[0].mxu0
        %1130 = vdwg.mxu0
        %v1131 = vld [vmem:[%s286 + $0x4] sm:$0x1]
        %v1132 = vld [vmem:[%s286 + $0x14] sm:$0x1]
        %v1133 = vld [vmem:[%s286 + $0x24] sm:$0x1]
        %v1134 = vld [vmem:[%s286 + $0x34] sm:$0x1]
        %v1135 = vld [vmem:[%s286 + $0x44] sm:$0x1]
        %v1136 = vld [vmem:[%s286 + $0x54] sm:$0x1]
        %v1137 = vld [vmem:[%s286 + $0x64] sm:$0x1]
        %v1138 = vld [vmem:[%s286 + $0x74] sm:$0x1]
        %v1139 = vld [vmem:[%s286 + $0x5] sm:$0x1]
        %v1140 = vld [vmem:[%s286 + $0x15] sm:$0x1]
        %v1141 = vld [vmem:[%s286 + $0x25] sm:$0x1]
        %v1142 = vld [vmem:[%s286 + $0x35] sm:$0x1]
        %v1143 = vld [vmem:[%s286 + $0x45] sm:$0x1]
        %v1144 = vld [vmem:[%s286 + $0x55] sm:$0x1]
        %v1145 = vld [vmem:[%s286 + $0x65] sm:$0x1]
        %v1146 = vld [vmem:[%s286 + $0x75] sm:$0x1]
        %v1155 = vrot.slane %v1132, 7
        %v1156 = vsel %vm356, %v1155, %v1131
        %v1157 = vrot.slane %v1133, 6
        %v1158 = vsel %vm359, %v1157, %v1156
        %v1159 = vrot.slane %v1134, 5
        %v1160 = vsel %vm463, %v1159, %v1158
        %v1161 = vrot.slane %v1135, 4
        %v1162 = vsel %vm466, %v1161, %v1160
        %v1163 = vrot.slane %v1136, 3
        %v1164 = vsel %vm469, %v1163, %v1162
        %v1165 = vrot.slane %v1137, 2
        %v1166 = vsel %vm472, %v1165, %v1164
        %v1167 = vrot.slane %v1138, 1
        %v1168 = vsel %vm475, %v1167, %v1166
        %1170 = vmatprep.subr.mxu0 0.0
        %1171 = vmatpush1.msra.mxu0 %v1168
        %1172 = vmatprep.subr.mxu0 0.0
        %1173 = vmatpush1.msra.mxu0 0.0
        %1174 = vmatprep.subr.mxu0 0.0
        %1175 = vmatpush1.msra.mxu0 0.0
        %1176 = vmatprep.subr.mxu0 0.0
        %1177 = vmatpush1.msra.mxu0 0.0
        %1178 = vmatprep.subr.mxu0 0.0
        %1179 = vmatpush1.msra.mxu0 0.0
        %1180 = vmatprep.subr.mxu0 0.0
        %1181 = vmatpush1.msra.mxu0 0.0
        %1182 = vmatprep.subr.mxu0 0.0
        %1183 = vmatpush1.msra.mxu0 0.0
        %1184 = vmatprep.subr.mxu0 0.0
        %1185 = vmatpush1.msra.mxu0 0.0
        %1186 = vmatprep.subr.mxu0 0.0
        %1187 = vmatpush1.msra.mxu0 0.0
        %1188 = vmatprep.subr.mxu0 0.0
        %1189 = vmatpush1.msra.mxu0 0.0
        %1190 = vmatprep.subr.mxu0 0.0
        %1191 = vmatpush1.msra.mxu0 0.0
        %1192 = vmatprep.subr.mxu0 0.0
        %1193 = vmatpush1.msra.mxu0 0.0
        %1194 = vmatprep.subr.mxu0 0.0
        %1195 = vmatpush1.msra.mxu0 0.0
        %1196 = vmatprep.subr.mxu0 0.0
        %1197 = vmatpush1.msra.mxu0 0.0
        %1198 = vmatprep.subr.mxu0 0.0
        %1199 = vmatpush1.msra.mxu0 0.0
        %1200 = vmatprep.subr.mxu0 0.0
        %1201 = vmatpush1.msra.mxu0 0.0
        %1202 = vmatprep.subr.mxu0 0.0
        %1203 = vmatpush1.msra.mxu0 0.0
        %1204 = vmatprep.subr.mxu0 0.0
        %1205 = vmatpush1.msra.mxu0 0.0
        %1206 = vmatprep.subr.mxu0 0.0
        %1207 = vmatpush1.msra.mxu0 0.0
        %1208 = vmatprep.subr.mxu0 0.0
        %1209 = vmatpush1.msra.mxu0 0.0
        %1210 = vmatprep.subr.mxu0 0.0
        %1211 = vmatpush1.msra.mxu0 0.0
        %1212 = vmatprep.subr.mxu0 0.0
        %1213 = vmatpush1.msra.mxu0 0.0
        %1214 = vmatprep.subr.mxu0 0.0
        %1215 = vmatpush1.msra.mxu0 0.0
        %1216 = vmatprep.subr.mxu0 0.0
        %1217 = vmatpush1.msra.mxu0 0.0
        %1218 = vmatprep.subr.mxu0 0.0
        %1219 = vmatpush1.msra.mxu0 0.0
        %1220 = vmatprep.subr.mxu0 0.0
        %1221 = vmatpush1.msra.mxu0 0.0
        %1222 = vmatprep.subr.mxu0 0.0
        %1223 = vmatpush1.msra.mxu0 0.0
        %1224 = vmatprep.subr.mxu0 0.0
        %1225 = vmatpush1.msra.mxu0 0.0
        %1226 = vmatprep.subr.mxu0 0.0
        %1227 = vmatpush1.msra.mxu0 0.0
        %1228 = vmatprep.subr.mxu0 0.0
        %1229 = vmatpush1.msra.mxu0 0.0
        %1230 = vmatprep.subr.mxu0 0.0
        %1231 = vmatpush1.msra.mxu0 0.0
        %1232 = vmatprep.subr.mxu0 0.0
        %1233 = vmatpush1.msra.mxu0 0.0
        %1234 = vmatprep.mubr.f32.mxu0 0.0
        %1235 = vmatmul.mubr.f32.gmra.mrb[0].mxu0 %v479
        %v1236 = vpop.f32.mrb[0].mxu0
        %v1237 = vadd.f32 %v1128, %v1236
        %v1238 = vpop.f32.mrb[0].mxu0
        %1239 = vdwg.mxu0
        %v1242 = vunpack.c.l.s4 1966171168
        %v1243 = vunpack.c.0.s8 %v1242
        %v1244 = vlaneseq
        %v1245 = vshrl.u32 %v1244, 7
        %v1246 = vsub.s32 %v1243, %v1245
        %v1247 = vrot.slane %v1237, %v1246
        %v1248 = vcombine.high %v1247, %v1247
        %v1250 = vunpack.c.l.s4 1966171168
        %v1251 = vunpack.c.0.s8 %v1250
        %v1252 = vlaneseq
        %v1253 = vshrl.u32 %v1252, 7
        %v1254 = vsub.s32 %v1251, %v1253
        %v1255 = vrot.slane %v1247, %v1254
        %v1257 = vunpack.c.l.s4 1966171168
        %v1258 = vunpack.c.0.s8 %v1257
        %v1259 = vlaneseq
        %v1260 = vshrl.u32 %v1259, 7
        %v1261 = vsub.s32 %v1258, %v1260
        %v1262 = vrot.slane %v1248, %v1261
        %v1263 = vcombine.high %v1255, %v1255
        %1267 = vst.msk [vmem:[%s338 + $0x4] sm:$0x1] %vm578, %v1255
        %1268 = vst.msk [vmem:[%s338 + $0x14] sm:$0x1] %vm578, %v1262
        %1269 = vst.msk [vmem:[%s338 + $0x24] sm:$0x1] %vm578, %v1263
        %v1278 = vrot.slane %v1140, 7
        %v1279 = vsel %vm356, %v1278, %v1139
        %v1280 = vrot.slane %v1141, 6
        %v1281 = vsel %vm359, %v1280, %v1279
        %v1282 = vrot.slane %v1142, 5
        %v1283 = vsel %vm463, %v1282, %v1281
        %v1284 = vrot.slane %v1143, 4
        %v1285 = vsel %vm466, %v1284, %v1283
        %v1286 = vrot.slane %v1144, 3
        %v1287 = vsel %vm469, %v1286, %v1285
        %v1288 = vrot.slane %v1145, 2
        %v1289 = vsel %vm472, %v1288, %v1287
        %v1290 = vrot.slane %v1146, 1
        %v1291 = vsel %vm475, %v1290, %v1289
        %1293 = vmatprep.subr.mxu0 0.0
        %1294 = vmatpush1.msra.mxu0 %v1291
        %1295 = vmatprep.subr.mxu0 0.0
        %1296 = vmatpush1.msra.mxu0 0.0
        %1297 = vmatprep.subr.mxu0 0.0
        %1298 = vmatpush1.msra.mxu0 0.0
        %1299 = vmatprep.subr.mxu0 0.0
        %1300 = vmatpush1.msra.mxu0 0.0
        %1301 = vmatprep.subr.mxu0 0.0
        %1302 = vmatpush1.msra.mxu0 0.0
        %1303 = vmatprep.subr.mxu0 0.0
        %1304 = vmatpush1.msra.mxu0 0.0
        %1305 = vmatprep.subr.mxu0 0.0
        %1306 = vmatpush1.msra.mxu0 0.0
        %1307 = vmatprep.subr.mxu0 0.0
        %1308 = vmatpush1.msra.mxu0 0.0
        %1309 = vmatprep.subr.mxu0 0.0
        %1310 = vmatpush1.msra.mxu0 0.0
        %1311 = vmatprep.subr.mxu0 0.0
        %1312 = vmatpush1.msra.mxu0 0.0
        %1313 = vmatprep.subr.mxu0 0.0
        %1314 = vmatpush1.msra.mxu0 0.0
        %1315 = vmatprep.subr.mxu0 0.0
        %1316 = vmatpush1.msra.mxu0 0.0
        %1317 = vmatprep.subr.mxu0 0.0
        %1318 = vmatpush1.msra.mxu0 0.0
        %1319 = vmatprep.subr.mxu0 0.0
        %1320 = vmatpush1.msra.mxu0 0.0
        %1321 = vmatprep.subr.mxu0 0.0
        %1322 = vmatpush1.msra.mxu0 0.0
        %1323 = vmatprep.subr.mxu0 0.0
        %1324 = vmatpush1.msra.mxu0 0.0
        %1325 = vmatprep.subr.mxu0 0.0
        %1326 = vmatpush1.msra.mxu0 0.0
        %1327 = vmatprep.subr.mxu0 0.0
        %1328 = vmatpush1.msra.mxu0 0.0
        %1329 = vmatprep.subr.mxu0 0.0
        %1330 = vmatpush1.msra.mxu0 0.0
        %1331 = vmatprep.subr.mxu0 0.0
        %1332 = vmatpush1.msra.mxu0 0.0
        %1333 = vmatprep.subr.mxu0 0.0
        %1334 = vmatpush1.msra.mxu0 0.0
        %1335 = vmatprep.subr.mxu0 0.0
        %1336 = vmatpush1.msra.mxu0 0.0
        %1337 = vmatprep.subr.mxu0 0.0
        %1338 = vmatpush1.msra.mxu0 0.0
        %1339 = vmatprep.subr.mxu0 0.0
        %1340 = vmatpush1.msra.mxu0 0.0
        %1341 = vmatprep.subr.mxu0 0.0
        %1342 = vmatpush1.msra.mxu0 0.0
        %1343 = vmatprep.subr.mxu0 0.0
        %1344 = vmatpush1.msra.mxu0 0.0
        %1345 = vmatprep.subr.mxu0 0.0
        %1346 = vmatpush1.msra.mxu0 0.0
        %1347 = vmatprep.subr.mxu0 0.0
        %1348 = vmatpush1.msra.mxu0 0.0
        %1349 = vmatprep.subr.mxu0 0.0
        %1350 = vmatpush1.msra.mxu0 0.0
        %1351 = vmatprep.subr.mxu0 0.0
        %1352 = vmatpush1.msra.mxu0 0.0
        %1353 = vmatprep.subr.mxu0 0.0
        %1354 = vmatpush1.msra.mxu0 0.0
        %1355 = vmatprep.subr.mxu0 0.0
        %1356 = vmatpush1.msra.mxu0 0.0
        %1357 = vmatprep.mubr.f32.mxu0 0.0
        %1358 = vmatmul.mubr.f32.gmra.mrb[0].mxu0 %v479
        %v1359 = vpop.f32.mrb[0].mxu0
        %v1360 = vadd.f32 %v1128, %v1359
        %v1361 = vpop.f32.mrb[0].mxu0
        %1362 = vdwg.mxu0
        %v1365 = vunpack.c.l.s4 1966171168
        %v1366 = vunpack.c.0.s8 %v1365
        %v1367 = vlaneseq
        %v1368 = vshrl.u32 %v1367, 7
        %v1369 = vsub.s32 %v1366, %v1368
        %v1370 = vrot.slane %v1360, %v1369
        %v1371 = vcombine.high %v1370, %v1370
        %v1373 = vunpack.c.l.s4 1966171168
        %v1374 = vunpack.c.0.s8 %v1373
        %v1375 = vlaneseq
        %v1376 = vshrl.u32 %v1375, 7
        %v1377 = vsub.s32 %v1374, %v1376
        %v1378 = vrot.slane %v1370, %v1377
        %v1380 = vunpack.c.l.s4 1966171168
        %v1381 = vunpack.c.0.s8 %v1380
        %v1382 = vlaneseq
        %v1383 = vshrl.u32 %v1382, 7
        %v1384 = vsub.s32 %v1381, %v1383
        %v1385 = vrot.slane %v1371, %v1384
        %v1386 = vcombine.high %v1378, %v1378
        %1390 = vst.msk [vmem:[%s338 + $0x5] sm:$0x1] %vm578, %v1378
        %1391 = vst.msk [vmem:[%s338 + $0x15] sm:$0x1] %vm578, %v1385
        %1392 = vst.msk [vmem:[%s338 + $0x25] sm:$0x1] %vm578, %v1386
        %v1393 = vld [vmem:[%s299 + $0x3] sm:$0x1]
        %v1394 = vld [vmem:[%s299 + $0xb] sm:$0x1]
        %v1395 = vld [vmem:[%s299 + $0x13] sm:$0x1]
        %v1399 = vrot.slane %v1394, 7
        %v1400 = vsel %vm356, %v1399, %v1393
        %v1401 = vrot.slane %v1395, 6
        %v1402 = vsel %vm359, %v1401, %v1400
        %v1403 = vsel %vm361, %v1402, 0
        %1405 = vmatprep.subr.mxu0 0.0
        %1406 = vmatpush1.msra.mxu0 %v342
        %1407 = vmatprep.subr.mxu0 0.0
        %1408 = vmatpush1.msra.mxu0 0.0
        %1409 = vmatprep.subr.mxu0 0.0
        %1410 = vmatpush1.msra.mxu0 0.0
        %1411 = vmatprep.subr.mxu0 0.0
        %1412 = vmatpush1.msra.mxu0 0.0
        %1413 = vmatprep.subr.mxu0 0.0
        %1414 = vmatpush1.msra.mxu0 0.0
        %1415 = vmatprep.subr.mxu0 0.0
        %1416 = vmatpush1.msra.mxu0 0.0
        %1417 = vmatprep.subr.mxu0 0.0
        %1418 = vmatpush1.msra.mxu0 0.0
        %1419 = vmatprep.subr.mxu0 0.0
        %1420 = vmatpush1.msra.mxu0 0.0
        %1421 = vmatprep.subr.mxu0 0.0
        %1422 = vmatpush1.msra.mxu0 0.0
        %1423 = vmatprep.subr.mxu0 0.0
        %1424 = vmatpush1.msra.mxu0 0.0
        %1425 = vmatprep.subr.mxu0 0.0
        %1426 = vmatpush1.msra.mxu0 0.0
        %1427 = vmatprep.subr.mxu0 0.0
        %1428 = vmatpush1.msra.mxu0 0.0
        %1429 = vmatprep.subr.mxu0 0.0
        %1430 = vmatpush1.msra.mxu0 0.0
        %1431 = vmatprep.subr.mxu0 0.0
        %1432 = vmatpush1.msra.mxu0 0.0
        %1433 = vmatprep.subr.mxu0 0.0
        %1434 = vmatpush1.msra.mxu0 0.0
        %1435 = vmatprep.subr.mxu0 0.0
        %1436 = vmatpush1.msra.mxu0 0.0
        %1437 = vmatprep.subr.mxu0 0.0
        %1438 = vmatpush1.msra.mxu0 0.0
        %1439 = vmatprep.subr.mxu0 0.0
        %1440 = vmatpush1.msra.mxu0 0.0
        %1441 = vmatprep.subr.mxu0 0.0
        %1442 = vmatpush1.msra.mxu0 0.0
        %1443 = vmatprep.subr.mxu0 0.0
        %1444 = vmatpush1.msra.mxu0 0.0
        %1445 = vmatprep.subr.mxu0 0.0
        %1446 = vmatpush1.msra.mxu0 0.0
        %1447 = vmatprep.subr.mxu0 0.0
        %1448 = vmatpush1.msra.mxu0 0.0
        %1449 = vmatprep.subr.mxu0 0.0
        %1450 = vmatpush1.msra.mxu0 0.0
        %1451 = vmatprep.subr.mxu0 0.0
        %1452 = vmatpush1.msra.mxu0 0.0
        %1453 = vmatprep.subr.mxu0 0.0
        %1454 = vmatpush1.msra.mxu0 0.0
        %1455 = vmatprep.subr.mxu0 0.0
        %1456 = vmatpush1.msra.mxu0 0.0
        %1457 = vmatprep.subr.mxu0 0.0
        %1458 = vmatpush1.msra.mxu0 0.0
        %1459 = vmatprep.subr.mxu0 0.0
        %1460 = vmatpush1.msra.mxu0 0.0
        %1461 = vmatprep.subr.mxu0 0.0
        %1462 = vmatpush1.msra.mxu0 0.0
        %1463 = vmatprep.subr.mxu0 0.0
        %1464 = vmatpush1.msra.mxu0 0.0
        %1465 = vmatprep.subr.mxu0 0.0
        %1466 = vmatpush1.msra.mxu0 0.0
        %1467 = vmatprep.subr.mxu0 0.0
        %1468 = vmatpush1.msra.mxu0 0.0
        %1469 = vmatprep.mubr.f32.mxu0 0.0
        %1470 = vmatmul.mubr.f32.gmra.mrb[0].mxu0 %v1403
        %v1471 = vpop.f32.mrb[0].mxu0
        %v1472 = vadd.f32 %v350, %v1471
        %v1473 = vpop.f32.mrb[0].mxu0
        %1474 = vdwg.mxu0
        %v1475 = vld [vmem:[%s286 + $0x6] sm:$0x1]
        %v1476 = vld [vmem:[%s286 + $0x16] sm:$0x1]
        %v1477 = vld [vmem:[%s286 + $0x26] sm:$0x1]
        %v1478 = vld [vmem:[%s286 + $0x36] sm:$0x1]
        %v1479 = vld [vmem:[%s286 + $0x46] sm:$0x1]
        %v1480 = vld [vmem:[%s286 + $0x56] sm:$0x1]
        %v1481 = vld [vmem:[%s286 + $0x66] sm:$0x1]
        %v1482 = vld [vmem:[%s286 + $0x76] sm:$0x1]
        %v1483 = vld [vmem:[%s286 + $0x7] sm:$0x1]
        %v1484 = vld [vmem:[%s286 + $0x17] sm:$0x1]
        %v1485 = vld [vmem:[%s286 + $0x27] sm:$0x1]
        %v1486 = vld [vmem:[%s286 + $0x37] sm:$0x1]
        %v1487 = vld [vmem:[%s286 + $0x47] sm:$0x1]
        %v1488 = vld [vmem:[%s286 + $0x57] sm:$0x1]
        %v1489 = vld [vmem:[%s286 + $0x67] sm:$0x1]
        %v1490 = vld [vmem:[%s286 + $0x77] sm:$0x1]
        %v1499 = vrot.slane %v1476, 7
        %v1500 = vsel %vm356, %v1499, %v1475
        %v1501 = vrot.slane %v1477, 6
        %v1502 = vsel %vm359, %v1501, %v1500
        %v1503 = vrot.slane %v1478, 5
        %v1504 = vsel %vm463, %v1503, %v1502
        %v1505 = vrot.slane %v1479, 4
        %v1506 = vsel %vm466, %v1505, %v1504
        %v1507 = vrot.slane %v1480, 3
        %v1508 = vsel %vm469, %v1507, %v1506
        %v1509 = vrot.slane %v1481, 2
        %v1510 = vsel %vm472, %v1509, %v1508
        %v1511 = vrot.slane %v1482, 1
        %v1512 = vsel %vm475, %v1511, %v1510
        %1514 = vmatprep.subr.mxu0 0.0
        %1515 = vmatpush1.msra.mxu0 %v1512
        %1516 = vmatprep.subr.mxu0 0.0
        %1517 = vmatpush1.msra.mxu0 0.0
        %1518 = vmatprep.subr.mxu0 0.0
        %1519 = vmatpush1.msra.mxu0 0.0
        %1520 = vmatprep.subr.mxu0 0.0
        %1521 = vmatpush1.msra.mxu0 0.0
        %1522 = vmatprep.subr.mxu0 0.0
        %1523 = vmatpush1.msra.mxu0 0.0
        %1524 = vmatprep.subr.mxu0 0.0
        %1525 = vmatpush1.msra.mxu0 0.0
        %1526 = vmatprep.subr.mxu0 0.0
        %1527 = vmatpush1.msra.mxu0 0.0
        %1528 = vmatprep.subr.mxu0 0.0
        %1529 = vmatpush1.msra.mxu0 0.0
        %1530 = vmatprep.subr.mxu0 0.0
        %1531 = vmatpush1.msra.mxu0 0.0
        %1532 = vmatprep.subr.mxu0 0.0
        %1533 = vmatpush1.msra.mxu0 0.0
        %1534 = vmatprep.subr.mxu0 0.0
        %1535 = vmatpush1.msra.mxu0 0.0
        %1536 = vmatprep.subr.mxu0 0.0
        %1537 = vmatpush1.msra.mxu0 0.0
        %1538 = vmatprep.subr.mxu0 0.0
        %1539 = vmatpush1.msra.mxu0 0.0
        %1540 = vmatprep.subr.mxu0 0.0
        %1541 = vmatpush1.msra.mxu0 0.0
        %1542 = vmatprep.subr.mxu0 0.0
        %1543 = vmatpush1.msra.mxu0 0.0
        %1544 = vmatprep.subr.mxu0 0.0
        %1545 = vmatpush1.msra.mxu0 0.0
        %1546 = vmatprep.subr.mxu0 0.0
        %1547 = vmatpush1.msra.mxu0 0.0
        %1548 = vmatprep.subr.mxu0 0.0
        %1549 = vmatpush1.msra.mxu0 0.0
        %1550 = vmatprep.subr.mxu0 0.0
        %1551 = vmatpush1.msra.mxu0 0.0
        %1552 = vmatprep.subr.mxu0 0.0
        %1553 = vmatpush1.msra.mxu0 0.0
        %1554 = vmatprep.subr.mxu0 0.0
        %1555 = vmatpush1.msra.mxu0 0.0
        %1556 = vmatprep.subr.mxu0 0.0
        %1557 = vmatpush1.msra.mxu0 0.0
        %1558 = vmatprep.subr.mxu0 0.0
        %1559 = vmatpush1.msra.mxu0 0.0
        %1560 = vmatprep.subr.mxu0 0.0
        %1561 = vmatpush1.msra.mxu0 0.0
        %1562 = vmatprep.subr.mxu0 0.0
        %1563 = vmatpush1.msra.mxu0 0.0
        %1564 = vmatprep.subr.mxu0 0.0
        %1565 = vmatpush1.msra.mxu0 0.0
        %1566 = vmatprep.subr.mxu0 0.0
        %1567 = vmatpush1.msra.mxu0 0.0
        %1568 = vmatprep.subr.mxu0 0.0
        %1569 = vmatpush1.msra.mxu0 0.0
        %1570 = vmatprep.subr.mxu0 0.0
        %1571 = vmatpush1.msra.mxu0 0.0
        %1572 = vmatprep.subr.mxu0 0.0
        %1573 = vmatpush1.msra.mxu0 0.0
        %1574 = vmatprep.subr.mxu0 0.0
        %1575 = vmatpush1.msra.mxu0 0.0
        %1576 = vmatprep.subr.mxu0 0.0
        %1577 = vmatpush1.msra.mxu0 0.0
        %1578 = vmatprep.mubr.f32.mxu0 0.0
        %1579 = vmatmul.mubr.f32.gmra.mrb[0].mxu0 %v479
        %v1580 = vpop.f32.mrb[0].mxu0
        %v1581 = vadd.f32 %v1472, %v1580
        %v1582 = vpop.f32.mrb[0].mxu0
        %1583 = vdwg.mxu0
        %v1586 = vunpack.c.l.s4 1966171168
        %v1587 = vunpack.c.0.s8 %v1586
        %v1588 = vlaneseq
        %v1589 = vshrl.u32 %v1588, 7
        %v1590 = vsub.s32 %v1587, %v1589
        %v1591 = vrot.slane %v1581, %v1590
        %v1592 = vcombine.high %v1591, %v1591
        %v1594 = vunpack.c.l.s4 1966171168
        %v1595 = vunpack.c.0.s8 %v1594
        %v1596 = vlaneseq
        %v1597 = vshrl.u32 %v1596, 7
        %v1598 = vsub.s32 %v1595, %v1597
        %v1599 = vrot.slane %v1591, %v1598
        %v1601 = vunpack.c.l.s4 1966171168
        %v1602 = vunpack.c.0.s8 %v1601
        %v1603 = vlaneseq
        %v1604 = vshrl.u32 %v1603, 7
        %v1605 = vsub.s32 %v1602, %v1604
        %v1606 = vrot.slane %v1592, %v1605
        %v1607 = vcombine.high %v1599, %v1599
        %1611 = vst.msk [vmem:[%s338 + $0x6] sm:$0x1] %vm578, %v1599
        %1612 = vst.msk [vmem:[%s338 + $0x16] sm:$0x1] %vm578, %v1606
        %1613 = vst.msk [vmem:[%s338 + $0x26] sm:$0x1] %vm578, %v1607
        %v1622 = vrot.slane %v1484, 7
        %v1623 = vsel %vm356, %v1622, %v1483
        %v1624 = vrot.slane %v1485, 6
        %v1625 = vsel %vm359, %v1624, %v1623
        %v1626 = vrot.slane %v1486, 5
        %v1627 = vsel %vm463, %v1626, %v1625
        %v1628 = vrot.slane %v1487, 4
        %v1629 = vsel %vm466, %v1628, %v1627
        %v1630 = vrot.slane %v1488, 3
        %v1631 = vsel %vm469, %v1630, %v1629
        %v1632 = vrot.slane %v1489, 2
        %v1633 = vsel %vm472, %v1632, %v1631
        %v1634 = vrot.slane %v1490, 1
        %v1635 = vsel %vm475, %v1634, %v1633
        %1637 = vmatprep.subr.mxu0 0.0
        %1638 = vmatpush1.msra.mxu0 %v1635
        %1639 = vmatprep.subr.mxu0 0.0
        %1640 = vmatpush1.msra.mxu0 0.0
        %1641 = vmatprep.subr.mxu0 0.0
        %1642 = vmatpush1.msra.mxu0 0.0
        %1643 = vmatprep.subr.mxu0 0.0
        %1644 = vmatpush1.msra.mxu0 0.0
        %1645 = vmatprep.subr.mxu0 0.0
        %1646 = vmatpush1.msra.mxu0 0.0
        %1647 = vmatprep.subr.mxu0 0.0
        %1648 = vmatpush1.msra.mxu0 0.0
        %1649 = vmatprep.subr.mxu0 0.0
        %1650 = vmatpush1.msra.mxu0 0.0
        %1651 = vmatprep.subr.mxu0 0.0
        %1652 = vmatpush1.msra.mxu0 0.0
        %1653 = vmatprep.subr.mxu0 0.0
        %1654 = vmatpush1.msra.mxu0 0.0
        %1655 = vmatprep.subr.mxu0 0.0
        %1656 = vmatpush1.msra.mxu0 0.0
        %1657 = vmatprep.subr.mxu0 0.0
        %1658 = vmatpush1.msra.mxu0 0.0
        %1659 = vmatprep.subr.mxu0 0.0
        %1660 = vmatpush1.msra.mxu0 0.0
        %1661 = vmatprep.subr.mxu0 0.0
        %1662 = vmatpush1.msra.mxu0 0.0
        %1663 = vmatprep.subr.mxu0 0.0
        %1664 = vmatpush1.msra.mxu0 0.0
        %1665 = vmatprep.subr.mxu0 0.0
        %1666 = vmatpush1.msra.mxu0 0.0
        %1667 = vmatprep.subr.mxu0 0.0
        %1668 = vmatpush1.msra.mxu0 0.0
        %1669 = vmatprep.subr.mxu0 0.0
        %1670 = vmatpush1.msra.mxu0 0.0
        %1671 = vmatprep.subr.mxu0 0.0
        %1672 = vmatpush1.msra.mxu0 0.0
        %1673 = vmatprep.subr.mxu0 0.0
        %1674 = vmatpush1.msra.mxu0 0.0
        %1675 = vmatprep.subr.mxu0 0.0
        %1676 = vmatpush1.msra.mxu0 0.0
        %1677 = vmatprep.subr.mxu0 0.0
        %1678 = vmatpush1.msra.mxu0 0.0
        %1679 = vmatprep.subr.mxu0 0.0
        %1680 = vmatpush1.msra.mxu0 0.0
        %1681 = vmatprep.subr.mxu0 0.0
        %1682 = vmatpush1.msra.mxu0 0.0
        %1683 = vmatprep.subr.mxu0 0.0
        %1684 = vmatpush1.msra.mxu0 0.0
        %1685 = vmatprep.subr.mxu0 0.0
        %1686 = vmatpush1.msra.mxu0 0.0
        %1687 = vmatprep.subr.mxu0 0.0
        %1688 = vmatpush1.msra.mxu0 0.0
        %1689 = vmatprep.subr.mxu0 0.0
        %1690 = vmatpush1.msra.mxu0 0.0
        %1691 = vmatprep.subr.mxu0 0.0
        %1692 = vmatpush1.msra.mxu0 0.0
        %1693 = vmatprep.subr.mxu0 0.0
        %1694 = vmatpush1.msra.mxu0 0.0
        %1695 = vmatprep.subr.mxu0 0.0
        %1696 = vmatpush1.msra.mxu0 0.0
        %1697 = vmatprep.subr.mxu0 0.0
        %1698 = vmatpush1.msra.mxu0 0.0
        %1699 = vmatprep.subr.mxu0 0.0
        %1700 = vmatpush1.msra.mxu0 0.0
        %1701 = vmatprep.mubr.f32.mxu0 0.0
        %1702 = vmatmul.mubr.f32.gmra.mrb[0].mxu0 %v479
        %v1703 = vpop.f32.mrb[0].mxu0
        %v1704 = vadd.f32 %v1472, %v1703
        %v1705 = vpop.f32.mrb[0].mxu0
        %1706 = vdwg.mxu0
        %v1709 = vunpack.c.l.s4 1966171168
        %v1710 = vunpack.c.0.s8 %v1709
        %v1711 = vlaneseq
        %v1712 = vshrl.u32 %v1711, 7
        %v1713 = vsub.s32 %v1710, %v1712
        %v1714 = vrot.slane %v1704, %v1713
        %v1715 = vcombine.high %v1714, %v1714
        %v1717 = vunpack.c.l.s4 1966171168
        %v1718 = vunpack.c.0.s8 %v1717
        %v1719 = vlaneseq
        %v1720 = vshrl.u32 %v1719, 7
        %v1721 = vsub.s32 %v1718, %v1720
        %v1722 = vrot.slane %v1714, %v1721
        %v1724 = vunpack.c.l.s4 1966171168
        %v1725 = vunpack.c.0.s8 %v1724
        %v1726 = vlaneseq
        %v1727 = vshrl.u32 %v1726, 7
        %v1728 = vsub.s32 %v1725, %v1727
        %v1729 = vrot.slane %v1715, %v1728
        %v1730 = vcombine.high %v1722, %v1722
        %1734 = vst.msk [vmem:[%s338 + $0x7] sm:$0x1] %vm578, %v1722
        %1735 = vst.msk [vmem:[%s338 + $0x17] sm:$0x1] %vm578, %v1729
        %1736 = vst.msk [vmem:[%s338 + $0x27] sm:$0x1] %vm578, %v1730
        %v1737 = vld [vmem:[%s299 + $0x4] sm:$0x1]
        %v1738 = vld [vmem:[%s299 + $0xc] sm:$0x1]
        %v1739 = vld [vmem:[%s299 + $0x14] sm:$0x1]
        %v1743 = vrot.slane %v1738, 7
        %v1744 = vsel %vm356, %v1743, %v1737
        %v1745 = vrot.slane %v1739, 6
        %v1746 = vsel %vm359, %v1745, %v1744
        %v1747 = vsel %vm361, %v1746, 0
        %1749 = vmatprep.subr.mxu0 0.0
        %1750 = vmatpush1.msra.mxu0 %v342
        %1751 = vmatprep.subr.mxu0 0.0
        %1752 = vmatpush1.msra.mxu0 0.0
        %1753 = vmatprep.subr.mxu0 0.0
        %1754 = vmatpush1.msra.mxu0 0.0
        %1755 = vmatprep.subr.mxu0 0.0
        %1756 = vmatpush1.msra.mxu0 0.0
        %1757 = vmatprep.subr.mxu0 0.0
        %1758 = vmatpush1.msra.mxu0 0.0
        %1759 = vmatprep.subr.mxu0 0.0
        %1760 = vmatpush1.msra.mxu0 0.0
        %1761 = vmatprep.subr.mxu0 0.0
        %1762 = vmatpush1.msra.mxu0 0.0
        %1763 = vmatprep.subr.mxu0 0.0
        %1764 = vmatpush1.msra.mxu0 0.0
        %1765 = vmatprep.subr.mxu0 0.0
        %1766 = vmatpush1.msra.mxu0 0.0
        %1767 = vmatprep.subr.mxu0 0.0
        %1768 = vmatpush1.msra.mxu0 0.0
        %1769 = vmatprep.subr.mxu0 0.0
        %1770 = vmatpush1.msra.mxu0 0.0
        %1771 = vmatprep.subr.mxu0 0.0
        %1772 = vmatpush1.msra.mxu0 0.0
        %1773 = vmatprep.subr.mxu0 0.0
        %1774 = vmatpush1.msra.mxu0 0.0
        %1775 = vmatprep.subr.mxu0 0.0
        %1776 = vmatpush1.msra.mxu0 0.0
        %1777 = vmatprep.subr.mxu0 0.0
        %1778 = vmatpush1.msra.mxu0 0.0
        %1779 = vmatprep.subr.mxu0 0.0
        %1780 = vmatpush1.msra.mxu0 0.0
        %1781 = vmatprep.subr.mxu0 0.0
        %1782 = vmatpush1.msra.mxu0 0.0
        %1783 = vmatprep.subr.mxu0 0.0
        %1784 = vmatpush1.msra.mxu0 0.0
        %1785 = vmatprep.subr.mxu0 0.0
        %1786 = vmatpush1.msra.mxu0 0.0
        %1787 = vmatprep.subr.mxu0 0.0
        %1788 = vmatpush1.msra.mxu0 0.0
        %1789 = vmatprep.subr.mxu0 0.0
        %1790 = vmatpush1.msra.mxu0 0.0
        %1791 = vmatprep.subr.mxu0 0.0
        %1792 = vmatpush1.msra.mxu0 0.0
        %1793 = vmatprep.subr.mxu0 0.0
        %1794 = vmatpush1.msra.mxu0 0.0
        %1795 = vmatprep.subr.mxu0 0.0
        %1796 = vmatpush1.msra.mxu0 0.0
        %1797 = vmatprep.subr.mxu0 0.0
        %1798 = vmatpush1.msra.mxu0 0.0
        %1799 = vmatprep.subr.mxu0 0.0
        %1800 = vmatpush1.msra.mxu0 0.0
        %1801 = vmatprep.subr.mxu0 0.0
        %1802 = vmatpush1.msra.mxu0 0.0
        %1803 = vmatprep.subr.mxu0 0.0
        %1804 = vmatpush1.msra.mxu0 0.0
        %1805 = vmatprep.subr.mxu0 0.0
        %1806 = vmatpush1.msra.mxu0 0.0
        %1807 = vmatprep.subr.mxu0 0.0
        %1808 = vmatpush1.msra.mxu0 0.0
        %1809 = vmatprep.subr.mxu0 0.0
        %1810 = vmatpush1.msra.mxu0 0.0
        %1811 = vmatprep.subr.mxu0 0.0
        %1812 = vmatpush1.msra.mxu0 0.0
        %1813 = vmatprep.mubr.f32.mxu0 0.0
        %1814 = vmatmul.mubr.f32.gmra.mrb[0].mxu0 %v1747
        %v1815 = vpop.f32.mrb[0].mxu0
        %v1816 = vadd.f32 %v350, %v1815
        %v1817 = vpop.f32.mrb[0].mxu0
        %1818 = vdwg.mxu0
        %v1819 = vld [vmem:[%s286 + $0x8] sm:$0x1]
        %v1820 = vld [vmem:[%s286 + $0x18] sm:$0x1]
        %v1821 = vld [vmem:[%s286 + $0x28] sm:$0x1]
        %v1822 = vld [vmem:[%s286 + $0x38] sm:$0x1]
        %v1823 = vld [vmem:[%s286 + $0x48] sm:$0x1]
        %v1824 = vld [vmem:[%s286 + $0x58] sm:$0x1]
        %v1825 = vld [vmem:[%s286 + $0x68] sm:$0x1]
        %v1826 = vld [vmem:[%s286 + $0x78] sm:$0x1]
        %v1827 = vld [vmem:[%s286 + $0x9] sm:$0x1]
        %v1828 = vld [vmem:[%s286 + $0x19] sm:$0x1]
        %v1829 = vld [vmem:[%s286 + $0x29] sm:$0x1]
        %v1830 = vld [vmem:[%s286 + $0x39] sm:$0x1]
        %v1831 = vld [vmem:[%s286 + $0x49] sm:$0x1]
        %v1832 = vld [vmem:[%s286 + $0x59] sm:$0x1]
        %v1833 = vld [vmem:[%s286 + $0x69] sm:$0x1]
        %v1834 = vld [vmem:[%s286 + $0x79] sm:$0x1]
        %v1843 = vrot.slane %v1820, 7
        %v1844 = vsel %vm356, %v1843, %v1819
        %v1845 = vrot.slane %v1821, 6
        %v1846 = vsel %vm359, %v1845, %v1844
        %v1847 = vrot.slane %v1822, 5
        %v1848 = vsel %vm463, %v1847, %v1846
        %v1849 = vrot.slane %v1823, 4
        %v1850 = vsel %vm466, %v1849, %v1848
        %v1851 = vrot.slane %v1824, 3
        %v1852 = vsel %vm469, %v1851, %v1850
        %v1853 = vrot.slane %v1825, 2
        %v1854 = vsel %vm472, %v1853, %v1852
        %v1855 = vrot.slane %v1826, 1
        %v1856 = vsel %vm475, %v1855, %v1854
        %1858 = vmatprep.subr.mxu0 0.0
        %1859 = vmatpush1.msra.mxu0 %v1856
        %1860 = vmatprep.subr.mxu0 0.0
        %1861 = vmatpush1.msra.mxu0 0.0
        %1862 = vmatprep.subr.mxu0 0.0
        %1863 = vmatpush1.msra.mxu0 0.0
        %1864 = vmatprep.subr.mxu0 0.0
        %1865 = vmatpush1.msra.mxu0 0.0
        %1866 = vmatprep.subr.mxu0 0.0
        %1867 = vmatpush1.msra.mxu0 0.0
        %1868 = vmatprep.subr.mxu0 0.0
        %1869 = vmatpush1.msra.mxu0 0.0
        %1870 = vmatprep.subr.mxu0 0.0
        %1871 = vmatpush1.msra.mxu0 0.0
        %1872 = vmatprep.subr.mxu0 0.0
        %1873 = vmatpush1.msra.mxu0 0.0
        %1874 = vmatprep.subr.mxu0 0.0
        %1875 = vmatpush1.msra.mxu0 0.0
        %1876 = vmatprep.subr.mxu0 0.0
        %1877 = vmatpush1.msra.mxu0 0.0
        %1878 = vmatprep.subr.mxu0 0.0
        %1879 = vmatpush1.msra.mxu0 0.0
        %1880 = vmatprep.subr.mxu0 0.0
        %1881 = vmatpush1.msra.mxu0 0.0
        %1882 = vmatprep.subr.mxu0 0.0
        %1883 = vmatpush1.msra.mxu0 0.0
        %1884 = vmatprep.subr.mxu0 0.0
        %1885 = vmatpush1.msra.mxu0 0.0
        %1886 = vmatprep.subr.mxu0 0.0
        %1887 = vmatpush1.msra.mxu0 0.0
        %1888 = vmatprep.subr.mxu0 0.0
        %1889 = vmatpush1.msra.mxu0 0.0
        %1890 = vmatprep.subr.mxu0 0.0
        %1891 = vmatpush1.msra.mxu0 0.0
        %1892 = vmatprep.subr.mxu0 0.0
        %1893 = vmatpush1.msra.mxu0 0.0
        %1894 = vmatprep.subr.mxu0 0.0
        %1895 = vmatpush1.msra.mxu0 0.0
        %1896 = vmatprep.subr.mxu0 0.0
        %1897 = vmatpush1.msra.mxu0 0.0
        %1898 = vmatprep.subr.mxu0 0.0
        %1899 = vmatpush1.msra.mxu0 0.0
        %1900 = vmatprep.subr.mxu0 0.0
        %1901 = vmatpush1.msra.mxu0 0.0
        %1902 = vmatprep.subr.mxu0 0.0
        %1903 = vmatpush1.msra.mxu0 0.0
        %1904 = vmatprep.subr.mxu0 0.0
        %1905 = vmatpush1.msra.mxu0 0.0
        %1906 = vmatprep.subr.mxu0 0.0
        %1907 = vmatpush1.msra.mxu0 0.0
        %1908 = vmatprep.subr.mxu0 0.0
        %1909 = vmatpush1.msra.mxu0 0.0
        %1910 = vmatprep.subr.mxu0 0.0
        %1911 = vmatpush1.msra.mxu0 0.0
        %1912 = vmatprep.subr.mxu0 0.0
        %1913 = vmatpush1.msra.mxu0 0.0
        %1914 = vmatprep.subr.mxu0 0.0
        %1915 = vmatpush1.msra.mxu0 0.0
        %1916 = vmatprep.subr.mxu0 0.0
        %1917 = vmatpush1.msra.mxu0 0.0
        %1918 = vmatprep.subr.mxu0 0.0
        %1919 = vmatpush1.msra.mxu0 0.0
        %1920 = vmatprep.subr.mxu0 0.0
        %1921 = vmatpush1.msra.mxu0 0.0
        %1922 = vmatprep.mubr.f32.mxu0 0.0
        %1923 = vmatmul.mubr.f32.gmra.mrb[0].mxu0 %v479
        %v1924 = vpop.f32.mrb[0].mxu0
        %v1925 = vadd.f32 %v1816, %v1924
        %v1926 = vpop.f32.mrb[0].mxu0
        %1927 = vdwg.mxu0
        %v1930 = vunpack.c.l.s4 1966171168
        %v1931 = vunpack.c.0.s8 %v1930
        %v1932 = vlaneseq
        %v1933 = vshrl.u32 %v1932, 7
        %v1934 = vsub.s32 %v1931, %v1933
        %v1935 = vrot.slane %v1925, %v1934
        %v1936 = vcombine.high %v1935, %v1935
        %v1938 = vunpack.c.l.s4 1966171168
        %v1939 = vunpack.c.0.s8 %v1938
        %v1940 = vlaneseq
        %v1941 = vshrl.u32 %v1940, 7
        %v1942 = vsub.s32 %v1939, %v1941
        %v1943 = vrot.slane %v1935, %v1942
        %v1945 = vunpack.c.l.s4 1966171168
        %v1946 = vunpack.c.0.s8 %v1945
        %v1947 = vlaneseq
        %v1948 = vshrl.u32 %v1947, 7
        %v1949 = vsub.s32 %v1946, %v1948
        %v1950 = vrot.slane %v1936, %v1949
        %v1951 = vcombine.high %v1943, %v1943
        %1955 = vst.msk [vmem:[%s338 + $0x8] sm:$0x1] %vm578, %v1943
        %1956 = vst.msk [vmem:[%s338 + $0x18] sm:$0x1] %vm578, %v1950
        %1957 = vst.msk [vmem:[%s338 + $0x28] sm:$0x1] %vm578, %v1951
        %v1966 = vrot.slane %v1828, 7
        %v1967 = vsel %vm356, %v1966, %v1827
        %v1968 = vrot.slane %v1829, 6
        %v1969 = vsel %vm359, %v1968, %v1967
        %v1970 = vrot.slane %v1830, 5
        %v1971 = vsel %vm463, %v1970, %v1969
        %v1972 = vrot.slane %v1831, 4
        %v1973 = vsel %vm466, %v1972, %v1971
        %v1974 = vrot.slane %v1832, 3
        %v1975 = vsel %vm469, %v1974, %v1973
        %v1976 = vrot.slane %v1833, 2
        %v1977 = vsel %vm472, %v1976, %v1975
        %v1978 = vrot.slane %v1834, 1
        %v1979 = vsel %vm475, %v1978, %v1977
        %1981 = vmatprep.subr.mxu0 0.0
        %1982 = vmatpush1.msra.mxu0 %v1979
        %1983 = vmatprep.subr.mxu0 0.0
        %1984 = vmatpush1.msra.mxu0 0.0
        %1985 = vmatprep.subr.mxu0 0.0
        %1986 = vmatpush1.msra.mxu0 0.0
        %1987 = vmatprep.subr.mxu0 0.0
        %1988 = vmatpush1.msra.mxu0 0.0
        %1989 = vmatprep.subr.mxu0 0.0
        %1990 = vmatpush1.msra.mxu0 0.0
        %1991 = vmatprep.subr.mxu0 0.0
        %1992 = vmatpush1.msra.mxu0 0.0
        %1993 = vmatprep.subr.mxu0 0.0
        %1994 = vmatpush1.msra.mxu0 0.0
        %1995 = vmatprep.subr.mxu0 0.0
        %1996 = vmatpush1.msra.mxu0 0.0
        %1997 = vmatprep.subr.mxu0 0.0
        %1998 = vmatpush1.msra.mxu0 0.0
        %1999 = vmatprep.subr.mxu0 0.0
        %2000 = vmatpush1.msra.mxu0 0.0
        %2001 = vmatprep.subr.mxu0 0.0
        %2002 = vmatpush1.msra.mxu0 0.0
        %2003 = vmatprep.subr.mxu0 0.0
        %2004 = vmatpush1.msra.mxu0 0.0
        %2005 = vmatprep.subr.mxu0 0.0
        %2006 = vmatpush1.msra.mxu0 0.0
        %2007 = vmatprep.subr.mxu0 0.0
        %2008 = vmatpush1.msra.mxu0 0.0
        %2009 = vmatprep.subr.mxu0 0.0
        %2010 = vmatpush1.msra.mxu0 0.0
        %2011 = vmatprep.subr.mxu0 0.0
        %2012 = vmatpush1.msra.mxu0 0.0
        %2013 = vmatprep.subr.mxu0 0.0
        %2014 = vmatpush1.msra.mxu0 0.0
        %2015 = vmatprep.subr.mxu0 0.0
        %2016 = vmatpush1.msra.mxu0 0.0
        %2017 = vmatprep.subr.mxu0 0.0
        %2018 = vmatpush1.msra.mxu0 0.0
        %2019 = vmatprep.subr.mxu0 0.0
        %2020 = vmatpush1.msra.mxu0 0.0
        %2021 = vmatprep.subr.mxu0 0.0
        %2022 = vmatpush1.msra.mxu0 0.0
        %2023 = vmatprep.subr.mxu0 0.0
        %2024 = vmatpush1.msra.mxu0 0.0
        %2025 = vmatprep.subr.mxu0 0.0
        %2026 = vmatpush1.msra.mxu0 0.0
        %2027 = vmatprep.subr.mxu0 0.0
        %2028 = vmatpush1.msra.mxu0 0.0
        %2029 = vmatprep.subr.mxu0 0.0
        %2030 = vmatpush1.msra.mxu0 0.0
        %2031 = vmatprep.subr.mxu0 0.0
        %2032 = vmatpush1.msra.mxu0 0.0
        %2033 = vmatprep.subr.mxu0 0.0
        %2034 = vmatpush1.msra.mxu0 0.0
        %2035 = vmatprep.subr.mxu0 0.0
        %2036 = vmatpush1.msra.mxu0 0.0
        %2037 = vmatprep.subr.mxu0 0.0
        %2038 = vmatpush1.msra.mxu0 0.0
        %2039 = vmatprep.subr.mxu0 0.0
        %2040 = vmatpush1.msra.mxu0 0.0
        %2041 = vmatprep.subr.mxu0 0.0
        %2042 = vmatpush1.msra.mxu0 0.0
        %2043 = vmatprep.subr.mxu0 0.0
        %2044 = vmatpush1.msra.mxu0 0.0
        %2045 = vmatprep.mubr.f32.mxu0 0.0
        %2046 = vmatmul.mubr.f32.gmra.mrb[0].mxu0 %v479
        %v2047 = vpop.f32.mrb[0].mxu0
        %v2048 = vadd.f32 %v1816, %v2047
        %v2049 = vpop.f32.mrb[0].mxu0
        %2050 = vdwg.mxu0
        %v2053 = vunpack.c.l.s4 1966171168
        %v2054 = vunpack.c.0.s8 %v2053
        %v2055 = vlaneseq
        %v2056 = vshrl.u32 %v2055, 7
        %v2057 = vsub.s32 %v2054, %v2056
        %v2058 = vrot.slane %v2048, %v2057
        %v2059 = vcombine.high %v2058, %v2058
        %v2061 = vunpack.c.l.s4 1966171168
        %v2062 = vunpack.c.0.s8 %v2061
        %v2063 = vlaneseq
        %v2064 = vshrl.u32 %v2063, 7
        %v2065 = vsub.s32 %v2062, %v2064
        %v2066 = vrot.slane %v2058, %v2065
        %v2068 = vunpack.c.l.s4 1966171168
        %v2069 = vunpack.c.0.s8 %v2068
        %v2070 = vlaneseq
        %v2071 = vshrl.u32 %v2070, 7
        %v2072 = vsub.s32 %v2069, %v2071
        %v2073 = vrot.slane %v2059, %v2072
        %v2074 = vcombine.high %v2066, %v2066
        %2078 = vst.msk [vmem:[%s338 + $0x9] sm:$0x1] %vm578, %v2066
        %2079 = vst.msk [vmem:[%s338 + $0x19] sm:$0x1] %vm578, %v2073
        %2080 = vst.msk [vmem:[%s338 + $0x29] sm:$0x1] %vm578, %v2074
        %v2081 = vld [vmem:[%s299 + $0x5] sm:$0x1]
        %v2082 = vld [vmem:[%s299 + $0xd] sm:$0x1]
        %v2083 = vld [vmem:[%s299 + $0x15] sm:$0x1]
        %v2087 = vrot.slane %v2082, 7
        %v2088 = vsel %vm356, %v2087, %v2081
        %v2089 = vrot.slane %v2083, 6
        %v2090 = vsel %vm359, %v2089, %v2088
        %v2091 = vsel %vm361, %v2090, 0
        %2093 = vmatprep.subr.mxu0 0.0
        %2094 = vmatpush1.msra.mxu0 %v342
        %2095 = vmatprep.subr.mxu0 0.0
        %2096 = vmatpush1.msra.mxu0 0.0
        %2097 = vmatprep.subr.mxu0 0.0
        %2098 = vmatpush1.msra.mxu0 0.0
        %2099 = vmatprep.subr.mxu0 0.0
        %2100 = vmatpush1.msra.mxu0 0.0
        %2101 = vmatprep.subr.mxu0 0.0
        %2102 = vmatpush1.msra.mxu0 0.0
        %2103 = vmatprep.subr.mxu0 0.0
        %2104 = vmatpush1.msra.mxu0 0.0
        %2105 = vmatprep.subr.mxu0 0.0
        %2106 = vmatpush1.msra.mxu0 0.0
        %2107 = vmatprep.subr.mxu0 0.0
        %2108 = vmatpush1.msra.mxu0 0.0
        %2109 = vmatprep.subr.mxu0 0.0
        %2110 = vmatpush1.msra.mxu0 0.0
        %2111 = vmatprep.subr.mxu0 0.0
        %2112 = vmatpush1.msra.mxu0 0.0
        %2113 = vmatprep.subr.mxu0 0.0
        %2114 = vmatpush1.msra.mxu0 0.0
        %2115 = vmatprep.subr.mxu0 0.0
        %2116 = vmatpush1.msra.mxu0 0.0
        %2117 = vmatprep.subr.mxu0 0.0
        %2118 = vmatpush1.msra.mxu0 0.0
        %2119 = vmatprep.subr.mxu0 0.0
        %2120 = vmatpush1.msra.mxu0 0.0
        %2121 = vmatprep.subr.mxu0 0.0
        %2122 = vmatpush1.msra.mxu0 0.0
        %2123 = vmatprep.subr.mxu0 0.0
        %2124 = vmatpush1.msra.mxu0 0.0
        %2125 = vmatprep.subr.mxu0 0.0
        %2126 = vmatpush1.msra.mxu0 0.0
        %2127 = vmatprep.subr.mxu0 0.0
        %2128 = vmatpush1.msra.mxu0 0.0
        %2129 = vmatprep.subr.mxu0 0.0
        %2130 = vmatpush1.msra.mxu0 0.0
        %2131 = vmatprep.subr.mxu0 0.0
        %2132 = vmatpush1.msra.mxu0 0.0
        %2133 = vmatprep.subr.mxu0 0.0
        %2134 = vmatpush1.msra.mxu0 0.0
        %2135 = vmatprep.subr.mxu0 0.0
        %2136 = vmatpush1.msra.mxu0 0.0
        %2137 = vmatprep.subr.mxu0 0.0
        %2138 = vmatpush1.msra.mxu0 0.0
        %2139 = vmatprep.subr.mxu0 0.0
        %2140 = vmatpush1.msra.mxu0 0.0
        %2141 = vmatprep.subr.mxu0 0.0
        %2142 = vmatpush1.msra.mxu0 0.0
        %2143 = vmatprep.subr.mxu0 0.0
        %2144 = vmatpush1.msra.mxu0 0.0
        %2145 = vmatprep.subr.mxu0 0.0
        %2146 = vmatpush1.msra.mxu0 0.0
        %2147 = vmatprep.subr.mxu0 0.0
        %2148 = vmatpush1.msra.mxu0 0.0
        %2149 = vmatprep.subr.mxu0 0.0
        %2150 = vmatpush1.msra.mxu0 0.0
        %2151 = vmatprep.subr.mxu0 0.0
        %2152 = vmatpush1.msra.mxu0 0.0
        %2153 = vmatprep.subr.mxu0 0.0
        %2154 = vmatpush1.msra.mxu0 0.0
        %2155 = vmatprep.subr.mxu0 0.0
        %2156 = vmatpush1.msra.mxu0 0.0
        %2157 = vmatprep.mubr.f32.mxu0 0.0
        %2158 = vmatmul.mubr.f32.gmra.mrb[0].mxu0 %v2091
        %v2159 = vpop.f32.mrb[0].mxu0
        %v2160 = vadd.f32 %v350, %v2159
        %v2161 = vpop.f32.mrb[0].mxu0
        %2162 = vdwg.mxu0
        %v2163 = vld [vmem:[%s286 + $0xa] sm:$0x1]
        %v2164 = vld [vmem:[%s286 + $0x1a] sm:$0x1]
        %v2165 = vld [vmem:[%s286 + $0x2a] sm:$0x1]
        %v2166 = vld [vmem:[%s286 + $0x3a] sm:$0x1]
        %v2167 = vld [vmem:[%s286 + $0x4a] sm:$0x1]
        %v2168 = vld [vmem:[%s286 + $0x5a] sm:$0x1]
        %v2169 = vld [vmem:[%s286 + $0x6a] sm:$0x1]
        %v2170 = vld [vmem:[%s286 + $0x7a] sm:$0x1]
        %v2171 = vld [vmem:[%s286 + $0xb] sm:$0x1]
        %v2172 = vld [vmem:[%s286 + $0x1b] sm:$0x1]
        %v2173 = vld [vmem:[%s286 + $0x2b] sm:$0x1]
        %v2174 = vld [vmem:[%s286 + $0x3b] sm:$0x1]
        %v2175 = vld [vmem:[%s286 + $0x4b] sm:$0x1]
        %v2176 = vld [vmem:[%s286 + $0x5b] sm:$0x1]
        %v2177 = vld [vmem:[%s286 + $0x6b] sm:$0x1]
        %v2178 = vld [vmem:[%s286 + $0x7b] sm:$0x1]
        %v2187 = vrot.slane %v2164, 7
        %v2188 = vsel %vm356, %v2187, %v2163
        %v2189 = vrot.slane %v2165, 6
        %v2190 = vsel %vm359, %v2189, %v2188
        %v2191 = vrot.slane %v2166, 5
        %v2192 = vsel %vm463, %v2191, %v2190
        %v2193 = vrot.slane %v2167, 4
        %v2194 = vsel %vm466, %v2193, %v2192
        %v2195 = vrot.slane %v2168, 3
        %v2196 = vsel %vm469, %v2195, %v2194
        %v2197 = vrot.slane %v2169, 2
        %v2198 = vsel %vm472, %v2197, %v2196
        %v2199 = vrot.slane %v2170, 1
        %v2200 = vsel %vm475, %v2199, %v2198
        %2202 = vmatprep.subr.mxu0 0.0
        %2203 = vmatpush1.msra.mxu0 %v2200
        %2204 = vmatprep.subr.mxu0 0.0
        %2205 = vmatpush1.msra.mxu0 0.0
        %2206 = vmatprep.subr.mxu0 0.0
        %2207 = vmatpush1.msra.mxu0 0.0
        %2208 = vmatprep.subr.mxu0 0.0
        %2209 = vmatpush1.msra.mxu0 0.0
        %2210 = vmatprep.subr.mxu0 0.0
        %2211 = vmatpush1.msra.mxu0 0.0
        %2212 = vmatprep.subr.mxu0 0.0
        %2213 = vmatpush1.msra.mxu0 0.0
        %2214 = vmatprep.subr.mxu0 0.0
        %2215 = vmatpush1.msra.mxu0 0.0
        %2216 = vmatprep.subr.mxu0 0.0
        %2217 = vmatpush1.msra.mxu0 0.0
        %2218 = vmatprep.subr.mxu0 0.0
        %2219 = vmatpush1.msra.mxu0 0.0
        %2220 = vmatprep.subr.mxu0 0.0
        %2221 = vmatpush1.msra.mxu0 0.0
        %2222 = vmatprep.subr.mxu0 0.0
        %2223 = vmatpush1.msra.mxu0 0.0
        %2224 = vmatprep.subr.mxu0 0.0
        %2225 = vmatpush1.msra.mxu0 0.0
        %2226 = vmatprep.subr.mxu0 0.0
        %2227 = vmatpush1.msra.mxu0 0.0
        %2228 = vmatprep.subr.mxu0 0.0
        %2229 = vmatpush1.msra.mxu0 0.0
        %2230 = vmatprep.subr.mxu0 0.0
        %2231 = vmatpush1.msra.mxu0 0.0
        %2232 = vmatprep.subr.mxu0 0.0
        %2233 = vmatpush1.msra.mxu0 0.0
        %2234 = vmatprep.subr.mxu0 0.0
        %2235 = vmatpush1.msra.mxu0 0.0
        %2236 = vmatprep.subr.mxu0 0.0
        %2237 = vmatpush1.msra.mxu0 0.0
        %2238 = vmatprep.subr.mxu0 0.0
        %2239 = vmatpush1.msra.mxu0 0.0
        %2240 = vmatprep.subr.mxu0 0.0
        %2241 = vmatpush1.msra.mxu0 0.0
        %2242 = vmatprep.subr.mxu0 0.0
        %2243 = vmatpush1.msra.mxu0 0.0
        %2244 = vmatprep.subr.mxu0 0.0
        %2245 = vmatpush1.msra.mxu0 0.0
        %2246 = vmatprep.subr.mxu0 0.0
        %2247 = vmatpush1.msra.mxu0 0.0
        %2248 = vmatprep.subr.mxu0 0.0
        %2249 = vmatpush1.msra.mxu0 0.0
        %2250 = vmatprep.subr.mxu0 0.0
        %2251 = vmatpush1.msra.mxu0 0.0
        %2252 = vmatprep.subr.mxu0 0.0
        %2253 = vmatpush1.msra.mxu0 0.0
        %2254 = vmatprep.subr.mxu0 0.0
        %2255 = vmatpush1.msra.mxu0 0.0
        %2256 = vmatprep.subr.mxu0 0.0
        %2257 = vmatpush1.msra.mxu0 0.0
        %2258 = vmatprep.subr.mxu0 0.0
        %2259 = vmatpush1.msra.mxu0 0.0
        %2260 = vmatprep.subr.mxu0 0.0
        %2261 = vmatpush1.msra.mxu0 0.0
        %2262 = vmatprep.subr.mxu0 0.0
        %2263 = vmatpush1.msra.mxu0 0.0
        %2264 = vmatprep.subr.mxu0 0.0
        %2265 = vmatpush1.msra.mxu0 0.0
        %2266 = vmatprep.mubr.f32.mxu0 0.0
        %2267 = vmatmul.mubr.f32.gmra.mrb[0].mxu0 %v479
        %v2268 = vpop.f32.mrb[0].mxu0
        %v2269 = vadd.f32 %v2160, %v2268
        %v2270 = vpop.f32.mrb[0].mxu0
        %2271 = vdwg.mxu0
        %v2274 = vunpack.c.l.s4 1966171168
        %v2275 = vunpack.c.0.s8 %v2274
        %v2276 = vlaneseq
        %v2277 = vshrl.u32 %v2276, 7
        %v2278 = vsub.s32 %v2275, %v2277
        %v2279 = vrot.slane %v2269, %v2278
        %v2280 = vcombine.high %v2279, %v2279
        %v2282 = vunpack.c.l.s4 1966171168
        %v2283 = vunpack.c.0.s8 %v2282
        %v2284 = vlaneseq
        %v2285 = vshrl.u32 %v2284, 7
        %v2286 = vsub.s32 %v2283, %v2285
        %v2287 = vrot.slane %v2279, %v2286
        %v2289 = vunpack.c.l.s4 1966171168
        %v2290 = vunpack.c.0.s8 %v2289
        %v2291 = vlaneseq
        %v2292 = vshrl.u32 %v2291, 7
        %v2293 = vsub.s32 %v2290, %v2292
        %v2294 = vrot.slane %v2280, %v2293
        %v2295 = vcombine.high %v2287, %v2287
        %2299 = vst.msk [vmem:[%s338 + $0xa] sm:$0x1] %vm578, %v2287
        %2300 = vst.msk [vmem:[%s338 + $0x1a] sm:$0x1] %vm578, %v2294
        %2301 = vst.msk [vmem:[%s338 + $0x2a] sm:$0x1] %vm578, %v2295
        %v2310 = vrot.slane %v2172, 7
        %v2311 = vsel %vm356, %v2310, %v2171
        %v2312 = vrot.slane %v2173, 6
        %v2313 = vsel %vm359, %v2312, %v2311
        %v2314 = vrot.slane %v2174, 5
        %v2315 = vsel %vm463, %v2314, %v2313
        %v2316 = vrot.slane %v2175, 4
        %v2317 = vsel %vm466, %v2316, %v2315
        %v2318 = vrot.slane %v2176, 3
        %v2319 = vsel %vm469, %v2318, %v2317
        %v2320 = vrot.slane %v2177, 2
        %v2321 = vsel %vm472, %v2320, %v2319
        %v2322 = vrot.slane %v2178, 1
        %v2323 = vsel %vm475, %v2322, %v2321
        %2325 = vmatprep.subr.mxu0 0.0
        %2326 = vmatpush1.msra.mxu0 %v2323
        %2327 = vmatprep.subr.mxu0 0.0
        %2328 = vmatpush1.msra.mxu0 0.0
        %2329 = vmatprep.subr.mxu0 0.0
        %2330 = vmatpush1.msra.mxu0 0.0
        %2331 = vmatprep.subr.mxu0 0.0
        %2332 = vmatpush1.msra.mxu0 0.0
        %2333 = vmatprep.subr.mxu0 0.0
        %2334 = vmatpush1.msra.mxu0 0.0
        %2335 = vmatprep.subr.mxu0 0.0
        %2336 = vmatpush1.msra.mxu0 0.0
        %2337 = vmatprep.subr.mxu0 0.0
        %2338 = vmatpush1.msra.mxu0 0.0
        %2339 = vmatprep.subr.mxu0 0.0
        %2340 = vmatpush1.msra.mxu0 0.0
        %2341 = vmatprep.subr.mxu0 0.0
        %2342 = vmatpush1.msra.mxu0 0.0
        %2343 = vmatprep.subr.mxu0 0.0
        %2344 = vmatpush1.msra.mxu0 0.0
        %2345 = vmatprep.subr.mxu0 0.0
        %2346 = vmatpush1.msra.mxu0 0.0
        %2347 = vmatprep.subr.mxu0 0.0
        %2348 = vmatpush1.msra.mxu0 0.0
        %2349 = vmatprep.subr.mxu0 0.0
        %2350 = vmatpush1.msra.mxu0 0.0
        %2351 = vmatprep.subr.mxu0 0.0
        %2352 = vmatpush1.msra.mxu0 0.0
        %2353 = vmatprep.subr.mxu0 0.0
        %2354 = vmatpush1.msra.mxu0 0.0
        %2355 = vmatprep.subr.mxu0 0.0
        %2356 = vmatpush1.msra.mxu0 0.0
        %2357 = vmatprep.subr.mxu0 0.0
        %2358 = vmatpush1.msra.mxu0 0.0
        %2359 = vmatprep.subr.mxu0 0.0
        %2360 = vmatpush1.msra.mxu0 0.0
        %2361 = vmatprep.subr.mxu0 0.0
        %2362 = vmatpush1.msra.mxu0 0.0
        %2363 = vmatprep.subr.mxu0 0.0
        %2364 = vmatpush1.msra.mxu0 0.0
        %2365 = vmatprep.subr.mxu0 0.0
        %2366 = vmatpush1.msra.mxu0 0.0
        %2367 = vmatprep.subr.mxu0 0.0
        %2368 = vmatpush1.msra.mxu0 0.0
        %2369 = vmatprep.subr.mxu0 0.0
        %2370 = vmatpush1.msra.mxu0 0.0
        %2371 = vmatprep.subr.mxu0 0.0
        %2372 = vmatpush1.msra.mxu0 0.0
        %2373 = vmatprep.subr.mxu0 0.0
        %2374 = vmatpush1.msra.mxu0 0.0
        %2375 = vmatprep.subr.mxu0 0.0
        %2376 = vmatpush1.msra.mxu0 0.0
        %2377 = vmatprep.subr.mxu0 0.0
        %2378 = vmatpush1.msra.mxu0 0.0
        %2379 = vmatprep.subr.mxu0 0.0
        %2380 = vmatpush1.msra.mxu0 0.0
        %2381 = vmatprep.subr.mxu0 0.0
        %2382 = vmatpush1.msra.mxu0 0.0
        %2383 = vmatprep.subr.mxu0 0.0
        %2384 = vmatpush1.msra.mxu0 0.0
        %2385 = vmatprep.subr.mxu0 0.0
        %2386 = vmatpush1.msra.mxu0 0.0
        %2387 = vmatprep.subr.mxu0 0.0
        %2388 = vmatpush1.msra.mxu0 0.0
        %2389 = vmatprep.mubr.f32.mxu0 0.0
        %2390 = vmatmul.mubr.f32.gmra.mrb[0].mxu0 %v479
        %v2391 = vpop.f32.mrb[0].mxu0
        %v2392 = vadd.f32 %v2160, %v2391
        %v2393 = vpop.f32.mrb[0].mxu0
        %2394 = vdwg.mxu0
        %v2397 = vunpack.c.l.s4 1966171168
        %v2398 = vunpack.c.0.s8 %v2397
        %v2399 = vlaneseq
        %v2400 = vshrl.u32 %v2399, 7
        %v2401 = vsub.s32 %v2398, %v2400
        %v2402 = vrot.slane %v2392, %v2401
        %v2403 = vcombine.high %v2402, %v2402
        %v2405 = vunpack.c.l.s4 1966171168
        %v2406 = vunpack.c.0.s8 %v2405
        %v2407 = vlaneseq
        %v2408 = vshrl.u32 %v2407, 7
        %v2409 = vsub.s32 %v2406, %v2408
        %v2410 = vrot.slane %v2402, %v2409
        %v2412 = vunpack.c.l.s4 1966171168
        %v2413 = vunpack.c.0.s8 %v2412
        %v2414 = vlaneseq
        %v2415 = vshrl.u32 %v2414, 7
        %v2416 = vsub.s32 %v2413, %v2415
        %v2417 = vrot.slane %v2403, %v2416
        %v2418 = vcombine.high %v2410, %v2410
        %2422 = vst.msk [vmem:[%s338 + $0xb] sm:$0x1] %vm578, %v2410
        %2423 = vst.msk [vmem:[%s338 + $0x1b] sm:$0x1] %vm578, %v2417
        %2424 = vst.msk [vmem:[%s338 + $0x2b] sm:$0x1] %vm578, %v2418
        %v2425 = vld [vmem:[%s299 + $0x6] sm:$0x1]
        %v2426 = vld [vmem:[%s299 + $0xe] sm:$0x1]
        %v2427 = vld [vmem:[%s299 + $0x16] sm:$0x1]
        %v2431 = vrot.slane %v2426, 7
        %v2432 = vsel %vm356, %v2431, %v2425
        %v2433 = vrot.slane %v2427, 6
        %v2434 = vsel %vm359, %v2433, %v2432
        %v2435 = vsel %vm361, %v2434, 0
        %2437 = vmatprep.subr.mxu0 0.0
        %2438 = vmatpush1.msra.mxu0 %v342
        %2439 = vmatprep.subr.mxu0 0.0
        %2440 = vmatpush1.msra.mxu0 0.0
        %2441 = vmatprep.subr.mxu0 0.0
        %2442 = vmatpush1.msra.mxu0 0.0
        %2443 = vmatprep.subr.mxu0 0.0
        %2444 = vmatpush1.msra.mxu0 0.0
        %2445 = vmatprep.subr.mxu0 0.0
        %2446 = vmatpush1.msra.mxu0 0.0
        %2447 = vmatprep.subr.mxu0 0.0
        %2448 = vmatpush1.msra.mxu0 0.0
        %2449 = vmatprep.subr.mxu0 0.0
        %2450 = vmatpush1.msra.mxu0 0.0
        %2451 = vmatprep.subr.mxu0 0.0
        %2452 = vmatpush1.msra.mxu0 0.0
        %2453 = vmatprep.subr.mxu0 0.0
        %2454 = vmatpush1.msra.mxu0 0.0
        %2455 = vmatprep.subr.mxu0 0.0
        %2456 = vmatpush1.msra.mxu0 0.0
        %2457 = vmatprep.subr.mxu0 0.0
        %2458 = vmatpush1.msra.mxu0 0.0
        %2459 = vmatprep.subr.mxu0 0.0
        %2460 = vmatpush1.msra.mxu0 0.0
        %2461 = vmatprep.subr.mxu0 0.0
        %2462 = vmatpush1.msra.mxu0 0.0
        %2463 = vmatprep.subr.mxu0 0.0
        %2464 = vmatpush1.msra.mxu0 0.0
        %2465 = vmatprep.subr.mxu0 0.0
        %2466 = vmatpush1.msra.mxu0 0.0
        %2467 = vmatprep.subr.mxu0 0.0
        %2468 = vmatpush1.msra.mxu0 0.0
        %2469 = vmatprep.subr.mxu0 0.0
        %2470 = vmatpush1.msra.mxu0 0.0
        %2471 = vmatprep.subr.mxu0 0.0
        %2472 = vmatpush1.msra.mxu0 0.0
        %2473 = vmatprep.subr.mxu0 0.0
        %2474 = vmatpush1.msra.mxu0 0.0
        %2475 = vmatprep.subr.mxu0 0.0
        %2476 = vmatpush1.msra.mxu0 0.0
        %2477 = vmatprep.subr.mxu0 0.0
        %2478 = vmatpush1.msra.mxu0 0.0
        %2479 = vmatprep.subr.mxu0 0.0
        %2480 = vmatpush1.msra.mxu0 0.0
        %2481 = vmatprep.subr.mxu0 0.0
        %2482 = vmatpush1.msra.mxu0 0.0
        %2483 = vmatprep.subr.mxu0 0.0
        %2484 = vmatpush1.msra.mxu0 0.0
        %2485 = vmatprep.subr.mxu0 0.0
        %2486 = vmatpush1.msra.mxu0 0.0
        %2487 = vmatprep.subr.mxu0 0.0
        %2488 = vmatpush1.msra.mxu0 0.0
        %2489 = vmatprep.subr.mxu0 0.0
        %2490 = vmatpush1.msra.mxu0 0.0
        %2491 = vmatprep.subr.mxu0 0.0
        %2492 = vmatpush1.msra.mxu0 0.0
        %2493 = vmatprep.subr.mxu0 0.0
        %2494 = vmatpush1.msra.mxu0 0.0
        %2495 = vmatprep.subr.mxu0 0.0
        %2496 = vmatpush1.msra.mxu0 0.0
        %2497 = vmatprep.subr.mxu0 0.0
        %2498 = vmatpush1.msra.mxu0 0.0
        %2499 = vmatprep.subr.mxu0 0.0
        %2500 = vmatpush1.msra.mxu0 0.0
        %2501 = vmatprep.mubr.f32.mxu0 0.0
        %2502 = vmatmul.mubr.f32.gmra.mrb[0].mxu0 %v2435
        %v2503 = vpop.f32.mrb[0].mxu0
        %v2504 = vadd.f32 %v350, %v2503
        %v2505 = vpop.f32.mrb[0].mxu0
        %2506 = vdwg.mxu0
        %v2507 = vld [vmem:[%s286 + $0xc] sm:$0x1]
        %v2508 = vld [vmem:[%s286 + $0x1c] sm:$0x1]
        %v2509 = vld [vmem:[%s286 + $0x2c] sm:$0x1]
        %v2510 = vld [vmem:[%s286 + $0x3c] sm:$0x1]
        %v2511 = vld [vmem:[%s286 + $0x4c] sm:$0x1]
        %v2512 = vld [vmem:[%s286 + $0x5c] sm:$0x1]
        %v2513 = vld [vmem:[%s286 + $0x6c] sm:$0x1]
        %v2514 = vld [vmem:[%s286 + $0x7c] sm:$0x1]
        %v2515 = vld [vmem:[%s286 + $0xd] sm:$0x1]
        %v2516 = vld [vmem:[%s286 + $0x1d] sm:$0x1]
        %v2517 = vld [vmem:[%s286 + $0x2d] sm:$0x1]
        %v2518 = vld [vmem:[%s286 + $0x3d] sm:$0x1]
        %v2519 = vld [vmem:[%s286 + $0x4d] sm:$0x1]
        %v2520 = vld [vmem:[%s286 + $0x5d] sm:$0x1]
        %v2521 = vld [vmem:[%s286 + $0x6d] sm:$0x1]
        %v2522 = vld [vmem:[%s286 + $0x7d] sm:$0x1]
        %v2531 = vrot.slane %v2508, 7
        %v2532 = vsel %vm356, %v2531, %v2507
        %v2533 = vrot.slane %v2509, 6
        %v2534 = vsel %vm359, %v2533, %v2532
        %v2535 = vrot.slane %v2510, 5
        %v2536 = vsel %vm463, %v2535, %v2534
        %v2537 = vrot.slane %v2511, 4
        %v2538 = vsel %vm466, %v2537, %v2536
        %v2539 = vrot.slane %v2512, 3
        %v2540 = vsel %vm469, %v2539, %v2538
        %v2541 = vrot.slane %v2513, 2
        %v2542 = vsel %vm472, %v2541, %v2540
        %v2543 = vrot.slane %v2514, 1
        %v2544 = vsel %vm475, %v2543, %v2542
        %2546 = vmatprep.subr.mxu0 0.0
        %2547 = vmatpush1.msra.mxu0 %v2544
        %2548 = vmatprep.subr.mxu0 0.0
        %2549 = vmatpush1.msra.mxu0 0.0
        %2550 = vmatprep.subr.mxu0 0.0
        %2551 = vmatpush1.msra.mxu0 0.0
        %2552 = vmatprep.subr.mxu0 0.0
        %2553 = vmatpush1.msra.mxu0 0.0
        %2554 = vmatprep.subr.mxu0 0.0
        %2555 = vmatpush1.msra.mxu0 0.0
        %2556 = vmatprep.subr.mxu0 0.0
        %2557 = vmatpush1.msra.mxu0 0.0
        %2558 = vmatprep.subr.mxu0 0.0
        %2559 = vmatpush1.msra.mxu0 0.0
        %2560 = vmatprep.subr.mxu0 0.0
        %2561 = vmatpush1.msra.mxu0 0.0
        %2562 = vmatprep.subr.mxu0 0.0
        %2563 = vmatpush1.msra.mxu0 0.0
        %2564 = vmatprep.subr.mxu0 0.0
        %2565 = vmatpush1.msra.mxu0 0.0
        %2566 = vmatprep.subr.mxu0 0.0
        %2567 = vmatpush1.msra.mxu0 0.0
        %2568 = vmatprep.subr.mxu0 0.0
        %2569 = vmatpush1.msra.mxu0 0.0
        %2570 = vmatprep.subr.mxu0 0.0
        %2571 = vmatpush1.msra.mxu0 0.0
        %2572 = vmatprep.subr.mxu0 0.0
        %2573 = vmatpush1.msra.mxu0 0.0
        %2574 = vmatprep.subr.mxu0 0.0
        %2575 = vmatpush1.msra.mxu0 0.0
        %2576 = vmatprep.subr.mxu0 0.0
        %2577 = vmatpush1.msra.mxu0 0.0
        %2578 = vmatprep.subr.mxu0 0.0
        %2579 = vmatpush1.msra.mxu0 0.0
        %2580 = vmatprep.subr.mxu0 0.0
        %2581 = vmatpush1.msra.mxu0 0.0
        %2582 = vmatprep.subr.mxu0 0.0
        %2583 = vmatpush1.msra.mxu0 0.0
        %2584 = vmatprep.subr.mxu0 0.0
        %2585 = vmatpush1.msra.mxu0 0.0
        %2586 = vmatprep.subr.mxu0 0.0
        %2587 = vmatpush1.msra.mxu0 0.0
        %2588 = vmatprep.subr.mxu0 0.0
        %2589 = vmatpush1.msra.mxu0 0.0
        %2590 = vmatprep.subr.mxu0 0.0
        %2591 = vmatpush1.msra.mxu0 0.0
        %2592 = vmatprep.subr.mxu0 0.0
        %2593 = vmatpush1.msra.mxu0 0.0
        %2594 = vmatprep.subr.mxu0 0.0
        %2595 = vmatpush1.msra.mxu0 0.0
        %2596 = vmatprep.subr.mxu0 0.0
        %2597 = vmatpush1.msra.mxu0 0.0
        %2598 = vmatprep.subr.mxu0 0.0
        %2599 = vmatpush1.msra.mxu0 0.0
        %2600 = vmatprep.subr.mxu0 0.0
        %2601 = vmatpush1.msra.mxu0 0.0
        %2602 = vmatprep.subr.mxu0 0.0
        %2603 = vmatpush1.msra.mxu0 0.0
        %2604 = vmatprep.subr.mxu0 0.0
        %2605 = vmatpush1.msra.mxu0 0.0
        %2606 = vmatprep.subr.mxu0 0.0
        %2607 = vmatpush1.msra.mxu0 0.0
        %2608 = vmatprep.subr.mxu0 0.0
        %2609 = vmatpush1.msra.mxu0 0.0
        %2610 = vmatprep.mubr.f32.mxu0 0.0
        %2611 = vmatmul.mubr.f32.gmra.mrb[0].mxu0 %v479
        %v2612 = vpop.f32.mrb[0].mxu0
        %v2613 = vadd.f32 %v2504, %v2612
        %v2614 = vpop.f32.mrb[0].mxu0
        %2615 = vdwg.mxu0
        %v2618 = vunpack.c.l.s4 1966171168
        %v2619 = vunpack.c.0.s8 %v2618
        %v2620 = vlaneseq
        %v2621 = vshrl.u32 %v2620, 7
        %v2622 = vsub.s32 %v2619, %v2621
        %v2623 = vrot.slane %v2613, %v2622
        %v2624 = vcombine.high %v2623, %v2623
        %v2626 = vunpack.c.l.s4 1966171168
        %v2627 = vunpack.c.0.s8 %v2626
        %v2628 = vlaneseq
        %v2629 = vshrl.u32 %v2628, 7
        %v2630 = vsub.s32 %v2627, %v2629
        %v2631 = vrot.slane %v2623, %v2630
        %v2633 = vunpack.c.l.s4 1966171168
        %v2634 = vunpack.c.0.s8 %v2633
        %v2635 = vlaneseq
        %v2636 = vshrl.u32 %v2635, 7
        %v2637 = vsub.s32 %v2634, %v2636
        %v2638 = vrot.slane %v2624, %v2637
        %v2639 = vcombine.high %v2631, %v2631
        %2643 = vst.msk [vmem:[%s338 + $0xc] sm:$0x1] %vm578, %v2631
        %2644 = vst.msk [vmem:[%s338 + $0x1c] sm:$0x1] %vm578, %v2638
        %2645 = vst.msk [vmem:[%s338 + $0x2c] sm:$0x1] %vm578, %v2639
        %v2654 = vrot.slane %v2516, 7
        %v2655 = vsel %vm356, %v2654, %v2515
        %v2656 = vrot.slane %v2517, 6
        %v2657 = vsel %vm359, %v2656, %v2655
        %v2658 = vrot.slane %v2518, 5
        %v2659 = vsel %vm463, %v2658, %v2657
        %v2660 = vrot.slane %v2519, 4
        %v2661 = vsel %vm466, %v2660, %v2659
        %v2662 = vrot.slane %v2520, 3
        %v2663 = vsel %vm469, %v2662, %v2661
        %v2664 = vrot.slane %v2521, 2
        %v2665 = vsel %vm472, %v2664, %v2663
        %v2666 = vrot.slane %v2522, 1
        %v2667 = vsel %vm475, %v2666, %v2665
        %2669 = vmatprep.subr.mxu0 0.0
        %2670 = vmatpush1.msra.mxu0 %v2667
        %2671 = vmatprep.subr.mxu0 0.0
        %2672 = vmatpush1.msra.mxu0 0.0
        %2673 = vmatprep.subr.mxu0 0.0
        %2674 = vmatpush1.msra.mxu0 0.0
        %2675 = vmatprep.subr.mxu0 0.0
        %2676 = vmatpush1.msra.mxu0 0.0
        %2677 = vmatprep.subr.mxu0 0.0
        %2678 = vmatpush1.msra.mxu0 0.0
        %2679 = vmatprep.subr.mxu0 0.0
        %2680 = vmatpush1.msra.mxu0 0.0
        %2681 = vmatprep.subr.mxu0 0.0
        %2682 = vmatpush1.msra.mxu0 0.0
        %2683 = vmatprep.subr.mxu0 0.0
        %2684 = vmatpush1.msra.mxu0 0.0
        %2685 = vmatprep.subr.mxu0 0.0
        %2686 = vmatpush1.msra.mxu0 0.0
        %2687 = vmatprep.subr.mxu0 0.0
        %2688 = vmatpush1.msra.mxu0 0.0
        %2689 = vmatprep.subr.mxu0 0.0
        %2690 = vmatpush1.msra.mxu0 0.0
        %2691 = vmatprep.subr.mxu0 0.0
        %2692 = vmatpush1.msra.mxu0 0.0
        %2693 = vmatprep.subr.mxu0 0.0
        %2694 = vmatpush1.msra.mxu0 0.0
        %2695 = vmatprep.subr.mxu0 0.0
        %2696 = vmatpush1.msra.mxu0 0.0
        %2697 = vmatprep.subr.mxu0 0.0
        %2698 = vmatpush1.msra.mxu0 0.0
        %2699 = vmatprep.subr.mxu0 0.0
        %2700 = vmatpush1.msra.mxu0 0.0
        %2701 = vmatprep.subr.mxu0 0.0
        %2702 = vmatpush1.msra.mxu0 0.0
        %2703 = vmatprep.subr.mxu0 0.0
        %2704 = vmatpush1.msra.mxu0 0.0
        %2705 = vmatprep.subr.mxu0 0.0
        %2706 = vmatpush1.msra.mxu0 0.0
        %2707 = vmatprep.subr.mxu0 0.0
        %2708 = vmatpush1.msra.mxu0 0.0
        %2709 = vmatprep.subr.mxu0 0.0
        %2710 = vmatpush1.msra.mxu0 0.0
        %2711 = vmatprep.subr.mxu0 0.0
        %2712 = vmatpush1.msra.mxu0 0.0
        %2713 = vmatprep.subr.mxu0 0.0
        %2714 = vmatpush1.msra.mxu0 0.0
        %2715 = vmatprep.subr.mxu0 0.0
        %2716 = vmatpush1.msra.mxu0 0.0
        %2717 = vmatprep.subr.mxu0 0.0
        %2718 = vmatpush1.msra.mxu0 0.0
        %2719 = vmatprep.subr.mxu0 0.0
        %2720 = vmatpush1.msra.mxu0 0.0
        %2721 = vmatprep.subr.mxu0 0.0
        %2722 = vmatpush1.msra.mxu0 0.0
        %2723 = vmatprep.subr.mxu0 0.0
        %2724 = vmatpush1.msra.mxu0 0.0
        %2725 = vmatprep.subr.mxu0 0.0
        %2726 = vmatpush1.msra.mxu0 0.0
        %2727 = vmatprep.subr.mxu0 0.0
        %2728 = vmatpush1.msra.mxu0 0.0
        %2729 = vmatprep.subr.mxu0 0.0
        %2730 = vmatpush1.msra.mxu0 0.0
        %2731 = vmatprep.subr.mxu0 0.0
        %2732 = vmatpush1.msra.mxu0 0.0
        %2733 = vmatprep.mubr.f32.mxu0 0.0
        %2734 = vmatmul.mubr.f32.gmra.mrb[0].mxu0 %v479
        %v2735 = vpop.f32.mrb[0].mxu0
        %v2736 = vadd.f32 %v2504, %v2735
        %v2737 = vpop.f32.mrb[0].mxu0
        %2738 = vdwg.mxu0
        %v2741 = vunpack.c.l.s4 1966171168
        %v2742 = vunpack.c.0.s8 %v2741
        %v2743 = vlaneseq
        %v2744 = vshrl.u32 %v2743, 7
        %v2745 = vsub.s32 %v2742, %v2744
        %v2746 = vrot.slane %v2736, %v2745
        %v2747 = vcombine.high %v2746, %v2746
        %v2749 = vunpack.c.l.s4 1966171168
        %v2750 = vunpack.c.0.s8 %v2749
        %v2751 = vlaneseq
        %v2752 = vshrl.u32 %v2751, 7
        %v2753 = vsub.s32 %v2750, %v2752
        %v2754 = vrot.slane %v2746, %v2753
        %v2756 = vunpack.c.l.s4 1966171168
        %v2757 = vunpack.c.0.s8 %v2756
        %v2758 = vlaneseq
        %v2759 = vshrl.u32 %v2758, 7
        %v2760 = vsub.s32 %v2757, %v2759
        %v2761 = vrot.slane %v2747, %v2760
        %v2762 = vcombine.high %v2754, %v2754
        %2766 = vst.msk [vmem:[%s338 + $0xd] sm:$0x1] %vm578, %v2754
        %2767 = vst.msk [vmem:[%s338 + $0x1d] sm:$0x1] %vm578, %v2761
        %2768 = vst.msk [vmem:[%s338 + $0x2d] sm:$0x1] %vm578, %v2762
        %v2769 = vld [vmem:[%s299 + $0x7] sm:$0x1]
        %v2770 = vld [vmem:[%s299 + $0xf] sm:$0x1]
        %v2771 = vld [vmem:[%s299 + $0x17] sm:$0x1]
        %v2775 = vrot.slane %v2770, 7
        %v2776 = vsel %vm356, %v2775, %v2769
        %v2777 = vrot.slane %v2771, 6
        %v2778 = vsel %vm359, %v2777, %v2776
        %v2779 = vsel %vm361, %v2778, 0
        %2781 = vmatprep.subr.mxu0 0.0
        %2782 = vmatpush1.msra.mxu0 %v342
        %2783 = vmatprep.subr.mxu0 0.0
        %2784 = vmatpush1.msra.mxu0 0.0
        %2785 = vmatprep.subr.mxu0 0.0
        %2786 = vmatpush1.msra.mxu0 0.0
        %2787 = vmatprep.subr.mxu0 0.0
        %2788 = vmatpush1.msra.mxu0 0.0
        %2789 = vmatprep.subr.mxu0 0.0
        %2790 = vmatpush1.msra.mxu0 0.0
        %2791 = vmatprep.subr.mxu0 0.0
        %2792 = vmatpush1.msra.mxu0 0.0
        %2793 = vmatprep.subr.mxu0 0.0
        %2794 = vmatpush1.msra.mxu0 0.0
        %2795 = vmatprep.subr.mxu0 0.0
        %2796 = vmatpush1.msra.mxu0 0.0
        %2797 = vmatprep.subr.mxu0 0.0
        %2798 = vmatpush1.msra.mxu0 0.0
        %2799 = vmatprep.subr.mxu0 0.0
        %2800 = vmatpush1.msra.mxu0 0.0
        %2801 = vmatprep.subr.mxu0 0.0
        %2802 = vmatpush1.msra.mxu0 0.0
        %2803 = vmatprep.subr.mxu0 0.0
        %2804 = vmatpush1.msra.mxu0 0.0
        %2805 = vmatprep.subr.mxu0 0.0
        %2806 = vmatpush1.msra.mxu0 0.0
        %2807 = vmatprep.subr.mxu0 0.0
        %2808 = vmatpush1.msra.mxu0 0.0
        %2809 = vmatprep.subr.mxu0 0.0
        %2810 = vmatpush1.msra.mxu0 0.0
        %2811 = vmatprep.subr.mxu0 0.0
        %2812 = vmatpush1.msra.mxu0 0.0
        %2813 = vmatprep.subr.mxu0 0.0
        %2814 = vmatpush1.msra.mxu0 0.0
        %2815 = vmatprep.subr.mxu0 0.0
        %2816 = vmatpush1.msra.mxu0 0.0
        %2817 = vmatprep.subr.mxu0 0.0
        %2818 = vmatpush1.msra.mxu0 0.0
        %2819 = vmatprep.subr.mxu0 0.0
        %2820 = vmatpush1.msra.mxu0 0.0
        %2821 = vmatprep.subr.mxu0 0.0
        %2822 = vmatpush1.msra.mxu0 0.0
        %2823 = vmatprep.subr.mxu0 0.0
        %2824 = vmatpush1.msra.mxu0 0.0
        %2825 = vmatprep.subr.mxu0 0.0
        %2826 = vmatpush1.msra.mxu0 0.0
        %2827 = vmatprep.subr.mxu0 0.0
        %2828 = vmatpush1.msra.mxu0 0.0
        %2829 = vmatprep.subr.mxu0 0.0
        %2830 = vmatpush1.msra.mxu0 0.0
        %2831 = vmatprep.subr.mxu0 0.0
        %2832 = vmatpush1.msra.mxu0 0.0
        %2833 = vmatprep.subr.mxu0 0.0
        %2834 = vmatpush1.msra.mxu0 0.0
        %2835 = vmatprep.subr.mxu0 0.0
        %2836 = vmatpush1.msra.mxu0 0.0
        %2837 = vmatprep.subr.mxu0 0.0
        %2838 = vmatpush1.msra.mxu0 0.0
        %2839 = vmatprep.subr.mxu0 0.0
        %2840 = vmatpush1.msra.mxu0 0.0
        %2841 = vmatprep.subr.mxu0 0.0
        %2842 = vmatpush1.msra.mxu0 0.0
        %2843 = vmatprep.subr.mxu0 0.0
        %2844 = vmatpush1.msra.mxu0 0.0
        %2845 = vmatprep.mubr.f32.mxu0 0.0
        %2846 = vmatmul.mubr.f32.gmra.mrb[0].mxu0 %v2779
        %v2847 = vpop.f32.mrb[0].mxu0
        %v2848 = vadd.f32 %v350, %v2847
        %v2849 = vpop.f32.mrb[0].mxu0
        %2850 = vdwg.mxu0
        %v2851 = vld [vmem:[%s286 + $0xe] sm:$0x1]
        %v2852 = vld [vmem:[%s286 + $0x1e] sm:$0x1]
        %v2853 = vld [vmem:[%s286 + $0x2e] sm:$0x1]
        %v2854 = vld [vmem:[%s286 + $0x3e] sm:$0x1]
        %v2855 = vld [vmem:[%s286 + $0x4e] sm:$0x1]
        %v2856 = vld [vmem:[%s286 + $0x5e] sm:$0x1]
        %v2857 = vld [vmem:[%s286 + $0x6e] sm:$0x1]
        %v2858 = vld [vmem:[%s286 + $0x7e] sm:$0x1]
        %v2859 = vld [vmem:[%s286 + $0xf] sm:$0x1]
        %v2860 = vld [vmem:[%s286 + $0x1f] sm:$0x1]
        %v2861 = vld [vmem:[%s286 + $0x2f] sm:$0x1]
        %v2862 = vld [vmem:[%s286 + $0x3f] sm:$0x1]
        %v2863 = vld [vmem:[%s286 + $0x4f] sm:$0x1]
        %v2864 = vld [vmem:[%s286 + $0x5f] sm:$0x1]
        %v2865 = vld [vmem:[%s286 + $0x6f] sm:$0x1]
        %v2866 = vld [vmem:[%s286 + $0x7f] sm:$0x1]
        %v2875 = vrot.slane %v2852, 7
        %v2876 = vsel %vm356, %v2875, %v2851
        %v2877 = vrot.slane %v2853, 6
        %v2878 = vsel %vm359, %v2877, %v2876
        %v2879 = vrot.slane %v2854, 5
        %v2880 = vsel %vm463, %v2879, %v2878
        %v2881 = vrot.slane %v2855, 4
        %v2882 = vsel %vm466, %v2881, %v2880
        %v2883 = vrot.slane %v2856, 3
        %v2884 = vsel %vm469, %v2883, %v2882
        %v2885 = vrot.slane %v2857, 2
        %v2886 = vsel %vm472, %v2885, %v2884
        %v2887 = vrot.slane %v2858, 1
        %v2888 = vsel %vm475, %v2887, %v2886
        %2890 = vmatprep.subr.mxu0 0.0
        %2891 = vmatpush1.msra.mxu0 %v2888
        %2892 = vmatprep.subr.mxu0 0.0
        %2893 = vmatpush1.msra.mxu0 0.0
        %2894 = vmatprep.subr.mxu0 0.0
        %2895 = vmatpush1.msra.mxu0 0.0
        %2896 = vmatprep.subr.mxu0 0.0
        %2897 = vmatpush1.msra.mxu0 0.0
        %2898 = vmatprep.subr.mxu0 0.0
        %2899 = vmatpush1.msra.mxu0 0.0
        %2900 = vmatprep.subr.mxu0 0.0
        %2901 = vmatpush1.msra.mxu0 0.0
        %2902 = vmatprep.subr.mxu0 0.0
        %2903 = vmatpush1.msra.mxu0 0.0
        %2904 = vmatprep.subr.mxu0 0.0
        %2905 = vmatpush1.msra.mxu0 0.0
        %2906 = vmatprep.subr.mxu0 0.0
        %2907 = vmatpush1.msra.mxu0 0.0
        %2908 = vmatprep.subr.mxu0 0.0
        %2909 = vmatpush1.msra.mxu0 0.0
        %2910 = vmatprep.subr.mxu0 0.0
        %2911 = vmatpush1.msra.mxu0 0.0
        %2912 = vmatprep.subr.mxu0 0.0
        %2913 = vmatpush1.msra.mxu0 0.0
        %2914 = vmatprep.subr.mxu0 0.0
        %2915 = vmatpush1.msra.mxu0 0.0
        %2916 = vmatprep.subr.mxu0 0.0
        %2917 = vmatpush1.msra.mxu0 0.0
        %2918 = vmatprep.subr.mxu0 0.0
        %2919 = vmatpush1.msra.mxu0 0.0
        %2920 = vmatprep.subr.mxu0 0.0
        %2921 = vmatpush1.msra.mxu0 0.0
        %2922 = vmatprep.subr.mxu0 0.0
        %2923 = vmatpush1.msra.mxu0 0.0
        %2924 = vmatprep.subr.mxu0 0.0
        %2925 = vmatpush1.msra.mxu0 0.0
        %2926 = vmatprep.subr.mxu0 0.0
        %2927 = vmatpush1.msra.mxu0 0.0
        %2928 = vmatprep.subr.mxu0 0.0
        %2929 = vmatpush1.msra.mxu0 0.0
        %2930 = vmatprep.subr.mxu0 0.0
        %2931 = vmatpush1.msra.mxu0 0.0
        %2932 = vmatprep.subr.mxu0 0.0
        %2933 = vmatpush1.msra.mxu0 0.0
        %2934 = vmatprep.subr.mxu0 0.0
        %2935 = vmatpush1.msra.mxu0 0.0
        %2936 = vmatprep.subr.mxu0 0.0
        %2937 = vmatpush1.msra.mxu0 0.0
        %2938 = vmatprep.subr.mxu0 0.0
        %2939 = vmatpush1.msra.mxu0 0.0
        %2940 = vmatprep.subr.mxu0 0.0
        %2941 = vmatpush1.msra.mxu0 0.0
        %2942 = vmatprep.subr.mxu0 0.0
        %2943 = vmatpush1.msra.mxu0 0.0
        %2944 = vmatprep.subr.mxu0 0.0
        %2945 = vmatpush1.msra.mxu0 0.0
        %2946 = vmatprep.subr.mxu0 0.0
        %2947 = vmatpush1.msra.mxu0 0.0
        %2948 = vmatprep.subr.mxu0 0.0
        %2949 = vmatpush1.msra.mxu0 0.0
        %2950 = vmatprep.subr.mxu0 0.0
        %2951 = vmatpush1.msra.mxu0 0.0
        %2952 = vmatprep.subr.mxu0 0.0
        %2953 = vmatpush1.msra.mxu0 0.0
        %2954 = vmatprep.mubr.f32.mxu0 0.0
        %2955 = vmatmul.mubr.f32.gmra.mrb[0].mxu0 %v479
        %v2956 = vpop.f32.mrb[0].mxu0
        %v2957 = vadd.f32 %v2848, %v2956
        %v2958 = vpop.f32.mrb[0].mxu0
        %2959 = vdwg.mxu0
        %v2962 = vunpack.c.l.s4 1966171168
        %v2963 = vunpack.c.0.s8 %v2962
        %v2964 = vlaneseq
        %v2965 = vshrl.u32 %v2964, 7
        %v2966 = vsub.s32 %v2963, %v2965
        %v2967 = vrot.slane %v2957, %v2966
        %v2968 = vcombine.high %v2967, %v2967
        %v2970 = vunpack.c.l.s4 1966171168
        %v2971 = vunpack.c.0.s8 %v2970
        %v2972 = vlaneseq
        %v2973 = vshrl.u32 %v2972, 7
        %v2974 = vsub.s32 %v2971, %v2973
        %v2975 = vrot.slane %v2967, %v2974
        %v2977 = vunpack.c.l.s4 1966171168
        %v2978 = vunpack.c.0.s8 %v2977
        %v2979 = vlaneseq
        %v2980 = vshrl.u32 %v2979, 7
        %v2981 = vsub.s32 %v2978, %v2980
        %v2982 = vrot.slane %v2968, %v2981
        %v2983 = vcombine.high %v2975, %v2975
        %2987 = vst.msk [vmem:[%s338 + $0xe] sm:$0x1] %vm578, %v2975
        %2988 = vst.msk [vmem:[%s338 + $0x1e] sm:$0x1] %vm578, %v2982
        %2989 = vst.msk [vmem:[%s338 + $0x2e] sm:$0x1] %vm578, %v2983
        %v2998 = vrot.slane %v2860, 7
        %v2999 = vsel %vm356, %v2998, %v2859
        %v3000 = vrot.slane %v2861, 6
        %v3001 = vsel %vm359, %v3000, %v2999
        %v3002 = vrot.slane %v2862, 5
        %v3003 = vsel %vm463, %v3002, %v3001
        %v3004 = vrot.slane %v2863, 4
        %v3005 = vsel %vm466, %v3004, %v3003
        %v3006 = vrot.slane %v2864, 3
        %v3007 = vsel %vm469, %v3006, %v3005
        %v3008 = vrot.slane %v2865, 2
        %v3009 = vsel %vm472, %v3008, %v3007
        %v3010 = vrot.slane %v2866, 1
        %v3011 = vsel %vm475, %v3010, %v3009
        %3013 = vmatprep.subr.mxu0 0.0
        %3014 = vmatpush1.msra.mxu0 %v3011
        %3015 = vmatprep.subr.mxu0 0.0
        %3016 = vmatpush1.msra.mxu0 0.0
        %3017 = vmatprep.subr.mxu0 0.0
        %3018 = vmatpush1.msra.mxu0 0.0
        %3019 = vmatprep.subr.mxu0 0.0
        %3020 = vmatpush1.msra.mxu0 0.0
        %3021 = vmatprep.subr.mxu0 0.0
        %3022 = vmatpush1.msra.mxu0 0.0
        %3023 = vmatprep.subr.mxu0 0.0
        %3024 = vmatpush1.msra.mxu0 0.0
        %3025 = vmatprep.subr.mxu0 0.0
        %3026 = vmatpush1.msra.mxu0 0.0
        %3027 = vmatprep.subr.mxu0 0.0
        %3028 = vmatpush1.msra.mxu0 0.0
        %3029 = vmatprep.subr.mxu0 0.0
        %3030 = vmatpush1.msra.mxu0 0.0
        %3031 = vmatprep.subr.mxu0 0.0
        %3032 = vmatpush1.msra.mxu0 0.0
        %3033 = vmatprep.subr.mxu0 0.0
        %3034 = vmatpush1.msra.mxu0 0.0
        %3035 = vmatprep.subr.mxu0 0.0
        %3036 = vmatpush1.msra.mxu0 0.0
        %3037 = vmatprep.subr.mxu0 0.0
        %3038 = vmatpush1.msra.mxu0 0.0
        %3039 = vmatprep.subr.mxu0 0.0
        %3040 = vmatpush1.msra.mxu0 0.0
        %3041 = vmatprep.subr.mxu0 0.0
        %3042 = vmatpush1.msra.mxu0 0.0
        %3043 = vmatprep.subr.mxu0 0.0
        %3044 = vmatpush1.msra.mxu0 0.0
        %3045 = vmatprep.subr.mxu0 0.0
        %3046 = vmatpush1.msra.mxu0 0.0
        %3047 = vmatprep.subr.mxu0 0.0
        %3048 = vmatpush1.msra.mxu0 0.0
        %3049 = vmatprep.subr.mxu0 0.0
        %3050 = vmatpush1.msra.mxu0 0.0
        %3051 = vmatprep.subr.mxu0 0.0
        %3052 = vmatpush1.msra.mxu0 0.0
        %3053 = vmatprep.subr.mxu0 0.0
        %3054 = vmatpush1.msra.mxu0 0.0
        %3055 = vmatprep.subr.mxu0 0.0
        %3056 = vmatpush1.msra.mxu0 0.0
        %3057 = vmatprep.subr.mxu0 0.0
        %3058 = vmatpush1.msra.mxu0 0.0
        %3059 = vmatprep.subr.mxu0 0.0
        %3060 = vmatpush1.msra.mxu0 0.0
        %3061 = vmatprep.subr.mxu0 0.0
        %3062 = vmatpush1.msra.mxu0 0.0
        %3063 = vmatprep.subr.mxu0 0.0
        %3064 = vmatpush1.msra.mxu0 0.0
        %3065 = vmatprep.subr.mxu0 0.0
        %3066 = vmatpush1.msra.mxu0 0.0
        %3067 = vmatprep.subr.mxu0 0.0
        %3068 = vmatpush1.msra.mxu0 0.0
        %3069 = vmatprep.subr.mxu0 0.0
        %3070 = vmatpush1.msra.mxu0 0.0
        %3071 = vmatprep.subr.mxu0 0.0
        %3072 = vmatpush1.msra.mxu0 0.0
        %3073 = vmatprep.subr.mxu0 0.0
        %3074 = vmatpush1.msra.mxu0 0.0
        %3075 = vmatprep.subr.mxu0 0.0
        %3076 = vmatpush1.msra.mxu0 0.0
        %3077 = vmatprep.mubr.f32.mxu0 0.0
        %3078 = vmatmul.mubr.f32.gmra.mrb[0].mxu0 %v479
        %v3079 = vpop.f32.mrb[0].mxu0
        %v3080 = vadd.f32 %v2848, %v3079
        %v3081 = vpop.f32.mrb[0].mxu0
        %3082 = vdwg.mxu0
        %v3085 = vunpack.c.l.s4 1966171168
        %v3086 = vunpack.c.0.s8 %v3085
        %v3087 = vlaneseq
        %v3088 = vshrl.u32 %v3087, 7
        %v3089 = vsub.s32 %v3086, %v3088
        %v3090 = vrot.slane %v3080, %v3089
        %v3091 = vcombine.high %v3090, %v3090
        %v3093 = vunpack.c.l.s4 1966171168
        %v3094 = vunpack.c.0.s8 %v3093
        %v3095 = vlaneseq
        %v3096 = vshrl.u32 %v3095, 7
        %v3097 = vsub.s32 %v3094, %v3096
        %v3098 = vrot.slane %v3090, %v3097
        %v3100 = vunpack.c.l.s4 1966171168
        %v3101 = vunpack.c.0.s8 %v3100
        %v3102 = vlaneseq
        %v3103 = vshrl.u32 %v3102, 7
        %v3104 = vsub.s32 %v3101, %v3103
        %v3105 = vrot.slane %v3091, %v3104
        %v3106 = vcombine.high %v3098, %v3098
        %3110 = vst.msk [vmem:[%s338 + $0xf] sm:$0x1] %vm578, %v3098
        %3111 = vst.msk [vmem:[%s338 + $0x1f] sm:$0x1] %vm578, %v3105
        %3112 = vst.msk [vmem:[%s338 + $0x2f] sm:$0x1] %vm578, %v3106
        %s3113 = sand.u32 %s165, 1
        %s3114 = scalar_lea.sflag [#allocation4], %s3113
        %s3115 = sand.u32 %s165, 1
        %s3116 = smul.addr %s3115, 48
        %s3117 = scalar_lea.vmem [#allocation11], %s3116
        // Predicated region
        $region61: #{tpu_custom_call.1} parent=39 // pred_check
          %p3118 = pneg %p175
        $region62: #{tpu_custom_call.1} parent=39 // pred_check_branch
          %3120 = sbr.rel (%p3118) target = $region64
        $region63: #{tpu_custom_call.1} parent=39 // pred_region
          %s3121 = smul.u32 2, %s29
          %s3123 = ssub.s32 768, 768
          %3124 = vsyncadd %s3114, %s3123
          %s3125 = smul.addr %s28, 6
          %s3126 = sadd.s32 %s3121, %s3125
          %s3127 = smul.addr %s3126, 128
          %s3128 = scalar_lea.hbm %s5, %s3127
          %s3129 = sshll.u32 %s3117, 4
          %s3130 = int_to_ptr.vmem [resolvable:$true] %s3129
          %3135 = dma.vmem_to_hbm [thread:$0]  %s3130, 768, %s3128, %s3114, 128, 128, 8
        $region64: #{tpu_custom_call.1} parent=39 // pred_fallthru
          _
      $region40: #{tpu_custom_call.1} parent=5 // pred_fallthru
        _
      %p3136 = scmp.le.s32.totalorder 2, %s19
      // Predicated region
      $region65: #{tpu_custom_call.1} parent=5 // pred_check
        %p3137 = pneg %p3136
      $region66: #{tpu_custom_call.1} parent=5 // pred_check_branch
        %3139 = sbr.rel (%p3137) target = $region68
      $region67: #{tpu_custom_call.1} parent=5 // pred_region
        %s3140 = ssub.s32 %s19, 2
        // Predicated region
        $region69: #{tpu_custom_call.1} parent=67 // pred_check
          %p3141 = pneg %p181
        $region70: #{tpu_custom_call.1} parent=67 // pred_check_branch
          %3143 = sbr.rel (%p3141) target = $region72
        $region71: #{tpu_custom_call.1} parent=67 // pred_region
          %s3144 = sand.u32 %s166, 1
          %s3145 = scalar_lea.sflag [#allocation4], %s3144
          %s3146 = sand.u32 %s166, 1
          %s3147 = smul.addr %s3146, 48
          %s3148 = scalar_lea.vmem [#allocation11], %s3147
          %3149 = dma.done %s3145, 768
        $region72: #{tpu_custom_call.1} parent=67 // pred_fallthru
          _
      $region68: #{tpu_custom_call.1} parent=5 // pred_fallthru
        _
    $region6: #{tpu_custom_call.1} parent=1 // loop_footer
      %s23 = sadd.s32 1, %s19
    $region7: #{tpu_custom_call.1} parent=1 // loop_footer_branch
      %18 = sbr.rel target = $region3
    $region8: #{tpu_custom_call.1} parent=1 // loop_exit
      _
    %3150 = vsyncpa [#allocation3], 1
    %s3151 = scalar_lea.sflag [#allocation3], 1
    %3152 = vsyncpa %s3151, 1
    %3153 = vsyncpa [#allocation6], 1
    %3154 = vsyncpa [#allocation10], 1
    %3155 = vsyncpa [#allocation4], 1
    %s3156 = scalar_lea.sflag [#allocation4], 1
    %3157 = vsyncpa %s3156, 1

</llo_original>
